<compile_context>
chip_gen: v7x
topology: tpu7x:2x2x1
jax: 0.10.0
libtpu: 0.0.40
codegen_flags: <defaults>
</compile_context>

<pallas_src>
import functools

import jax
import jax.numpy as jnp
from jax.experimental import pallas as pl
from jax.experimental.pallas import tpu as pltpu

LEAKY_SLOPE = 0.01   # nn.LeakyReLU() default negative_slope (matches the spec)
BN_EPS = 1e-5
LANE = 128


def _round_up(x, m):
    return ((x + m - 1) // m) * m


# ---------------------------------------------------------------------------
# Fused (matmul + folded-BN shift + LeakyReLU) kernel for the conv layers
# ---------------------------------------------------------------------------
def _conv_mm_kernel(x_ref, w_ref, shift_ref, o_ref):
    y = jnp.dot(x_ref[...], w_ref[...], preferred_element_type=jnp.float32)  # MXU bf16 -> f32
    y = y + shift_ref[...]                                                   # bias + BN shift
    y = jnp.where(y >= 0.0, y, LEAKY_SLOPE * y)                              # LeakyReLU (f32 VPU)
    o_ref[...] = y.astype(o_ref.dtype)


def _pick_tm(m):
    # tm multiple of 16 (bf16 sublane packing); even grid step count for the
    # big layers (v7x dual TC), single step for tiny layers.
    if m <= 16:
        return _round_up(m, 8)
    if m <= 1024:
        return _round_up(_round_up(m, 32) // 2, 16)
    return 512


def fused_conv_matmul(cols, w, shift):
    """cols:(M,K) bf16, w:(K,Np) bf16, shift:(Np,) f32 -> (M,Np) bf16."""
    m, k = cols.shape
    kw_, np_ = w.shape
    assert k == kw_ and k % LANE == 0 and np_ % LANE == 0

    tm = _pick_tm(m)
    mp = _round_up(m, tm)
    if mp != m:
        cols = jnp.pad(cols, ((0, mp - m), (0, 0)))
    shift2 = shift.reshape(1, np_).astype(jnp.float32)

    flops = 2 * mp * k * np_
    bytes_accessed = (mp * k + k * np_ + mp * np_) * 2 + np_ * 4

    out = pl.pallas_call(
        _conv_mm_kernel,
        out_shape=jax.ShapeDtypeStruct((mp, np_), jnp.bfloat16),
        grid_spec=pltpu.PrefetchScalarGridSpec(
            num_scalar_prefetch=0,
            grid=(mp // tm,),
            in_specs=[
                pl.BlockSpec((tm, k), lambda i: (i, 0)),    # im2col activation tile
                pl.BlockSpec((k, np_), lambda i: (0, 0)),   # folded weight (grid-invariant)
                pl.BlockSpec((1, np_), lambda i: (0, 0)),   # folded shift (grid-invariant)
            ],
            out_specs=pl.BlockSpec((tm, np_), lambda i: (i, 0)),
        ),
        compiler_params=pltpu.CompilerParams(dimension_semantics=("parallel",)),
        cost_estimate=pl.CostEstimate(flops=flops, transcendentals=0,
                                      bytes_accessed=bytes_accessed),
    )(cols, w, shift2)
    return out[:m] if mp != m else out


# ---------------------------------------------------------------------------
# Fused tail kernel: fc1 + LeakyReLU + fc2(single unit, VPU reduce) + Sigmoid
# ---------------------------------------------------------------------------
def _fc_kernel(x_ref, w1_ref, b1_ref, w2_ref, b2_ref, o_ref):
    h = jnp.dot(x_ref[...], w1_ref[...], preferred_element_type=jnp.float32)  # (B,1024)
    h = h + b1_ref[...]
    h = jnp.where(h >= 0.0, h, LEAKY_SLOPE * h)
    # fc2 has one real output unit: VPU multiply + lane reduction against the
    # single weight row (no 128-column padded MXU pass, no extra bf16 cast).
    y = jnp.sum(h * w2_ref[...], axis=-1, keepdims=True) + b2_ref[...]        # (B,1)
    # numerically-stable sigmoid (exp of non-positive args only; EUP)
    z = jnp.exp(-jnp.abs(y))
    o_ref[...] = jnp.where(y >= 0.0, 1.0 / (1.0 + z), z / (1.0 + z))


def fused_fc(x, w1, b1, w2_row, b2):
    """x:(B,K) bf16 -> sigmoid(leaky(x@w1+b1) . w2 + b2) as f32 (B,1)."""
    b, k = x.shape
    _, h = w1.shape
    bp = _round_up(b, 8)
    if bp != b:
        x = jnp.pad(x, ((0, bp - b), (0, 0)))

    flops = 2 * bp * k * h + 4 * bp * h
    bytes_accessed = (bp * k + k * h) * 2 + (2 * h + 1 + bp) * 4

    out = pl.pallas_call(
        _fc_kernel,
        out_shape=jax.ShapeDtypeStruct((bp, 1), jnp.float32),
        grid_spec=pltpu.PrefetchScalarGridSpec(
            num_scalar_prefetch=0,
            grid=(1,),
            in_specs=[
                pl.BlockSpec((bp, k), lambda i: (0, 0)),
                pl.BlockSpec((k, h), lambda i: (0, 0)),
                pl.BlockSpec((1, h), lambda i: (0, 0)),
                pl.BlockSpec((1, h), lambda i: (0, 0)),
                pl.BlockSpec((1, 1), lambda i: (0, 0)),
            ],
            out_specs=pl.BlockSpec((bp, 1), lambda i: (0, 0)),
        ),
        compiler_params=pltpu.CompilerParams(dimension_semantics=("arbitrary",)),
        cost_estimate=pl.CostEstimate(flops=flops, transcendentals=bp,
                                      bytes_accessed=bytes_accessed),
    )(x, w1, b1.reshape(1, h).astype(jnp.float32),
      w2_row, b2.reshape(1, 1).astype(jnp.float32))
    return out[:b]


# ---------------------------------------------------------------------------
# Conv = packed-K im2col (XLA glue, static strides) + fused Pallas matmul
# ---------------------------------------------------------------------------
def _im2col_packed(x_nhwc, cin, stride, k_pad):
    """Build (M, k_pad) im2col patches from the first `cin` (real) channels.
    (kh, kw, cin) flattened contiguously; only the combined K is zero-padded
    up to k_pad (next multiple of 128) -- no per-tap 128-channel padding."""
    x = x_nhwc[..., :cin]
    xp = jnp.pad(x, ((0, 0), (1, 1), (1, 1), (0, 0)))
    n, hp, wp, c = xp.shape
    ho = (hp - 3) // stride + 1
    wo = (wp - 3) // stride + 1
    taps = []
    for kh in range(3):
        for kw in range(3):
            taps.append(xp[:, kh:kh + (ho - 1) * stride + 1:stride,
                              kw:kw + (wo - 1) * stride + 1:stride, :])
    patches = jnp.stack(taps, axis=3)                  # (n, ho, wo, 9, cin)
    cols = patches.reshape(n * ho * wo, 9 * c)
    if k_pad > 9 * c:
        cols = jnp.pad(cols, ((0, 0), (0, k_pad - 9 * c)))
    return cols.astype(jnp.bfloat16), (n, ho, wo)


def conv_layer(x_nhwc, w, shift, cin, stride):
    """3x3 conv (pad=1) + folded bias/BN + LeakyReLU; lane-dense (128ch) output."""
    cols, (n, ho, wo) = _im2col_packed(x_nhwc, cin, stride, w.shape[0])
    y = fused_conv_matmul(cols, w, shift)
    return y.reshape(n, ho, wo, y.shape[-1])


# ---------------------------------------------------------------------------
# Deterministic parameter construction (mirrors the PyTorch __init__ shapes),
# with BN/bias folding, packed K and fc1 row permutation done up front.
# ---------------------------------------------------------------------------
def init_params(key, img_feat=3, n_feats=8, num_of_block=3, patch_size=32):
    keys = iter(jax.random.split(key, 64))

    def conv_params(cin, cout, bn):
        # PyTorch weight (cout, cin, 3, 3) -> layout (kh, kw, cin, cout)
        w = 0.05 * jax.random.normal(next(keys), (3, 3, cin, cout), jnp.float32)
        b = 0.05 * jax.random.normal(next(keys), (cout,), jnp.float32)
        if bn:
            gamma = 0.5 + jax.random.uniform(next(keys), (cout,), jnp.float32)
            beta = 0.1 * jax.random.normal(next(keys), (cout,), jnp.float32)
            rmean = 0.1 * jax.random.normal(next(keys), (cout,), jnp.float32)
            rvar = jnp.ones((cout,), jnp.float32)
            scale = gamma / jnp.sqrt(rvar + BN_EPS)
            shift = beta - rmean * scale
        else:
            scale = jnp.ones((cout,), jnp.float32)
            shift = jnp.zeros((cout,), jnp.float32)
        w_eff = w * scale                       # fold BN scale into the weight
        shift_eff = b * scale + shift           # fold conv bias + BN shift
        k = 9 * cin
        k_pad = _round_up(k, LANE)              # pack real K, pad to 128-mult only
        cpo = _round_up(cout, LANE)             # lane-dense output channels
        w_flat = w_eff.reshape(k, cout)         # (kh,kw,cin) contiguous rows
        w_flat = jnp.pad(w_flat, ((0, k_pad - k), (0, cpo - cout)))
        shift_eff = jnp.pad(shift_eff, (0, cpo - cout))
        return w_flat.astype(jnp.bfloat16), shift_eff.astype(jnp.float32)

    convs, layer_cfg = [], []
    convs.append(conv_params(img_feat, n_feats, bn=False)); layer_cfg.append((img_feat, 1))  # conv01
    convs.append(conv_params(n_feats, n_feats, bn=False));  layer_cfg.append((n_feats, 2))   # conv02
    for i in range(num_of_block):                                                             # discrim_block x3
        ci = n_feats * 2 ** i
        co = n_feats * 2 ** (i + 1)
        convs.append(conv_params(ci, co, bn=True)); layer_cfg.append((ci, 1))
        convs.append(conv_params(co, co, bn=True)); layer_cfg.append((co, 2))

    c_last = n_feats * 2 ** num_of_block
    hw = patch_size // 2 ** (num_of_block + 1)
    linear_size = hw * hw * c_last                      # PyTorch self.linear_size

    fc1_w = 0.02 * jax.random.normal(next(keys), (linear_size, 1024), jnp.float32)
    fc1_b = 0.02 * jax.random.normal(next(keys), (1024,), jnp.float32)
    fc2_w = 0.02 * jax.random.normal(next(keys), (1024, 1), jnp.float32)
    fc2_b = 0.02 * jax.random.normal(next(keys), (1,), jnp.float32)

    # Re-order fc1 rows from PyTorch NCHW-flatten order (x.view(-1, linear_size))
    # to the padded-NHWC flatten order the conv pipeline produces; rows of the
    # padded channels are zero.  fc2 stays a single weight row (VPU reduce).
    cpl = _round_up(c_last, LANE)
    w1 = fc1_w.reshape(c_last, hw, hw, 1024).transpose(1, 2, 0, 3)   # (h, w, c, 1024)
    w1 = jnp.pad(w1, ((0, 0), (0, 0), (0, cpl - c_last), (0, 0)))
    w1 = w1.reshape(hw * hw * cpl, 1024).astype(jnp.bfloat16)
    w2_row = fc2_w.reshape(1, 1024).astype(jnp.float32)

    params = {"convs": convs, "fc1_w": w1, "fc1_b": fc1_b.astype(jnp.float32),
              "fc2_w": w2_row, "fc2_b": fc2_b.astype(jnp.float32)}
    return params, tuple(layer_cfg)


# ---------------------------------------------------------------------------
# Discriminator forward
# ---------------------------------------------------------------------------
def discriminator_forward(params, x_nchw, *, layer_cfg):
    # NCHW -> NHWC (real channels; im2col packs K from the real Cin per layer).
    x = jnp.transpose(x_nchw, (0, 2, 3, 1)).astype(jnp.bfloat16)

    for (w, shift), (cin, stride) in zip(params["convs"], layer_cfg):
        x = conv_layer(x, w, shift, cin, stride)

    # Flatten padded-NHWC directly; fc1 weight rows were permuted to match.
    n = x.shape[0]
    xf = x.reshape(n, -1)
    return fused_fc(xf, params["fc1_w"], params["fc1_b"],
                    params["fc2_w"], params["fc2_b"])


if __name__ == "__main__":
    key = jax.random.PRNGKey(0)
    pkey, xkey = jax.random.split(key)

    # Small config: img_feat=3, n_feats=8, num_of_block=3, patch_size=32
    params, layer_cfg = init_params(pkey, img_feat=3, n_feats=8,
                                    num_of_block=3, patch_size=32)

    x = jax.random.normal(xkey, (2, 3, 32, 32), jnp.float32)   # NCHW like PyTorch

    fwd = jax.jit(functools.partial(discriminator_forward, layer_cfg=layer_cfg))
    out = jax.block_until_ready(fwd(params, x))

    assert out.shape == (2, 1), out.shape
    assert bool(jnp.all(jnp.isfinite(out)))
    assert bool(jnp.all((out >= 0.0) & (out <= 1.0)))          # sigmoid range
    print("KERNEL_OK")
</pallas_src>

<mosaic_0001>
module attributes {stable_mosaic.version = 11 : i64} {
  func.func @_conv_mm_kernel(%arg0: i32, %arg1: memref<512x128xbf16, #tpu.memory_space<vmem>>, %arg2: memref<128x128xbf16, #tpu.memory_space<vmem>>, %arg3: memref<1x128xf32, #tpu.memory_space<vmem>>, %arg4: memref<512x128xbf16, #tpu.memory_space<vmem>>) attributes {dimension_semantics = [#tpu.dimension_semantics<parallel>], iteration_bounds = array<i64: 4>, scalar_prefetch = 0 : i64, scratch_operands = 0 : i64, tpu.core_type = #tpu.core_type<tc>, window_params = [{transform_indices = @transform_0, window_bounds = array<i64: 512, 128>}, {pipeline_mode = #tpu.pipeline_mode<synchronous>, transform_indices = @transform_1, window_bounds = array<i64: 128, 128>}, {pipeline_mode = #tpu.pipeline_mode<synchronous>, transform_indices = @transform_2, window_bounds = array<i64: 1, 128>}, {transform_indices = @transform_3, window_bounds = array<i64: 512, 128>}]} {
    %c0 = arith.constant 0 : index
    %c0_0 = arith.constant 0 : index
    %0 = vector.load %arg1[%c0, %c0_0] : memref<512x128xbf16, #tpu.memory_space<vmem>>, vector<512x128xbf16>
    %c0_1 = arith.constant 0 : index
    %c0_2 = arith.constant 0 : index
    %1 = vector.load %arg2[%c0_1, %c0_2] : memref<128x128xbf16, #tpu.memory_space<vmem>>, vector<128x128xbf16>
    %cst = arith.constant dense<0.000000e+00> : vector<512x128xf32>
    %2 = tpu.matmul %0, %1, %cst {dimension_numbers = #tpu.dot_dimension_numbers<[1], [0], [0], [1], [0, 0, 1, 1], [], []>} : vector<512x128xbf16>, vector<128x128xbf16>, vector<512x128xf32> -> vector<512x128xf32>
    %c0_3 = arith.constant 0 : index
    %c0_4 = arith.constant 0 : index
    %3 = vector.load %arg3[%c0_3, %c0_4] : memref<1x128xf32, #tpu.memory_space<vmem>>, vector<1x128xf32>
    %4 = vector.broadcast %3 : vector<1x128xf32> to vector<512x128xf32>
    %5 = arith.addf %2, %4 : vector<512x128xf32>
    %cst_5 = arith.constant 0.000000e+00 : f32
    %6 = vector.broadcast %cst_5 : f32 to vector<512x128xf32>
    %7 = arith.cmpf oge, %5, %6 : vector<512x128xf32>
    %cst_6 = arith.constant 0.00999999977 : f32
    %8 = vector.broadcast %cst_6 : f32 to vector<512x128xf32>
    %9 = arith.mulf %8, %5 : vector<512x128xf32>
    %10 = arith.select %7, %5, %9 : vector<512x128xi1>, vector<512x128xf32>
    %11 = arith.truncf %10 : vector<512x128xf32> to vector<512x128xbf16>
    %c0_7 = arith.constant 0 : index
    %c0_8 = arith.constant 0 : index
    %12 = vector.load %arg4[%c0_7, %c0_8] : memref<512x128xbf16, #tpu.memory_space<vmem>>, vector<512x128xbf16>
    tpu.vector_store %arg4[%c0_7, %c0_8], %11 {strides = array<i32>} : memref<512x128xbf16, #tpu.memory_space<vmem>>, vector<512x128xbf16>,
    return
  }
  func.func @transform_0(%arg0: i32) -> (i32, i32) {
    %c0_i32 = arith.constant 0 : i32
    %c0_i32_0 = arith.constant 0 : i32
    return %arg0, %c0_i32 : i32, i32
  }
  func.func @transform_1(%arg0: i32) -> (i32, i32) {
    %c0_i32 = arith.constant 0 : i32
    %c0_i32_0 = arith.constant 0 : i32
    %c0_i32_1 = arith.constant 0 : i32
    return %c0_i32, %c0_i32_0 : i32, i32
  }
  func.func @transform_2(%arg0: i32) -> (i32, i32) {
    %c0_i32 = arith.constant 0 : i32
    %c0_i32_0 = arith.constant 0 : i32
    %c0_i32_1 = arith.constant 0 : i32
    return %c0_i32, %c0_i32_0 : i32, i32
  }
  func.func @transform_3(%arg0: i32) -> (i32, i32) {
    %c0_i32 = arith.constant 0 : i32
    %c0_i32_0 = arith.constant 0 : i32
    return %arg0, %c0_i32 : i32, i32
  }
}

module attributes {stable_mosaic.version = 11 : i64} {
  func.func @_conv_mm_kernel(%arg0: i32, %arg1: memref<256x128xbf16, #tpu.memory_space<vmem>>, %arg2: memref<128x128xbf16, #tpu.memory_space<vmem>>, %arg3: memref<1x128xf32, #tpu.memory_space<vmem>>, %arg4: memref<256x128xbf16, #tpu.memory_space<vmem>>) attributes {dimension_semantics = [#tpu.dimension_semantics<parallel>], iteration_bounds = array<i64: 2>, scalar_prefetch = 0 : i64, scratch_operands = 0 : i64, tpu.core_type = #tpu.core_type<tc>, window_params = [{transform_indices = @transform_0, window_bounds = array<i64: 256, 128>}, {pipeline_mode = #tpu.pipeline_mode<synchronous>, transform_indices = @transform_1, window_bounds = array<i64: 128, 128>}, {pipeline_mode = #tpu.pipeline_mode<synchronous>, transform_indices = @transform_2, window_bounds = array<i64: 1, 128>}, {transform_indices = @transform_3, window_bounds = array<i64: 256, 128>}]} {
    %c0 = arith.constant 0 : index
    %c0_0 = arith.constant 0 : index
    %0 = vector.load %arg1[%c0, %c0_0] : memref<256x128xbf16, #tpu.memory_space<vmem>>, vector<256x128xbf16>
    %c0_1 = arith.constant 0 : index
    %c0_2 = arith.constant 0 : index
    %1 = vector.load %arg2[%c0_1, %c0_2] : memref<128x128xbf16, #tpu.memory_space<vmem>>, vector<128x128xbf16>
    %cst = arith.constant dense<0.000000e+00> : vector<256x128xf32>
    %2 = tpu.matmul %0, %1, %cst {dimension_numbers = #tpu.dot_dimension_numbers<[1], [0], [0], [1], [0, 0, 1, 1], [], []>} : vector<256x128xbf16>, vector<128x128xbf16>, vector<256x128xf32> -> vector<256x128xf32>
    %c0_3 = arith.constant 0 : index
    %c0_4 = arith.constant 0 : index
    %3 = vector.load %arg3[%c0_3, %c0_4] : memref<1x128xf32, #tpu.memory_space<vmem>>, vector<1x128xf32>
    %4 = vector.broadcast %3 : vector<1x128xf32> to vector<256x128xf32>
    %5 = arith.addf %2, %4 : vector<256x128xf32>
    %cst_5 = arith.constant 0.000000e+00 : f32
    %6 = vector.broadcast %cst_5 : f32 to vector<256x128xf32>
    %7 = arith.cmpf oge, %5, %6 : vector<256x128xf32>
    %cst_6 = arith.constant 0.00999999977 : f32
    %8 = vector.broadcast %cst_6 : f32 to vector<256x128xf32>
    %9 = arith.mulf %8, %5 : vector<256x128xf32>
    %10 = arith.select %7, %5, %9 : vector<256x128xi1>, vector<256x128xf32>
    %11 = arith.truncf %10 : vector<256x128xf32> to vector<256x128xbf16>
    %c0_7 = arith.constant 0 : index
    %c0_8 = arith.constant 0 : index
    %12 = vector.load %arg4[%c0_7, %c0_8] : memref<256x128xbf16, #tpu.memory_space<vmem>>, vector<256x128xbf16>
    tpu.vector_store %arg4[%c0_7, %c0_8], %11 {strides = array<i32>} : memref<256x128xbf16, #tpu.memory_space<vmem>>, vector<256x128xbf16>,
    return
  }
  func.func @transform_0(%arg0: i32) -> (i32, i32) {
    %c0_i32 = arith.constant 0 : i32
    %c0_i32_0 = arith.constant 0 : i32
    return %arg0, %c0_i32 : i32, i32
  }
  func.func @transform_1(%arg0: i32) -> (i32, i32) {
    %c0_i32 = arith.constant 0 : i32
    %c0_i32_0 = arith.constant 0 : i32
    %c0_i32_1 = arith.constant 0 : i32
    return %c0_i32, %c0_i32_0 : i32, i32
  }
  func.func @transform_2(%arg0: i32) -> (i32, i32) {
    %c0_i32 = arith.constant 0 : i32
    %c0_i32_0 = arith.constant 0 : i32
    %c0_i32_1 = arith.constant 0 : i32
    return %c0_i32, %c0_i32_0 : i32, i32
  }
  func.func @transform_3(%arg0: i32) -> (i32, i32) {
    %c0_i32 = arith.constant 0 : i32
    %c0_i32_0 = arith.constant 0 : i32
    return %arg0, %c0_i32 : i32, i32
  }
}

module attributes {stable_mosaic.version = 11 : i64} {
  func.func @_conv_mm_kernel(%arg0: i32, %arg1: memref<64x256xbf16, #tpu.memory_space<vmem>>, %arg2: memref<256x128xbf16, #tpu.memory_space<vmem>>, %arg3: memref<1x128xf32, #tpu.memory_space<vmem>>, %arg4: memref<64x128xbf16, #tpu.memory_space<vmem>>) attributes {dimension_semantics = [#tpu.dimension_semantics<parallel>], iteration_bounds = array<i64: 2>, scalar_prefetch = 0 : i64, scratch_operands = 0 : i64, tpu.core_type = #tpu.core_type<tc>, window_params = [{transform_indices = @transform_0, window_bounds = array<i64: 64, 256>}, {pipeline_mode = #tpu.pipeline_mode<synchronous>, transform_indices = @transform_1, window_bounds = array<i64: 256, 128>}, {pipeline_mode = #tpu.pipeline_mode<synchronous>, transform_indices = @transform_2, window_bounds = array<i64: 1, 128>}, {transform_indices = @transform_3, window_bounds = array<i64: 64, 128>}]} {
    %c0 = arith.constant 0 : index
    %c0_0 = arith.constant 0 : index
    %0 = vector.load %arg1[%c0, %c0_0] : memref<64x256xbf16, #tpu.memory_space<vmem>>, vector<64x256xbf16>
    %c0_1 = arith.constant 0 : index
    %c0_2 = arith.constant 0 : index
    %1 = vector.load %arg2[%c0_1, %c0_2] : memref<256x128xbf16, #tpu.memory_space<vmem>>, vector<256x128xbf16>
    %cst = arith.constant dense<0.000000e+00> : vector<64x128xf32>
    %2 = tpu.matmul %0, %1, %cst {dimension_numbers = #tpu.dot_dimension_numbers<[1], [0], [0], [1], [0, 0, 1, 1], [], []>} : vector<64x256xbf16>, vector<256x128xbf16>, vector<64x128xf32> -> vector<64x128xf32>
    %c0_3 = arith.constant 0 : index
    %c0_4 = arith.constant 0 : index
    %3 = vector.load %arg3[%c0_3, %c0_4] : memref<1x128xf32, #tpu.memory_space<vmem>>, vector<1x128xf32>
    %4 = vector.broadcast %3 : vector<1x128xf32> to vector<64x128xf32>
    %5 = arith.addf %2, %4 : vector<64x128xf32>
    %cst_5 = arith.constant 0.000000e+00 : f32
    %6 = vector.broadcast %cst_5 : f32 to vector<64x128xf32>
    %7 = arith.cmpf oge, %5, %6 : vector<64x128xf32>
    %cst_6 = arith.constant 0.00999999977 : f32
    %8 = vector.broadcast %cst_6 : f32 to vector<64x128xf32>
    %9 = arith.mulf %8, %5 : vector<64x128xf32>
    %10 = arith.select %7, %5, %9 : vector<64x128xi1>, vector<64x128xf32>
    %11 = arith.truncf %10 : vector<64x128xf32> to vector<64x128xbf16>
    %c0_7 = arith.constant 0 : index
    %c0_8 = arith.constant 0 : index
    %12 = vector.load %arg4[%c0_7, %c0_8] : memref<64x128xbf16, #tpu.memory_space<vmem>>, vector<64x128xbf16>
    tpu.vector_store %arg4[%c0_7, %c0_8], %11 {strides = array<i32>} : memref<64x128xbf16, #tpu.memory_space<vmem>>, vector<64x128xbf16>,
    return
  }
  func.func @transform_0(%arg0: i32) -> (i32, i32) {
    %c0_i32 = arith.constant 0 : i32
    %c0_i32_0 = arith.constant 0 : i32
    return %arg0, %c0_i32 : i32, i32
  }
  func.func @transform_1(%arg0: i32) -> (i32, i32) {
    %c0_i32 = arith.constant 0 : i32
    %c0_i32_0 = arith.constant 0 : i32
    %c0_i32_1 = arith.constant 0 : i32
    return %c0_i32, %c0_i32_0 : i32, i32
  }
  func.func @transform_2(%arg0: i32) -> (i32, i32) {
    %c0_i32 = arith.constant 0 : i32
    %c0_i32_0 = arith.constant 0 : i32
    %c0_i32_1 = arith.constant 0 : i32
    return %c0_i32, %c0_i32_0 : i32, i32
  }
  func.func @transform_3(%arg0: i32) -> (i32, i32) {
    %c0_i32 = arith.constant 0 : i32
    %c0_i32_0 = arith.constant 0 : i32
    return %arg0, %c0_i32 : i32, i32
  }
}

module attributes {stable_mosaic.version = 11 : i64} {
  func.func @_conv_mm_kernel(%arg0: i32, %arg1: memref<16x384xbf16, #tpu.memory_space<vmem>>, %arg2: memref<384x128xbf16, #tpu.memory_space<vmem>>, %arg3: memref<1x128xf32, #tpu.memory_space<vmem>>, %arg4: memref<16x128xbf16, #tpu.memory_space<vmem>>) attributes {dimension_semantics = [#tpu.dimension_semantics<parallel>], iteration_bounds = array<i64: 2>, scalar_prefetch = 0 : i64, scratch_operands = 0 : i64, tpu.core_type = #tpu.core_type<tc>, window_params = [{transform_indices = @transform_0, window_bounds = array<i64: 16, 384>}, {pipeline_mode = #tpu.pipeline_mode<synchronous>, transform_indices = @transform_1, window_bounds = array<i64: 384, 128>}, {pipeline_mode = #tpu.pipeline_mode<synchronous>, transform_indices = @transform_2, window_bounds = array<i64: 1, 128>}, {transform_indices = @transform_3, window_bounds = array<i64: 16, 128>}]} {
    %c0 = arith.constant 0 : index
    %c0_0 = arith.constant 0 : index
    %0 = vector.load %arg1[%c0, %c0_0] : memref<16x384xbf16, #tpu.memory_space<vmem>>, vector<16x384xbf16>
    %c0_1 = arith.constant 0 : index
    %c0_2 = arith.constant 0 : index
    %1 = vector.load %arg2[%c0_1, %c0_2] : memref<384x128xbf16, #tpu.memory_space<vmem>>, vector<384x128xbf16>
    %cst = arith.constant dense<0.000000e+00> : vector<16x128xf32>
    %2 = tpu.matmul %0, %1, %cst {dimension_numbers = #tpu.dot_dimension_numbers<[1], [0], [0], [1], [0, 0, 1, 1], [], []>} : vector<16x384xbf16>, vector<384x128xbf16>, vector<16x128xf32> -> vector<16x128xf32>
    %c0_3 = arith.constant 0 : index
    %c0_4 = arith.constant 0 : index
    %3 = vector.load %arg3[%c0_3, %c0_4] : memref<1x128xf32, #tpu.memory_space<vmem>>, vector<1x128xf32>
    %4 = vector.broadcast %3 : vector<1x128xf32> to vector<16x128xf32>
    %5 = arith.addf %2, %4 : vector<16x128xf32>
    %cst_5 = arith.constant 0.000000e+00 : f32
    %6 = vector.broadcast %cst_5 : f32 to vector<16x128xf32>
    %7 = arith.cmpf oge, %5, %6 : vector<16x128xf32>
    %cst_6 = arith.constant 0.00999999977 : f32
    %8 = vector.broadcast %cst_6 : f32 to vector<16x128xf32>
    %9 = arith.mulf %8, %5 : vector<16x128xf32>
    %10 = arith.select %7, %5, %9 : vector<16x128xi1>, vector<16x128xf32>
    %11 = arith.truncf %10 : vector<16x128xf32> to vector<16x128xbf16>
    %c0_7 = arith.constant 0 : index
    %c0_8 = arith.constant 0 : index
    %12 = vector.load %arg4[%c0_7, %c0_8] : memref<16x128xbf16, #tpu.memory_space<vmem>>, vector<16x128xbf16>
    tpu.vector_store %arg4[%c0_7, %c0_8], %11 {strides = array<i32>} : memref<16x128xbf16, #tpu.memory_space<vmem>>, vector<16x128xbf16>,
    return
  }
  func.func @transform_0(%arg0: i32) -> (i32, i32) {
    %c0_i32 = arith.constant 0 : i32
    %c0_i32_0 = arith.constant 0 : i32
    return %arg0, %c0_i32 : i32, i32
  }
  func.func @transform_1(%arg0: i32) -> (i32, i32) {
    %c0_i32 = arith.constant 0 : i32
    %c0_i32_0 = arith.constant 0 : i32
    %c0_i32_1 = arith.constant 0 : i32
    return %c0_i32, %c0_i32_0 : i32, i32
  }
  func.func @transform_2(%arg0: i32) -> (i32, i32) {
    %c0_i32 = arith.constant 0 : i32
    %c0_i32_0 = arith.constant 0 : i32
    %c0_i32_1 = arith.constant 0 : i32
    return %c0_i32, %c0_i32_0 : i32, i32
  }
  func.func @transform_3(%arg0: i32) -> (i32, i32) {
    %c0_i32 = arith.constant 0 : i32
    %c0_i32_0 = arith.constant 0 : i32
    return %arg0, %c0_i32 : i32, i32
  }
}

module attributes {stable_mosaic.version = 11 : i64} {
  func.func @_conv_mm_kernel(%arg0: i32, %arg1: memref<8x640xbf16, #tpu.memory_space<vmem>>, %arg2: memref<640x128xbf16, #tpu.memory_space<vmem>>, %arg3: memref<1x128xf32, #tpu.memory_space<vmem>>, %arg4: memref<8x128xbf16, #tpu.memory_space<vmem>>) attributes {dimension_semantics = [#tpu.dimension_semantics<parallel>], iteration_bounds = array<i64: 1>, scalar_prefetch = 0 : i64, scratch_operands = 0 : i64, tpu.core_type = #tpu.core_type<tc>, window_params = [{transform_indices = @transform_0, window_bounds = array<i64: 8, 640>}, {pipeline_mode = #tpu.pipeline_mode<synchronous>, transform_indices = @transform_1, window_bounds = array<i64: 640, 128>}, {pipeline_mode = #tpu.pipeline_mode<synchronous>, transform_indices = @transform_2, window_bounds = array<i64: 1, 128>}, {transform_indices = @transform_3, window_bounds = array<i64: 8, 128>}]} {
    %c0 = arith.constant 0 : index
    %c0_0 = arith.constant 0 : index
    %0 = vector.load %arg1[%c0, %c0_0] : memref<8x640xbf16, #tpu.memory_space<vmem>>, vector<8x640xbf16>
    %c0_1 = arith.constant 0 : index
    %c0_2 = arith.constant 0 : index
    %1 = vector.load %arg2[%c0_1, %c0_2] : memref<640x128xbf16, #tpu.memory_space<vmem>>, vector<640x128xbf16>
    %cst = arith.constant dense<0.000000e+00> : vector<8x128xf32>
    %2 = tpu.matmul %0, %1, %cst {dimension_numbers = #tpu.dot_dimension_numbers<[1], [0], [0], [1], [0, 0, 1, 1], [], []>} : vector<8x640xbf16>, vector<640x128xbf16>, vector<8x128xf32> -> vector<8x128xf32>
    %c0_3 = arith.constant 0 : index
    %c0_4 = arith.constant 0 : index
    %3 = vector.load %arg3[%c0_3, %c0_4] : memref<1x128xf32, #tpu.memory_space<vmem>>, vector<1x128xf32>
    %4 = vector.broadcast %3 : vector<1x128xf32> to vector<8x128xf32>
    %5 = arith.addf %2, %4 : vector<8x128xf32>
    %cst_5 = arith.constant 0.000000e+00 : f32
    %6 = vector.broadcast %cst_5 : f32 to vector<8x128xf32>
    %7 = arith.cmpf oge, %5, %6 : vector<8x128xf32>
    %cst_6 = arith.constant 0.00999999977 : f32
    %8 = vector.broadcast %cst_6 : f32 to vector<8x128xf32>
    %9 = arith.mulf %8, %5 : vector<8x128xf32>
    %10 = arith.select %7, %5, %9 : vector<8x128xi1>, vector<8x128xf32>
    %11 = arith.truncf %10 : vector<8x128xf32> to vector<8x128xbf16>
    %c0_7 = arith.constant 0 : index
    %c0_8 = arith.constant 0 : index
    %12 = vector.load %arg4[%c0_7, %c0_8] : memref<8x128xbf16, #tpu.memory_space<vmem>>, vector<8x128xbf16>
    tpu.vector_store %arg4[%c0_7, %c0_8], %11 {strides = array<i32>} : memref<8x128xbf16, #tpu.memory_space<vmem>>, vector<8x128xbf16>,
    return
  }
  func.func @transform_0(%arg0: i32) -> (i32, i32) {
    %c0_i32 = arith.constant 0 : i32
    %c0_i32_0 = arith.constant 0 : i32
    return %arg0, %c0_i32 : i32, i32
  }
  func.func @transform_1(%arg0: i32) -> (i32, i32) {
    %c0_i32 = arith.constant 0 : i32
    %c0_i32_0 = arith.constant 0 : i32
    %c0_i32_1 = arith.constant 0 : i32
    return %c0_i32, %c0_i32_0 : i32, i32
  }
  func.func @transform_2(%arg0: i32) -> (i32, i32) {
    %c0_i32 = arith.constant 0 : i32
    %c0_i32_0 = arith.constant 0 : i32
    %c0_i32_1 = arith.constant 0 : i32
    return %c0_i32, %c0_i32_0 : i32, i32
  }
  func.func @transform_3(%arg0: i32) -> (i32, i32) {
    %c0_i32 = arith.constant 0 : i32
    %c0_i32_0 = arith.constant 0 : i32
    return %arg0, %c0_i32 : i32, i32
  }
}

module attributes {stable_mosaic.version = 11 : i64} {
  func.func @_fc_kernel(%arg0: i32, %arg1: memref<8x512xbf16, #tpu.memory_space<vmem>>, %arg2: memref<512x1024xbf16, #tpu.memory_space<vmem>>, %arg3: memref<1x1024xf32, #tpu.memory_space<vmem>>, %arg4: memref<1x1024xf32, #tpu.memory_space<vmem>>, %arg5: memref<1x1xf32, #tpu.memory_space<vmem>>, %arg6: memref<8x1xf32, #tpu.memory_space<vmem>>) attributes {dimension_semantics = [#tpu.dimension_semantics<arbitrary>], iteration_bounds = array<i64: 1>, scalar_prefetch = 0 : i64, scratch_operands = 0 : i64, tpu.core_type = #tpu.core_type<tc>, window_params = [{pipeline_mode = #tpu.pipeline_mode<synchronous>, transform_indices = @transform_0, window_bounds = array<i64: 8, 512>}, {pipeline_mode = #tpu.pipeline_mode<synchronous>, transform_indices = @transform_1, window_bounds = array<i64: 512, 1024>}, {pipeline_mode = #tpu.pipeline_mode<synchronous>, transform_indices = @transform_2, window_bounds = array<i64: 1, 1024>}, {pipeline_mode = #tpu.pipeline_mode<synchronous>, transform_indices = @transform_3, window_bounds = array<i64: 1, 1024>}, {pipeline_mode = #tpu.pipeline_mode<synchronous>, transform_indices = @transform_4, window_bounds = array<i64: 1, 1>}, {pipeline_mode = #tpu.pipeline_mode<synchronous>, transform_indices = @transform_5, window_bounds = array<i64: 8, 1>}]} {
    %c0 = arith.constant 0 : index
    %c0_0 = arith.constant 0 : index
    %0 = vector.load %arg1[%c0, %c0_0] : memref<8x512xbf16, #tpu.memory_space<vmem>>, vector<8x512xbf16>
    %c0_1 = arith.constant 0 : index
    %c0_2 = arith.constant 0 : index
    %1 = vector.load %arg2[%c0_1, %c0_2] : memref<512x1024xbf16, #tpu.memory_space<vmem>>, vector<512x1024xbf16>
    %cst = arith.constant dense<0.000000e+00> : vector<8x1024xf32>
    %2 = tpu.matmul %0, %1, %cst {dimension_numbers = #tpu.dot_dimension_numbers<[1], [0], [0], [1], [0, 0, 1, 1], [], []>} : vector<8x512xbf16>, vector<512x1024xbf16>, vector<8x1024xf32> -> vector<8x1024xf32>
    %c0_3 = arith.constant 0 : index
    %c0_4 = arith.constant 0 : index
    %3 = vector.load %arg3[%c0_3, %c0_4] : memref<1x1024xf32, #tpu.memory_space<vmem>>, vector<1x1024xf32>
    %4 = vector.broadcast %3 : vector<1x1024xf32> to vector<8x1024xf32>
    %5 = arith.addf %2, %4 : vector<8x1024xf32>
    %cst_5 = arith.constant 0.000000e+00 : f32
    %6 = vector.broadcast %cst_5 : f32 to vector<8x1024xf32>
    %7 = arith.cmpf oge, %5, %6 : vector<8x1024xf32>
    %cst_6 = arith.constant 0.00999999977 : f32
    %8 = vector.broadcast %cst_6 : f32 to vector<8x1024xf32>
    %9 = arith.mulf %8, %5 : vector<8x1024xf32>
    %10 = arith.select %7, %5, %9 : vector<8x1024xi1>, vector<8x1024xf32>
    %c0_7 = arith.constant 0 : index
    %c0_8 = arith.constant 0 : index
    %11 = vector.load %arg4[%c0_7, %c0_8] : memref<1x1024xf32, #tpu.memory_space<vmem>>, vector<1x1024xf32>
    %12 = vector.broadcast %11 : vector<1x1024xf32> to vector<8x1024xf32>
    %13 = arith.mulf %10, %12 : vector<8x1024xf32>
    %cst_9 = arith.constant dense<0.000000e+00> : vector<8xf32>
    %14 = vector.multi_reduction <add>, %13, %cst_9 [1] : vector<8x1024xf32> to vector<8xf32>
    %15 = vector.shape_cast %14 : vector<8xf32> to vector<8x1xf32>
    %c0_10 = arith.constant 0 : index
    %c0_11 = arith.constant 0 : index
    %16 = vector.load %arg5[%c0_10, %c0_11] : memref<1x1xf32, #tpu.memory_space<vmem>>, vector<1x1xf32>
    %17 = vector.broadcast %16 : vector<1x1xf32> to vector<8x1xf32>
    %18 = arith.addf %15, %17 : vector<8x1xf32>
    %19 = math.absf %18 : vector<8x1xf32>
    %cst_12 = arith.constant 0.000000e+00 : f32
    %20 = vector.broadcast %cst_12 : f32 to vector<8x1xf32>
    %21 = arith.subf %20, %19 : vector<8x1xf32>
    %22 = math.exp %21 : vector<8x1xf32>
    %cst_13 = arith.constant 0.000000e+00 : f32
    %23 = vector.broadcast %cst_13 : f32 to vector<8x1xf32>
    %24 = arith.cmpf oge, %18, %23 : vector<8x1xf32>
    %cst_14 = arith.constant 1.000000e+00 : f32
    %25 = vector.broadcast %cst_14 : f32 to vector<8x1xf32>
    %26 = arith.addf %25, %22 : vector<8x1xf32>
    %cst_15 = arith.constant 1.000000e+00 : f32
    %27 = vector.broadcast %cst_15 : f32 to vector<8x1xf32>
    %28 = arith.divf %27, %26 : vector<8x1xf32>
    %cst_16 = arith.constant 1.000000e+00 : f32
    %29 = vector.broadcast %cst_16 : f32 to vector<8x1xf32>
    %30 = arith.addf %29, %22 : vector<8x1xf32>
    %31 = arith.divf %22, %30 : vector<8x1xf32>
    %32 = arith.select %24, %28, %31 : vector<8x1xi1>, vector<8x1xf32>
    %c0_17 = arith.constant 0 : index
    %c0_18 = arith.constant 0 : index
    %33 = vector.load %arg6[%c0_17, %c0_18] : memref<8x1xf32, #tpu.memory_space<vmem>>, vector<8x1xf32>
    tpu.vector_store %arg6[%c0_17, %c0_18], %32 {strides = array<i32>} : memref<8x1xf32, #tpu.memory_space<vmem>>, vector<8x1xf32>,
    return
  }
  func.func @transform_0(%arg0: i32) -> (i32, i32) {
    %c0_i32 = arith.constant 0 : i32
    %c0_i32_0 = arith.constant 0 : i32
    %c0_i32_1 = arith.constant 0 : i32
    return %c0_i32, %c0_i32_0 : i32, i32
  }
  func.func @transform_1(%arg0: i32) -> (i32, i32) {
    %c0_i32 = arith.constant 0 : i32
    %c0_i32_0 = arith.constant 0 : i32
    %c0_i32_1 = arith.constant 0 : i32
    return %c0_i32, %c0_i32_0 : i32, i32
  }
  func.func @transform_2(%arg0: i32) -> (i32, i32) {
    %c0_i32 = arith.constant 0 : i32
    %c0_i32_0 = arith.constant 0 : i32
    %c0_i32_1 = arith.constant 0 : i32
    return %c0_i32, %c0_i32_0 : i32, i32
  }
  func.func @transform_3(%arg0: i32) -> (i32, i32) {
    %c0_i32 = arith.constant 0 : i32
    %c0_i32_0 = arith.constant 0 : i32
    %c0_i32_1 = arith.constant 0 : i32
    return %c0_i32, %c0_i32_0 : i32, i32
  }
  func.func @transform_4(%arg0: i32) -> (i32, i32) {
    %c0_i32 = arith.constant 0 : i32
    %c0_i32_0 = arith.constant 0 : i32
    %c0_i32_1 = arith.constant 0 : i32
    return %c0_i32, %c0_i32_0 : i32, i32
  }
  func.func @transform_5(%arg0: i32) -> (i32, i32) {
    %c0_i32 = arith.constant 0 : i32
    %c0_i32_0 = arith.constant 0 : i32
    %c0_i32_1 = arith.constant 0 : i32
    return %c0_i32, %c0_i32_0 : i32, i32
  }
}

</mosaic_0001>

<llo_original>
// kernel: discriminator_forward.9
$region0: #{discriminator_forward.9}
  #allocation0 [shape = 'u32[]', space=smem, size = 0x4, offset = 0x4, fixed_abs, tag = 'smem constant byte address 0x4 - core index']
  #allocation1 [shape = 'u32[144,128]{1,0:T(1,128)}', space=vmem, size = 0x12000, scoped, tag = 'internal scratch']
  %s0 = inlined_call_operand.vmem [shape: bf16[2048,128], index: 0, kind: input, shape index: {}]
  %s1 = inlined_call_operand.vmem [shape: bf16[128,128], index: 1, kind: input, shape index: {}]
  %s2 = inlined_call_operand.vmem [shape: f32[1,128], index: 2, kind: input, shape index: {}]
  %s3 = inlined_call_operand.vmem [shape: bf16[2048,128], index: 3, kind: output, shape index: {}]
  %s4 = sld [smem:[#allocation0]]
  $region45: #{discriminator_forward.9} parent=0
    _
  %s6 = ssub.s32 1, %s4
  %s7 = scalar_select 0, %s6, %s4
  loop: start=0, step=1, limit=6
  $region2: #{discriminator_forward.9} parent=0 // loop_pre_header
    _
  $region3: #{discriminator_forward.9} parent=0 // loop_header
    %s9 = sphi 0, %s13
    %p10 = scmp.ge.s32.totalorder %s9, 6
    %s19 = sphi 0, %s21
    %s22 = sphi 0, %s19
    %s23 = sphi 0, %s22
    %s39 = sphi 0, %s23
    %s43 = sphi 0, %s43
    %s45 = sphi 0, %s43
    %s46 = sphi 0, %s45
    %s60 = sphi 0, %s46
    %s64 = sphi 0, %s64
    %s66 = sphi 0, %s64
    %s67 = sphi 0, %s66
    %s81 = sphi 0, %s67
    %s87 = sphi 0, %s89
    %s90 = sphi 0, %s87
    %s91 = sphi 0, %s90
    %s107 = sphi 0, %s91
  $region4: #{discriminator_forward.9} parent=0 // loop_header_branch
    %12 = sbr.rel (%p10) target = $region8
  $region5: #{discriminator_forward.9} parent=0 // loop_body
    %s14 = ssub.s32 %s9, 1
    %s15 = ssub.s32 %s9, 2
    %s16 = sadd.s32 %s9, 1
    %s17 = ssub.s32 %s9, %s16
    %p18 = scmp.eq.s32.totalorder %s17, 0
    %s20 = sadd.s32 %s19, 1
    %s21 = scalar_select %p18, %s19, %s20
    %p24 = pneg %p18
    %p25 = scmp.eq.s32.totalorder %s9, 3
    %p26 = por %p24, %p25
    %p27 = scmp.ne.s32.totalorder %s19, %s22
    %p28 = scmp.eq.s32.totalorder %s9, 0
    %p29 = por %p27, %p28
    %p30 = scmp.ne.s32.totalorder %s19, %s22
    %p31 = scmp.eq.s32.totalorder %s14, 3
    %p32 = por %p30, %p31
    %p33 = scmp.ne.s32.totalorder %s22, %s23
    %p34 = scmp.eq.s32.totalorder %s14, 0
    %p35 = por %p33, %p34
    %p36 = scmp.ne.s32.totalorder %s22, %s23
    %p37 = scmp.eq.s32.totalorder %s15, 3
    %p38 = por %p36, %p37
    %p40 = scmp.ne.s32.totalorder %s23, %s39
    %p41 = scmp.eq.s32.totalorder %s15, 0
    %p42 = por %p40, %p41
    %s44 = sadd.s32 %s43, 1
    %p47 = scmp.eq.s32.totalorder %s9, 3
    %p48 = scmp.ne.s32.totalorder %s43, %s45
    %p49 = scmp.eq.s32.totalorder %s9, 0
    %p50 = por %p48, %p49
    %p51 = scmp.ne.s32.totalorder %s43, %s45
    %p52 = scmp.eq.s32.totalorder %s14, 3
    %p53 = por %p51, %p52
    %p54 = scmp.ne.s32.totalorder %s45, %s46
    %p55 = scmp.eq.s32.totalorder %s14, 0
    %p56 = por %p54, %p55
    %p57 = scmp.ne.s32.totalorder %s45, %s46
    %p58 = scmp.eq.s32.totalorder %s15, 3
    %p59 = por %p57, %p58
    %p61 = scmp.ne.s32.totalorder %s46, %s60
    %p62 = scmp.eq.s32.totalorder %s15, 0
    %p63 = por %p61, %p62
    %s65 = sadd.s32 %s64, 1
    %p68 = scmp.eq.s32.totalorder %s9, 3
    %p69 = scmp.ne.s32.totalorder %s64, %s66
    %p70 = scmp.eq.s32.totalorder %s9, 0
    %p71 = por %p69, %p70
    %p72 = scmp.ne.s32.totalorder %s64, %s66
    %p73 = scmp.eq.s32.totalorder %s14, 3
    %p74 = por %p72, %p73
    %p75 = scmp.ne.s32.totalorder %s66, %s67
    %p76 = scmp.eq.s32.totalorder %s14, 0
    %p77 = por %p75, %p76
    %p78 = scmp.ne.s32.totalorder %s66, %s67
    %p79 = scmp.eq.s32.totalorder %s15, 3
    %p80 = por %p78, %p79
    %p82 = scmp.ne.s32.totalorder %s67, %s81
    %p83 = scmp.eq.s32.totalorder %s15, 0
    %p84 = por %p82, %p83
    %s85 = ssub.s32 %s9, %s16
    %p86 = scmp.eq.s32.totalorder %s85, 0
    %s88 = sadd.s32 %s87, 1
    %s89 = scalar_select %p86, %s87, %s88
    %p92 = pneg %p86
    %p93 = scmp.eq.s32.totalorder %s9, 3
    %p94 = por %p92, %p93
    %p95 = scmp.ne.s32.totalorder %s87, %s90
    %p96 = scmp.eq.s32.totalorder %s9, 0
    %p97 = por %p95, %p96
    %p98 = scmp.ne.s32.totalorder %s87, %s90
    %p99 = scmp.eq.s32.totalorder %s14, 3
    %p100 = por %p98, %p99
    %p101 = scmp.ne.s32.totalorder %s90, %s91
    %p102 = scmp.eq.s32.totalorder %s14, 0
    %p103 = por %p101, %p102
    %p104 = scmp.ne.s32.totalorder %s90, %s91
    %p105 = scmp.eq.s32.totalorder %s15, 3
    %p106 = por %p104, %p105
    %p108 = scmp.ne.s32.totalorder %s91, %s107
    %p109 = scmp.eq.s32.totalorder %s15, 0
    %p110 = por %p108, %p109
    %p111 = scmp.le.s32.totalorder 1, %s9
    %p112 = scmp.lt.s32.totalorder %s9, 5
    %p113 = pnand %p111, %p112
    %p114 = pneg %p113
    // Predicated region
    $region9: #{discriminator_forward.9} parent=5 // pred_check
      _
    $region10: #{discriminator_forward.9} parent=5 // pred_check_branch
      %116 = sbr.rel (%p113) target = $region12
    $region11: #{discriminator_forward.9} parent=5 // pred_region
      %s117 = ssub.s32 %s9, 1
      // Predicated region
      $region13: #{discriminator_forward.9} parent=11 // pred_check
        %p118 = pneg %p56
      $region14: #{discriminator_forward.9} parent=11 // pred_check_branch
        %120 = sbr.rel (%p118) target = $region16
      $region15: #{discriminator_forward.9} parent=11 // pred_region
        _
      $region16: #{discriminator_forward.9} parent=11 // pred_fallthru
        _
      // Predicated region
      $region17: #{discriminator_forward.9} parent=11 // pred_check
        %p121 = pneg %p77
      $region18: #{discriminator_forward.9} parent=11 // pred_check_branch
        %123 = sbr.rel (%p121) target = $region20
      $region19: #{discriminator_forward.9} parent=11 // pred_region
        _
      $region20: #{discriminator_forward.9} parent=11 // pred_fallthru
        _
    $region12: #{discriminator_forward.9} parent=5 // pred_fallthru
      _
    %p124 = scmp.lt.s32.totalorder %s9, 4
    // Predicated region
    $region21: #{discriminator_forward.9} parent=5 // pred_check
      %p125 = pneg %p124
    $region22: #{discriminator_forward.9} parent=5 // pred_check_branch
      %127 = sbr.rel (%p125) target = $region24
    $region23: #{discriminator_forward.9} parent=5 // pred_region
      // Predicated region
      $region25: #{discriminator_forward.9} parent=23 // pred_check
        %p128 = pneg %p29
      $region26: #{discriminator_forward.9} parent=23 // pred_check_branch
        %130 = sbr.rel (%p128) target = $region28
      $region27: #{discriminator_forward.9} parent=23 // pred_region
        %s131 = smul.u32 64, %s9
        %p132 = scmp.lt.s32.totalorder %s131, 255
        %s133 = scalar_select %p132, %s131, 255
        %s134 = smul.addr %s133, 4
        %s135 = scalar_lea.vmem %s0, %s134
        %s136 = smul.u32 64, %s9
      $region28: #{discriminator_forward.9} parent=23 // pred_fallthru
        _
    $region24: #{discriminator_forward.9} parent=5 // pred_fallthru
      _
    %p137 = scmp.le.s32.totalorder 1, %s9
    %p138 = scmp.lt.s32.totalorder %s9, 5
    %p139 = pnand %p137, %p138
    %p140 = pneg %p139
    // Predicated region
    $region29: #{discriminator_forward.9} parent=5 // pred_check
      _
    $region30: #{discriminator_forward.9} parent=5 // pred_check_branch
      %142 = sbr.rel (%p139) target = $region32
    $region31: #{discriminator_forward.9} parent=5 // pred_region
      %s143 = ssub.s32 %s9, 1
      %s144 = smul.u32 64, %s14
      %p145 = scmp.lt.s32.totalorder %s144, 255
      %s146 = scalar_select %p145, %s144, 255
      %s147 = smul.addr %s146, 4
      %s148 = scalar_lea.vmem %s0, %s147
      %p149 = pneg %p35
      %p150 = pneg %p32
      %p151 = pneg %p56
      %p152 = pneg %p53
      %p153 = pneg %p77
      %p154 = pneg %p74
      %p155 = pneg %p103
      %p156 = pneg %p100
      %s157 = smul.u32 64, %s14
      %p158 = scmp.lt.s32.totalorder %s157, 255
      %s159 = scalar_select %p158, %s157, 255
      %s160 = smul.addr %s159, 4
      %s161 = scalar_lea.vmem %s3, %s160
      %s162 = smul.u32 64, %s14
      %p163 = scmp.lt.s32.totalorder %s162, 255
      %s164 = scalar_select %p163, %s162, 255
      %s165 = smul.addr %s164, 4
      %s166 = scalar_lea.vmem %s0, %s165
      %s167 = smul.u32 64, %s14
      %s168 = smul.u32 64, %s14
      %p169 = scmp.lt.s32.totalorder %s168, 255
      %s170 = scalar_select %p169, %s168, 255
      %s171 = smul.addr %s170, 4
      %s172 = scalar_lea.vmem %s3, %s171
      %s173 = smul.u32 64, %s14
      %v175 = vld [vmem:[%s166] sm:$0xf]
      %v176 = vld [vmem:[%s166 + $0x4] sm:$0xf]
      %v177 = vld [vmem:[%s166 + $0x8] sm:$0xf]
      %v178 = vld [vmem:[%s166 + $0xc] sm:$0xf]
      %v179 = vld [vmem:[%s166 + $0x10] sm:$0xf]
      %v180 = vld [vmem:[%s166 + $0x14] sm:$0xf]
      %v181 = vld [vmem:[%s166 + $0x18] sm:$0xf]
      %v182 = vld [vmem:[%s166 + $0x1c] sm:$0xf]
      %v183 = vld [vmem:[%s166 + $0x20] sm:$0xf]
      %v184 = vld [vmem:[%s166 + $0x24] sm:$0xf]
      %v185 = vld [vmem:[%s166 + $0x28] sm:$0xf]
      %v186 = vld [vmem:[%s166 + $0x2c] sm:$0xf]
      %v187 = vld [vmem:[%s166 + $0x30] sm:$0xf]
      %v188 = vld [vmem:[%s166 + $0x34] sm:$0xf]
      %v189 = vld [vmem:[%s166 + $0x38] sm:$0xf]
      %v190 = vld [vmem:[%s166 + $0x3c] sm:$0xf]
      %v191 = vld [vmem:[%s166 + $0x40] sm:$0xf]
      %v192 = vld [vmem:[%s166 + $0x44] sm:$0xf]
      %v193 = vld [vmem:[%s166 + $0x48] sm:$0xf]
      %v194 = vld [vmem:[%s166 + $0x4c] sm:$0xf]
      %v195 = vld [vmem:[%s166 + $0x50] sm:$0xf]
      %v196 = vld [vmem:[%s166 + $0x54] sm:$0xf]
      %v197 = vld [vmem:[%s166 + $0x58] sm:$0xf]
      %v198 = vld [vmem:[%s166 + $0x5c] sm:$0xf]
      %v199 = vld [vmem:[%s166 + $0x60] sm:$0xf]
      %v200 = vld [vmem:[%s166 + $0x64] sm:$0xf]
      %v201 = vld [vmem:[%s166 + $0x68] sm:$0xf]
      %v202 = vld [vmem:[%s166 + $0x6c] sm:$0xf]
      %v203 = vld [vmem:[%s166 + $0x70] sm:$0xf]
      %v204 = vld [vmem:[%s166 + $0x74] sm:$0xf]
      %v205 = vld [vmem:[%s166 + $0x78] sm:$0xf]
      %v206 = vld [vmem:[%s166 + $0x7c] sm:$0xf]
      %v207 = vld [vmem:[%s166 + $0x80] sm:$0xf]
      %v208 = vld [vmem:[%s166 + $0x84] sm:$0xf]
      %v209 = vld [vmem:[%s166 + $0x88] sm:$0xf]
      %v210 = vld [vmem:[%s166 + $0x8c] sm:$0xf]
      %v211 = vld [vmem:[%s166 + $0x90] sm:$0xf]
      %v212 = vld [vmem:[%s166 + $0x94] sm:$0xf]
      %v213 = vld [vmem:[%s166 + $0x98] sm:$0xf]
      %v214 = vld [vmem:[%s166 + $0x9c] sm:$0xf]
      %v215 = vld [vmem:[%s166 + $0xa0] sm:$0xf]
      %v216 = vld [vmem:[%s166 + $0xa4] sm:$0xf]
      %v217 = vld [vmem:[%s166 + $0xa8] sm:$0xf]
      %v218 = vld [vmem:[%s166 + $0xac] sm:$0xf]
      %v219 = vld [vmem:[%s166 + $0xb0] sm:$0xf]
      %v220 = vld [vmem:[%s166 + $0xb4] sm:$0xf]
      %v221 = vld [vmem:[%s166 + $0xb8] sm:$0xf]
      %v222 = vld [vmem:[%s166 + $0xbc] sm:$0xf]
      %v223 = vld [vmem:[%s166 + $0xc0] sm:$0xf]
      %v224 = vld [vmem:[%s166 + $0xc4] sm:$0xf]
      %v225 = vld [vmem:[%s166 + $0xc8] sm:$0xf]
      %v226 = vld [vmem:[%s166 + $0xcc] sm:$0xf]
      %v227 = vld [vmem:[%s166 + $0xd0] sm:$0xf]
      %v228 = vld [vmem:[%s166 + $0xd4] sm:$0xf]
      %v229 = vld [vmem:[%s166 + $0xd8] sm:$0xf]
      %v230 = vld [vmem:[%s166 + $0xdc] sm:$0xf]
      %v231 = vld [vmem:[%s166 + $0xe0] sm:$0xf]
      %v232 = vld [vmem:[%s166 + $0xe4] sm:$0xf]
      %v233 = vld [vmem:[%s166 + $0xe8] sm:$0xf]
      %v234 = vld [vmem:[%s166 + $0xec] sm:$0xf]
      %v235 = vld [vmem:[%s166 + $0xf0] sm:$0xf]
      %v236 = vld [vmem:[%s166 + $0xf4] sm:$0xf]
      %v237 = vld [vmem:[%s166 + $0xf8] sm:$0xf]
      %v238 = vld [vmem:[%s166 + $0xfc] sm:$0xf]
      %v239 = vld [vmem:[%s1] sm:$0xf]
      %v240 = vld [vmem:[%s1 + $0x4] sm:$0xf]
      %v241 = vld [vmem:[%s1 + $0x8] sm:$0xf]
      %v242 = vld [vmem:[%s1 + $0xc] sm:$0xf]
      %v243 = vld [vmem:[%s1 + $0x10] sm:$0xf]
      %v244 = vld [vmem:[%s1 + $0x14] sm:$0xf]
      %v245 = vld [vmem:[%s1 + $0x18] sm:$0xf]
      %v246 = vld [vmem:[%s1 + $0x1c] sm:$0xf]
      %v247 = vld [vmem:[%s1 + $0x20] sm:$0xf]
      %v248 = vld [vmem:[%s1 + $0x24] sm:$0xf]
      %v249 = vld [vmem:[%s1 + $0x28] sm:$0xf]
      %v250 = vld [vmem:[%s1 + $0x2c] sm:$0xf]
      %v251 = vld [vmem:[%s1 + $0x30] sm:$0xf]
      %v252 = vld [vmem:[%s1 + $0x34] sm:$0xf]
      %v253 = vld [vmem:[%s1 + $0x38] sm:$0xf]
      %v254 = vld [vmem:[%s1 + $0x3c] sm:$0xf]
      %v255 = vld [vmem:[%s2] sm:$0x1]
      %v257 = vlaneseq
      %v258 = vshrl.u32 %v257, 7
      %v259 = vsub.s32 0, %v258
      %v260 = vrot.slane %v255, %v259
      %v326 = vunpack.c.l.b16 %v175
      %v327 = vunpack.c.l.b16 %v176
      %v328 = vunpack.c.l.b16 %v177
      %v329 = vunpack.c.l.b16 %v178
      %v330 = vunpack.c.l.b16 %v179
      %v331 = vunpack.c.l.b16 %v180
      %v332 = vunpack.c.l.b16 %v181
      %v333 = vunpack.c.l.b16 %v182
      %v334 = vunpack.c.l.b16 %v183
      %v335 = vunpack.c.l.b16 %v184
      %v336 = vunpack.c.l.b16 %v185
      %v337 = vunpack.c.l.b16 %v186
      %v338 = vunpack.c.l.b16 %v187
      %v339 = vunpack.c.l.b16 %v188
      %v340 = vunpack.c.l.b16 %v189
      %v341 = vunpack.c.l.b16 %v190
      %v342 = vunpack.c.l.b16 %v191
      %v343 = vunpack.c.l.b16 %v192
      %v344 = vunpack.c.l.b16 %v193
      %v345 = vunpack.c.l.b16 %v194
      %v346 = vunpack.c.l.b16 %v195
      %v347 = vunpack.c.l.b16 %v196
      %v348 = vunpack.c.l.b16 %v197
      %v349 = vunpack.c.l.b16 %v198
      %v350 = vunpack.c.l.b16 %v199
      %v351 = vunpack.c.l.b16 %v200
      %v352 = vunpack.c.l.b16 %v201
      %v353 = vunpack.c.l.b16 %v202
      %v354 = vunpack.c.l.b16 %v203
      %v355 = vunpack.c.l.b16 %v204
      %v356 = vunpack.c.l.b16 %v205
      %v357 = vunpack.c.l.b16 %v206
      %v358 = vunpack.c.l.b16 %v207
      %v359 = vunpack.c.l.b16 %v208
      %v360 = vunpack.c.l.b16 %v209
      %v361 = vunpack.c.l.b16 %v210
      %v362 = vunpack.c.l.b16 %v211
      %v363 = vunpack.c.l.b16 %v212
      %v364 = vunpack.c.l.b16 %v213
      %v365 = vunpack.c.l.b16 %v214
      %v366 = vunpack.c.l.b16 %v215
      %v367 = vunpack.c.l.b16 %v216
      %v368 = vunpack.c.l.b16 %v217
      %v369 = vunpack.c.l.b16 %v218
      %v370 = vunpack.c.l.b16 %v219
      %v371 = vunpack.c.l.b16 %v220
      %v372 = vunpack.c.l.b16 %v221
      %v373 = vunpack.c.l.b16 %v222
      %v374 = vunpack.c.l.b16 %v223
      %v375 = vunpack.c.l.b16 %v224
      %v376 = vunpack.c.l.b16 %v225
      %v377 = vunpack.c.l.b16 %v226
      %v378 = vunpack.c.l.b16 %v227
      %v379 = vunpack.c.l.b16 %v228
      %v380 = vunpack.c.l.b16 %v229
      %v381 = vunpack.c.l.b16 %v230
      %v382 = vunpack.c.l.b16 %v231
      %v383 = vunpack.c.l.b16 %v232
      %v384 = vunpack.c.l.b16 %v233
      %v385 = vunpack.c.l.b16 %v234
      %v386 = vunpack.c.l.b16 %v235
      %v387 = vunpack.c.l.b16 %v236
      %v388 = vunpack.c.l.b16 %v237
      %v389 = vunpack.c.l.b16 %v238
      %v390 = vpack.c.b16 %v327, %v326
      %v391 = vpack.c.b16 %v329, %v328
      %v392 = vpack.c.b16 %v331, %v330
      %v393 = vpack.c.b16 %v333, %v332
      %v394 = vpack.c.b16 %v335, %v334
      %v395 = vpack.c.b16 %v337, %v336
      %v396 = vpack.c.b16 %v339, %v338
      %v397 = vpack.c.b16 %v341, %v340
      %v398 = vpack.c.b16 %v343, %v342
      %v399 = vpack.c.b16 %v345, %v344
      %v400 = vpack.c.b16 %v347, %v346
      %v401 = vpack.c.b16 %v349, %v348
      %v402 = vpack.c.b16 %v351, %v350
      %v403 = vpack.c.b16 %v353, %v352
      %v404 = vpack.c.b16 %v355, %v354
      %v405 = vpack.c.b16 %v357, %v356
      %v406 = vpack.c.b16 %v359, %v358
      %v407 = vpack.c.b16 %v361, %v360
      %v408 = vpack.c.b16 %v363, %v362
      %v409 = vpack.c.b16 %v365, %v364
      %v410 = vpack.c.b16 %v367, %v366
      %v411 = vpack.c.b16 %v369, %v368
      %v412 = vpack.c.b16 %v371, %v370
      %v413 = vpack.c.b16 %v373, %v372
      %v414 = vpack.c.b16 %v375, %v374
      %v415 = vpack.c.b16 %v377, %v376
      %v416 = vpack.c.b16 %v379, %v378
      %v417 = vpack.c.b16 %v381, %v380
      %v418 = vpack.c.b16 %v383, %v382
      %v419 = vpack.c.b16 %v385, %v384
      %v420 = vpack.c.b16 %v387, %v386
      %v421 = vpack.c.b16 %v389, %v388
      %v470 = vunpack.c.l.b16 %v239
      %v471 = vunpack.c.l.b16 %v240
      %v472 = vunpack.c.l.b16 %v241
      %v473 = vunpack.c.l.b16 %v242
      %v474 = vunpack.c.l.b16 %v243
      %v475 = vunpack.c.l.b16 %v244
      %v476 = vunpack.c.l.b16 %v245
      %v477 = vunpack.c.l.b16 %v246
      %v478 = vunpack.c.l.b16 %v247
      %v479 = vunpack.c.l.b16 %v248
      %v480 = vunpack.c.l.b16 %v249
      %v481 = vunpack.c.l.b16 %v250
      %v482 = vunpack.c.l.b16 %v251
      %v483 = vunpack.c.l.b16 %v252
      %v484 = vunpack.c.l.b16 %v253
      %v485 = vunpack.c.l.b16 %v254
      %v486 = vpack.c.b16 %v471, %v470
      %v487 = vpack.c.b16 %v473, %v472
      %v488 = vpack.c.b16 %v475, %v474
      %v489 = vpack.c.b16 %v477, %v476
      %v490 = vpack.c.b16 %v479, %v478
      %v491 = vpack.c.b16 %v481, %v480
      %v492 = vpack.c.b16 %v483, %v482
      %v493 = vpack.c.b16 %v485, %v484
      %502 = vmatprep.subr.bf16.mxu0 0
      %503 = vmatpush1.bf16.msra.mxu0 %v486
      %504 = vmatprep.subr.bf16.mxu0 0
      %505 = vmatpush1.bf16.msra.mxu0 %v487
      %506 = vmatprep.subr.bf16.mxu0 0
      %507 = vmatpush1.bf16.msra.mxu0 %v488
      %508 = vmatprep.subr.bf16.mxu0 0
      %509 = vmatpush1.bf16.msra.mxu0 %v489
      %510 = vmatprep.subr.bf16.mxu0 0
      %511 = vmatpush1.bf16.msra.mxu0 %v490
      %512 = vmatprep.subr.bf16.mxu0 0
      %513 = vmatpush1.bf16.msra.mxu0 %v491
      %514 = vmatprep.subr.bf16.mxu0 0
      %515 = vmatpush1.bf16.msra.mxu0 %v492
      %516 = vmatprep.subr.bf16.mxu0 0
      %517 = vmatpush1.bf16.msra.mxu0 %v493
      %518 = vmatprep.subr.bf16.mxu0 0
      %519 = vmatpush1.bf16.msra.mxu0 0
      %520 = vmatprep.subr.bf16.mxu0 0
      %521 = vmatpush1.bf16.msra.mxu0 0
      %522 = vmatprep.subr.bf16.mxu0 0
      %523 = vmatpush1.bf16.msra.mxu0 0
      %524 = vmatprep.subr.bf16.mxu0 0
      %525 = vmatpush1.bf16.msra.mxu0 0
      %526 = vmatprep.subr.bf16.mxu0 0
      %527 = vmatpush1.bf16.msra.mxu0 0
      %528 = vmatprep.subr.bf16.mxu0 0
      %529 = vmatpush1.bf16.msra.mxu0 0
      %530 = vmatprep.subr.bf16.mxu0 0
      %531 = vmatpush1.bf16.msra.mxu0 0
      %532 = vmatprep.subr.bf16.mxu0 0
      %533 = vmatpush1.bf16.msra.mxu0 0
      %534 = vmatprep.mubr.bf16.mxu0 0
      %535 = vmatmul.mubr.bf16.gmra.mrb[0].mxu0 %v390
      %v536 = vpop.f32.mrb[0].mxu0
      %v537 = vadd.f32 %v260, %v536
      %v538 = vpop.f32.mrb[0].mxu0
      %v539 = vpop.f32.mrb[0].mxu0
      %v540 = vadd.f32 %v260, %v539
      %v541 = vpop.f32.mrb[0].mxu0
      %542 = vmatprep.mubr.bf16.mxu0 0
      %543 = vmatmul.mubr.bf16.gmra.mrb[0].mxu0 %v391
      %v544 = vpop.f32.mrb[0].mxu0
      %v545 = vadd.f32 %v260, %v544
      %v546 = vpop.f32.mrb[0].mxu0
      %v547 = vpop.f32.mrb[0].mxu0
      %v548 = vadd.f32 %v260, %v547
      %v549 = vpop.f32.mrb[0].mxu0
      %550 = vmatprep.mubr.bf16.mxu0 0
      %551 = vmatmul.mubr.bf16.gmra.mrb[0].mxu0 %v392
      %v552 = vpop.f32.mrb[0].mxu0
      %v553 = vadd.f32 %v260, %v552
      %v554 = vpop.f32.mrb[0].mxu0
      %v555 = vpop.f32.mrb[0].mxu0
      %v556 = vadd.f32 %v260, %v555
      %v557 = vpop.f32.mrb[0].mxu0
      %558 = vmatprep.mubr.bf16.mxu0 0
      %559 = vmatmul.mubr.bf16.gmra.mrb[0].mxu0 %v393
      %v560 = vpop.f32.mrb[0].mxu0
      %v561 = vadd.f32 %v260, %v560
      %v562 = vpop.f32.mrb[0].mxu0
      %v563 = vpop.f32.mrb[0].mxu0
      %v564 = vadd.f32 %v260, %v563
      %v565 = vpop.f32.mrb[0].mxu0
      %566 = vmatprep.mubr.bf16.mxu0 0
      %567 = vmatmul.mubr.bf16.gmra.mrb[0].mxu0 %v394
      %v568 = vpop.f32.mrb[0].mxu0
      %v569 = vadd.f32 %v260, %v568
      %v570 = vpop.f32.mrb[0].mxu0
      %v571 = vpop.f32.mrb[0].mxu0
      %v572 = vadd.f32 %v260, %v571
      %v573 = vpop.f32.mrb[0].mxu0
      %574 = vmatprep.mubr.bf16.mxu0 0
      %575 = vmatmul.mubr.bf16.gmra.mrb[0].mxu0 %v395
      %v576 = vpop.f32.mrb[0].mxu0
      %v577 = vadd.f32 %v260, %v576
      %v578 = vpop.f32.mrb[0].mxu0
      %v579 = vpop.f32.mrb[0].mxu0
      %v580 = vadd.f32 %v260, %v579
      %v581 = vpop.f32.mrb[0].mxu0
      %582 = vmatprep.mubr.bf16.mxu0 0
      %583 = vmatmul.mubr.bf16.gmra.mrb[0].mxu0 %v396
      %v584 = vpop.f32.mrb[0].mxu0
      %v585 = vadd.f32 %v260, %v584
      %v586 = vpop.f32.mrb[0].mxu0
      %v587 = vpop.f32.mrb[0].mxu0
      %v588 = vadd.f32 %v260, %v587
      %v589 = vpop.f32.mrb[0].mxu0
      %590 = vmatprep.mubr.bf16.mxu0 0
      %591 = vmatmul.mubr.bf16.gmra.mrb[0].mxu0 %v397
      %v592 = vpop.f32.mrb[0].mxu0
      %v593 = vadd.f32 %v260, %v592
      %v594 = vpop.f32.mrb[0].mxu0
      %v595 = vpop.f32.mrb[0].mxu0
      %v596 = vadd.f32 %v260, %v595
      %v597 = vpop.f32.mrb[0].mxu0
      %598 = vmatprep.mubr.bf16.mxu0 0
      %599 = vmatmul.mubr.bf16.gmra.mrb[0].mxu0 %v398
      %v600 = vpop.f32.mrb[0].mxu0
      %v601 = vadd.f32 %v260, %v600
      %v602 = vpop.f32.mrb[0].mxu0
      %v603 = vpop.f32.mrb[0].mxu0
      %v604 = vadd.f32 %v260, %v603
      %v605 = vpop.f32.mrb[0].mxu0
      %606 = vmatprep.mubr.bf16.mxu0 0
      %607 = vmatmul.mubr.bf16.gmra.mrb[0].mxu0 %v399
      %v608 = vpop.f32.mrb[0].mxu0
      %v609 = vadd.f32 %v260, %v608
      %v610 = vpop.f32.mrb[0].mxu0
      %v611 = vpop.f32.mrb[0].mxu0
      %v612 = vadd.f32 %v260, %v611
      %v613 = vpop.f32.mrb[0].mxu0
      %614 = vmatprep.mubr.bf16.mxu0 0
      %615 = vmatmul.mubr.bf16.gmra.mrb[0].mxu0 %v400
      %v616 = vpop.f32.mrb[0].mxu0
      %v617 = vadd.f32 %v260, %v616
      %v618 = vpop.f32.mrb[0].mxu0
      %v619 = vpop.f32.mrb[0].mxu0
      %v620 = vadd.f32 %v260, %v619
      %v621 = vpop.f32.mrb[0].mxu0
      %622 = vmatprep.mubr.bf16.mxu0 0
      %623 = vmatmul.mubr.bf16.gmra.mrb[0].mxu0 %v401
      %v624 = vpop.f32.mrb[0].mxu0
      %v625 = vadd.f32 %v260, %v624
      %v626 = vpop.f32.mrb[0].mxu0
      %v627 = vpop.f32.mrb[0].mxu0
      %v628 = vadd.f32 %v260, %v627
      %v629 = vpop.f32.mrb[0].mxu0
      %630 = vmatprep.mubr.bf16.mxu0 0
      %631 = vmatmul.mubr.bf16.gmra.mrb[0].mxu0 %v402
      %v632 = vpop.f32.mrb[0].mxu0
      %v633 = vadd.f32 %v260, %v632
      %v634 = vpop.f32.mrb[0].mxu0
      %v635 = vpop.f32.mrb[0].mxu0
      %v636 = vadd.f32 %v260, %v635
      %v637 = vpop.f32.mrb[0].mxu0
      %638 = vmatprep.mubr.bf16.mxu0 0
      %639 = vmatmul.mubr.bf16.gmra.mrb[0].mxu0 %v403
      %v640 = vpop.f32.mrb[0].mxu0
      %v641 = vadd.f32 %v260, %v640
      %v642 = vpop.f32.mrb[0].mxu0
      %v643 = vpop.f32.mrb[0].mxu0
      %v644 = vadd.f32 %v260, %v643
      %v645 = vpop.f32.mrb[0].mxu0
      %646 = vmatprep.mubr.bf16.mxu0 0
      %647 = vmatmul.mubr.bf16.gmra.mrb[0].mxu0 %v404
      %v648 = vpop.f32.mrb[0].mxu0
      %v649 = vadd.f32 %v260, %v648
      %v650 = vpop.f32.mrb[0].mxu0
      %v651 = vpop.f32.mrb[0].mxu0
      %v652 = vadd.f32 %v260, %v651
      %v653 = vpop.f32.mrb[0].mxu0
      %654 = vmatprep.mubr.bf16.mxu0 0
      %655 = vmatmul.mubr.bf16.gmra.mrb[0].mxu0 %v405
      %v656 = vpop.f32.mrb[0].mxu0
      %v657 = vadd.f32 %v260, %v656
      %v658 = vpop.f32.mrb[0].mxu0
      %v659 = vpop.f32.mrb[0].mxu0
      %v660 = vadd.f32 %v260, %v659
      %v661 = vpop.f32.mrb[0].mxu0
      %662 = vmatprep.mubr.bf16.mxu0 0
      %663 = vmatmul.mubr.bf16.gmra.mrb[0].mxu0 %v406
      %v664 = vpop.f32.mrb[0].mxu0
      %v665 = vadd.f32 %v260, %v664
      %v666 = vpop.f32.mrb[0].mxu0
      %v667 = vpop.f32.mrb[0].mxu0
      %v668 = vadd.f32 %v260, %v667
      %v669 = vpop.f32.mrb[0].mxu0
      %670 = vmatprep.mubr.bf16.mxu0 0
      %671 = vmatmul.mubr.bf16.gmra.mrb[0].mxu0 %v407
      %v672 = vpop.f32.mrb[0].mxu0
      %v673 = vadd.f32 %v260, %v672
      %v674 = vpop.f32.mrb[0].mxu0
      %v675 = vpop.f32.mrb[0].mxu0
      %v676 = vadd.f32 %v260, %v675
      %v677 = vpop.f32.mrb[0].mxu0
      %678 = vmatprep.mubr.bf16.mxu0 0
      %679 = vmatmul.mubr.bf16.gmra.mrb[0].mxu0 %v408
      %v680 = vpop.f32.mrb[0].mxu0
      %v681 = vadd.f32 %v260, %v680
      %v682 = vpop.f32.mrb[0].mxu0
      %v683 = vpop.f32.mrb[0].mxu0
      %v684 = vadd.f32 %v260, %v683
      %v685 = vpop.f32.mrb[0].mxu0
      %686 = vmatprep.mubr.bf16.mxu0 0
      %687 = vmatmul.mubr.bf16.gmra.mrb[0].mxu0 %v409
      %v688 = vpop.f32.mrb[0].mxu0
      %v689 = vadd.f32 %v260, %v688
      %v690 = vpop.f32.mrb[0].mxu0
      %v691 = vpop.f32.mrb[0].mxu0
      %v692 = vadd.f32 %v260, %v691
      %v693 = vpop.f32.mrb[0].mxu0
      %694 = vmatprep.mubr.bf16.mxu0 0
      %695 = vmatmul.mubr.bf16.gmra.mrb[0].mxu0 %v410
      %v696 = vpop.f32.mrb[0].mxu0
      %v697 = vadd.f32 %v260, %v696
      %v698 = vpop.f32.mrb[0].mxu0
      %v699 = vpop.f32.mrb[0].mxu0
      %v700 = vadd.f32 %v260, %v699
      %v701 = vpop.f32.mrb[0].mxu0
      %702 = vmatprep.mubr.bf16.mxu0 0
      %703 = vmatmul.mubr.bf16.gmra.mrb[0].mxu0 %v411
      %v704 = vpop.f32.mrb[0].mxu0
      %v705 = vadd.f32 %v260, %v704
      %v706 = vpop.f32.mrb[0].mxu0
      %v707 = vpop.f32.mrb[0].mxu0
      %v708 = vadd.f32 %v260, %v707
      %v709 = vpop.f32.mrb[0].mxu0
      %710 = vmatprep.mubr.bf16.mxu0 0
      %711 = vmatmul.mubr.bf16.gmra.mrb[0].mxu0 %v412
      %v712 = vpop.f32.mrb[0].mxu0
      %v713 = vadd.f32 %v260, %v712
      %v714 = vpop.f32.mrb[0].mxu0
      %v715 = vpop.f32.mrb[0].mxu0
      %v716 = vadd.f32 %v260, %v715
      %v717 = vpop.f32.mrb[0].mxu0
      %718 = vmatprep.mubr.bf16.mxu0 0
      %719 = vmatmul.mubr.bf16.gmra.mrb[0].mxu0 %v413
      %v720 = vpop.f32.mrb[0].mxu0
      %v721 = vadd.f32 %v260, %v720
      %v722 = vpop.f32.mrb[0].mxu0
      %v723 = vpop.f32.mrb[0].mxu0
      %v724 = vadd.f32 %v260, %v723
      %v725 = vpop.f32.mrb[0].mxu0
      %726 = vmatprep.mubr.bf16.mxu0 0
      %727 = vmatmul.mubr.bf16.gmra.mrb[0].mxu0 %v414
      %v728 = vpop.f32.mrb[0].mxu0
      %v729 = vadd.f32 %v260, %v728
      %v730 = vpop.f32.mrb[0].mxu0
      %v731 = vpop.f32.mrb[0].mxu0
      %v732 = vadd.f32 %v260, %v731
      %v733 = vpop.f32.mrb[0].mxu0
      %734 = vmatprep.mubr.bf16.mxu0 0
      %735 = vmatmul.mubr.bf16.gmra.mrb[0].mxu0 %v415
      %v736 = vpop.f32.mrb[0].mxu0
      %v737 = vadd.f32 %v260, %v736
      %v738 = vpop.f32.mrb[0].mxu0
      %v739 = vpop.f32.mrb[0].mxu0
      %v740 = vadd.f32 %v260, %v739
      %v741 = vpop.f32.mrb[0].mxu0
      %742 = vmatprep.mubr.bf16.mxu0 0
      %743 = vmatmul.mubr.bf16.gmra.mrb[0].mxu0 %v416
      %v744 = vpop.f32.mrb[0].mxu0
      %v745 = vadd.f32 %v260, %v744
      %v746 = vpop.f32.mrb[0].mxu0
      %v747 = vpop.f32.mrb[0].mxu0
      %v748 = vadd.f32 %v260, %v747
      %v749 = vpop.f32.mrb[0].mxu0
      %750 = vmatprep.mubr.bf16.mxu0 0
      %751 = vmatmul.mubr.bf16.gmra.mrb[0].mxu0 %v417
      %v752 = vpop.f32.mrb[0].mxu0
      %v753 = vadd.f32 %v260, %v752
      %v754 = vpop.f32.mrb[0].mxu0
      %v755 = vpop.f32.mrb[0].mxu0
      %v756 = vadd.f32 %v260, %v755
      %v757 = vpop.f32.mrb[0].mxu0
      %758 = vmatprep.mubr.bf16.mxu0 0
      %759 = vmatmul.mubr.bf16.gmra.mrb[0].mxu0 %v418
      %v760 = vpop.f32.mrb[0].mxu0
      %v761 = vadd.f32 %v260, %v760
      %v762 = vpop.f32.mrb[0].mxu0
      %v763 = vpop.f32.mrb[0].mxu0
      %v764 = vadd.f32 %v260, %v763
      %v765 = vpop.f32.mrb[0].mxu0
      %766 = vmatprep.mubr.bf16.mxu0 0
      %767 = vmatmul.mubr.bf16.gmra.mrb[0].mxu0 %v419
      %v768 = vpop.f32.mrb[0].mxu0
      %v769 = vadd.f32 %v260, %v768
      %v770 = vpop.f32.mrb[0].mxu0
      %v771 = vpop.f32.mrb[0].mxu0
      %v772 = vadd.f32 %v260, %v771
      %v773 = vpop.f32.mrb[0].mxu0
      %774 = vmatprep.mubr.bf16.mxu0 0
      %775 = vmatmul.mubr.bf16.gmra.mrb[0].mxu0 %v420
      %v776 = vpop.f32.mrb[0].mxu0
      %v777 = vadd.f32 %v260, %v776
      %v778 = vpop.f32.mrb[0].mxu0
      %v779 = vpop.f32.mrb[0].mxu0
      %v780 = vadd.f32 %v260, %v779
      %v781 = vpop.f32.mrb[0].mxu0
      %782 = vmatprep.mubr.bf16.mxu0 0
      %783 = vmatmul.mubr.bf16.gmra.mrb[0].mxu0 %v421
      %v784 = vpop.f32.mrb[0].mxu0
      %v785 = vadd.f32 %v260, %v784
      %v786 = vpop.f32.mrb[0].mxu0
      %v787 = vpop.f32.mrb[0].mxu0
      %v788 = vadd.f32 %v260, %v787
      %v789 = vpop.f32.mrb[0].mxu0
      %790 = vdwg.mxu0
      %vm791 = vcmp.ge.f32.partialorder %v537, 0.0
      %vm792 = vcmp.ge.f32.partialorder %v540, 0.0
      %vm793 = vcmp.ge.f32.partialorder %v545, 0.0
      %vm794 = vcmp.ge.f32.partialorder %v548, 0.0
      %vm795 = vcmp.ge.f32.partialorder %v553, 0.0
      %vm796 = vcmp.ge.f32.partialorder %v556, 0.0
      %vm797 = vcmp.ge.f32.partialorder %v561, 0.0
      %vm798 = vcmp.ge.f32.partialorder %v564, 0.0
      %vm799 = vcmp.ge.f32.partialorder %v569, 0.0
      %vm800 = vcmp.ge.f32.partialorder %v572, 0.0
      %vm801 = vcmp.ge.f32.partialorder %v577, 0.0
      %vm802 = vcmp.ge.f32.partialorder %v580, 0.0
      %vm803 = vcmp.ge.f32.partialorder %v585, 0.0
      %vm804 = vcmp.ge.f32.partialorder %v588, 0.0
      %vm805 = vcmp.ge.f32.partialorder %v593, 0.0
      %vm806 = vcmp.ge.f32.partialorder %v596, 0.0
      %vm807 = vcmp.ge.f32.partialorder %v601, 0.0
      %vm808 = vcmp.ge.f32.partialorder %v604, 0.0
      %vm809 = vcmp.ge.f32.partialorder %v609, 0.0
      %vm810 = vcmp.ge.f32.partialorder %v612, 0.0
      %vm811 = vcmp.ge.f32.partialorder %v617, 0.0
      %vm812 = vcmp.ge.f32.partialorder %v620, 0.0
      %vm813 = vcmp.ge.f32.partialorder %v625, 0.0
      %vm814 = vcmp.ge.f32.partialorder %v628, 0.0
      %vm815 = vcmp.ge.f32.partialorder %v633, 0.0
      %vm816 = vcmp.ge.f32.partialorder %v636, 0.0
      %vm817 = vcmp.ge.f32.partialorder %v641, 0.0
      %vm818 = vcmp.ge.f32.partialorder %v644, 0.0
      %vm819 = vcmp.ge.f32.partialorder %v649, 0.0
      %vm820 = vcmp.ge.f32.partialorder %v652, 0.0
      %vm821 = vcmp.ge.f32.partialorder %v657, 0.0
      %vm822 = vcmp.ge.f32.partialorder %v660, 0.0
      %vm823 = vcmp.ge.f32.partialorder %v665, 0.0
      %vm824 = vcmp.ge.f32.partialorder %v668, 0.0
      %vm825 = vcmp.ge.f32.partialorder %v673, 0.0
      %vm826 = vcmp.ge.f32.partialorder %v676, 0.0
      %vm827 = vcmp.ge.f32.partialorder %v681, 0.0
      %vm828 = vcmp.ge.f32.partialorder %v684, 0.0
      %vm829 = vcmp.ge.f32.partialorder %v689, 0.0
      %vm830 = vcmp.ge.f32.partialorder %v692, 0.0
      %vm831 = vcmp.ge.f32.partialorder %v697, 0.0
      %vm832 = vcmp.ge.f32.partialorder %v700, 0.0
      %vm833 = vcmp.ge.f32.partialorder %v705, 0.0
      %vm834 = vcmp.ge.f32.partialorder %v708, 0.0
      %vm835 = vcmp.ge.f32.partialorder %v713, 0.0
      %vm836 = vcmp.ge.f32.partialorder %v716, 0.0
      %vm837 = vcmp.ge.f32.partialorder %v721, 0.0
      %vm838 = vcmp.ge.f32.partialorder %v724, 0.0
      %vm839 = vcmp.ge.f32.partialorder %v729, 0.0
      %vm840 = vcmp.ge.f32.partialorder %v732, 0.0
      %vm841 = vcmp.ge.f32.partialorder %v737, 0.0
      %vm842 = vcmp.ge.f32.partialorder %v740, 0.0
      %vm843 = vcmp.ge.f32.partialorder %v745, 0.0
      %vm844 = vcmp.ge.f32.partialorder %v748, 0.0
      %vm845 = vcmp.ge.f32.partialorder %v753, 0.0
      %vm846 = vcmp.ge.f32.partialorder %v756, 0.0
      %vm847 = vcmp.ge.f32.partialorder %v761, 0.0
      %vm848 = vcmp.ge.f32.partialorder %v764, 0.0
      %vm849 = vcmp.ge.f32.partialorder %v769, 0.0
      %vm850 = vcmp.ge.f32.partialorder %v772, 0.0
      %vm851 = vcmp.ge.f32.partialorder %v777, 0.0
      %vm852 = vcmp.ge.f32.partialorder %v780, 0.0
      %vm853 = vcmp.ge.f32.partialorder %v785, 0.0
      %vm854 = vcmp.ge.f32.partialorder %v788, 0.0
      %v855 = vmul.f32 %v537, 0.01
      %v856 = vmul.f32 %v540, 0.01
      %v857 = vmul.f32 %v545, 0.01
      %v858 = vmul.f32 %v548, 0.01
      %v859 = vmul.f32 %v553, 0.01
      %v860 = vmul.f32 %v556, 0.01
      %v861 = vmul.f32 %v561, 0.01
      %v862 = vmul.f32 %v564, 0.01
      %v863 = vmul.f32 %v569, 0.01
      %v864 = vmul.f32 %v572, 0.01
      %v865 = vmul.f32 %v577, 0.01
      %v866 = vmul.f32 %v580, 0.01
      %v867 = vmul.f32 %v585, 0.01
      %v868 = vmul.f32 %v588, 0.01
      %v869 = vmul.f32 %v593, 0.01
      %v870 = vmul.f32 %v596, 0.01
      %v871 = vmul.f32 %v601, 0.01
      %v872 = vmul.f32 %v604, 0.01
      %v873 = vmul.f32 %v609, 0.01
      %v874 = vmul.f32 %v612, 0.01
      %v875 = vmul.f32 %v617, 0.01
      %v876 = vmul.f32 %v620, 0.01
      %v877 = vmul.f32 %v625, 0.01
      %v878 = vmul.f32 %v628, 0.01
      %v879 = vmul.f32 %v633, 0.01
      %v880 = vmul.f32 %v636, 0.01
      %v881 = vmul.f32 %v641, 0.01
      %v882 = vmul.f32 %v644, 0.01
      %v883 = vmul.f32 %v649, 0.01
      %v884 = vmul.f32 %v652, 0.01
      %v885 = vmul.f32 %v657, 0.01
      %v886 = vmul.f32 %v660, 0.01
      %v887 = vmul.f32 %v665, 0.01
      %v888 = vmul.f32 %v668, 0.01
      %v889 = vmul.f32 %v673, 0.01
      %v890 = vmul.f32 %v676, 0.01
      %v891 = vmul.f32 %v681, 0.01
      %v892 = vmul.f32 %v684, 0.01
      %v893 = vmul.f32 %v689, 0.01
      %v894 = vmul.f32 %v692, 0.01
      %v895 = vmul.f32 %v697, 0.01
      %v896 = vmul.f32 %v700, 0.01
      %v897 = vmul.f32 %v705, 0.01
      %v898 = vmul.f32 %v708, 0.01
      %v899 = vmul.f32 %v713, 0.01
      %v900 = vmul.f32 %v716, 0.01
      %v901 = vmul.f32 %v721, 0.01
      %v902 = vmul.f32 %v724, 0.01
      %v903 = vmul.f32 %v729, 0.01
      %v904 = vmul.f32 %v732, 0.01
      %v905 = vmul.f32 %v737, 0.01
      %v906 = vmul.f32 %v740, 0.01
      %v907 = vmul.f32 %v745, 0.01
      %v908 = vmul.f32 %v748, 0.01
      %v909 = vmul.f32 %v753, 0.01
      %v910 = vmul.f32 %v756, 0.01
      %v911 = vmul.f32 %v761, 0.01
      %v912 = vmul.f32 %v764, 0.01
      %v913 = vmul.f32 %v769, 0.01
      %v914 = vmul.f32 %v772, 0.01
      %v915 = vmul.f32 %v777, 0.01
      %v916 = vmul.f32 %v780, 0.01
      %v917 = vmul.f32 %v785, 0.01
      %v918 = vmul.f32 %v788, 0.01
      %v919 = vsel %vm791, %v537, %v855
      %v920 = vsel %vm792, %v540, %v856
      %v921 = vsel %vm793, %v545, %v857
      %v922 = vsel %vm794, %v548, %v858
      %v923 = vsel %vm795, %v553, %v859
      %v924 = vsel %vm796, %v556, %v860
      %v925 = vsel %vm797, %v561, %v861
      %v926 = vsel %vm798, %v564, %v862
      %v927 = vsel %vm799, %v569, %v863
      %v928 = vsel %vm800, %v572, %v864
      %v929 = vsel %vm801, %v577, %v865
      %v930 = vsel %vm802, %v580, %v866
      %v931 = vsel %vm803, %v585, %v867
      %v932 = vsel %vm804, %v588, %v868
      %v933 = vsel %vm805, %v593, %v869
      %v934 = vsel %vm806, %v596, %v870
      %v935 = vsel %vm807, %v601, %v871
      %v936 = vsel %vm808, %v604, %v872
      %v937 = vsel %vm809, %v609, %v873
      %v938 = vsel %vm810, %v612, %v874
      %v939 = vsel %vm811, %v617, %v875
      %v940 = vsel %vm812, %v620, %v876
      %v941 = vsel %vm813, %v625, %v877
      %v942 = vsel %vm814, %v628, %v878
      %v943 = vsel %vm815, %v633, %v879
      %v944 = vsel %vm816, %v636, %v880
      %v945 = vsel %vm817, %v641, %v881
      %v946 = vsel %vm818, %v644, %v882
      %v947 = vsel %vm819, %v649, %v883
      %v948 = vsel %vm820, %v652, %v884
      %v949 = vsel %vm821, %v657, %v885
      %v950 = vsel %vm822, %v660, %v886
      %v951 = vsel %vm823, %v665, %v887
      %v952 = vsel %vm824, %v668, %v888
      %v953 = vsel %vm825, %v673, %v889
      %v954 = vsel %vm826, %v676, %v890
      %v955 = vsel %vm827, %v681, %v891
      %v956 = vsel %vm828, %v684, %v892
      %v957 = vsel %vm829, %v689, %v893
      %v958 = vsel %vm830, %v692, %v894
      %v959 = vsel %vm831, %v697, %v895
      %v960 = vsel %vm832, %v700, %v896
      %v961 = vsel %vm833, %v705, %v897
      %v962 = vsel %vm834, %v708, %v898
      %v963 = vsel %vm835, %v713, %v899
      %v964 = vsel %vm836, %v716, %v900
      %v965 = vsel %vm837, %v721, %v901
      %v966 = vsel %vm838, %v724, %v902
      %v967 = vsel %vm839, %v729, %v903
      %v968 = vsel %vm840, %v732, %v904
      %v969 = vsel %vm841, %v737, %v905
      %v970 = vsel %vm842, %v740, %v906
      %v971 = vsel %vm843, %v745, %v907
      %v972 = vsel %vm844, %v748, %v908
      %v973 = vsel %vm845, %v753, %v909
      %v974 = vsel %vm846, %v756, %v910
      %v975 = vsel %vm847, %v761, %v911
      %v976 = vsel %vm848, %v764, %v912
      %v977 = vsel %vm849, %v769, %v913
      %v978 = vsel %vm850, %v772, %v914
      %v979 = vsel %vm851, %v777, %v915
      %v980 = vsel %vm852, %v780, %v916
      %v981 = vsel %vm853, %v785, %v917
      %v982 = vsel %vm854, %v788, %v918
      %v983 = vpack.c.bf16 %v920, %v919
      %v984 = vpack.c.bf16 %v922, %v921
      %v985 = vpack.c.bf16 %v924, %v923
      %v986 = vpack.c.bf16 %v926, %v925
      %v987 = vpack.c.bf16 %v928, %v927
      %v988 = vpack.c.bf16 %v930, %v929
      %v989 = vpack.c.bf16 %v932, %v931
      %v990 = vpack.c.bf16 %v934, %v933
      %v991 = vpack.c.bf16 %v936, %v935
      %v992 = vpack.c.bf16 %v938, %v937
      %v993 = vpack.c.bf16 %v940, %v939
      %v994 = vpack.c.bf16 %v942, %v941
      %v995 = vpack.c.bf16 %v944, %v943
      %v996 = vpack.c.bf16 %v946, %v945
      %v997 = vpack.c.bf16 %v948, %v947
      %v998 = vpack.c.bf16 %v950, %v949
      %v999 = vpack.c.bf16 %v952, %v951
      %v1000 = vpack.c.bf16 %v954, %v953
      %v1001 = vpack.c.bf16 %v956, %v955
      %v1002 = vpack.c.bf16 %v958, %v957
      %v1003 = vpack.c.bf16 %v960, %v959
      %v1004 = vpack.c.bf16 %v962, %v961
      %v1005 = vpack.c.bf16 %v964, %v963
      %v1006 = vpack.c.bf16 %v966, %v965
      %v1007 = vpack.c.bf16 %v968, %v967
      %v1008 = vpack.c.bf16 %v970, %v969
      %v1009 = vpack.c.bf16 %v972, %v971
      %v1010 = vpack.c.bf16 %v974, %v973
      %v1011 = vpack.c.bf16 %v976, %v975
      %v1012 = vpack.c.bf16 %v978, %v977
      %v1013 = vpack.c.bf16 %v980, %v979
      %v1014 = vpack.c.bf16 %v982, %v981
      %v1047 = vunpack.c.l.b16 %v983
      %v1048 = vunpack.c.h.b16 %v983
      %v1049 = vunpack.c.l.b16 %v984
      %v1050 = vunpack.c.h.b16 %v984
      %v1051 = vunpack.c.l.b16 %v985
      %v1052 = vunpack.c.h.b16 %v985
      %v1053 = vunpack.c.l.b16 %v986
      %v1054 = vunpack.c.h.b16 %v986
      %v1055 = vunpack.c.l.b16 %v987
      %v1056 = vunpack.c.h.b16 %v987
      %v1057 = vunpack.c.l.b16 %v988
      %v1058 = vunpack.c.h.b16 %v988
      %v1059 = vunpack.c.l.b16 %v989
      %v1060 = vunpack.c.h.b16 %v989
      %v1061 = vunpack.c.l.b16 %v990
      %v1062 = vunpack.c.h.b16 %v990
      %v1063 = vunpack.c.l.b16 %v991
      %v1064 = vunpack.c.h.b16 %v991
      %v1065 = vunpack.c.l.b16 %v992
      %v1066 = vunpack.c.h.b16 %v992
      %v1067 = vunpack.c.l.b16 %v993
      %v1068 = vunpack.c.h.b16 %v993
      %v1069 = vunpack.c.l.b16 %v994
      %v1070 = vunpack.c.h.b16 %v994
      %v1071 = vunpack.c.l.b16 %v995
      %v1072 = vunpack.c.h.b16 %v995
      %v1073 = vunpack.c.l.b16 %v996
      %v1074 = vunpack.c.h.b16 %v996
      %v1075 = vunpack.c.l.b16 %v997
      %v1076 = vunpack.c.h.b16 %v997
      %v1077 = vunpack.c.l.b16 %v998
      %v1078 = vunpack.c.h.b16 %v998
      %v1079 = vunpack.c.l.b16 %v999
      %v1080 = vunpack.c.h.b16 %v999
      %v1081 = vunpack.c.l.b16 %v1000
      %v1082 = vunpack.c.h.b16 %v1000
      %v1083 = vunpack.c.l.b16 %v1001
      %v1084 = vunpack.c.h.b16 %v1001
      %v1085 = vunpack.c.l.b16 %v1002
      %v1086 = vunpack.c.h.b16 %v1002
      %v1087 = vunpack.c.l.b16 %v1003
      %v1088 = vunpack.c.h.b16 %v1003
      %v1089 = vunpack.c.l.b16 %v1004
      %v1090 = vunpack.c.h.b16 %v1004
      %v1091 = vunpack.c.l.b16 %v1005
      %v1092 = vunpack.c.h.b16 %v1005
      %v1093 = vunpack.c.l.b16 %v1006
      %v1094 = vunpack.c.h.b16 %v1006
      %v1095 = vunpack.c.l.b16 %v1007
      %v1096 = vunpack.c.h.b16 %v1007
      %v1097 = vunpack.c.l.b16 %v1008
      %v1098 = vunpack.c.h.b16 %v1008
      %v1099 = vunpack.c.l.b16 %v1009
      %v1100 = vunpack.c.h.b16 %v1009
      %v1101 = vunpack.c.l.b16 %v1010
      %v1102 = vunpack.c.h.b16 %v1010
      %v1103 = vunpack.c.l.b16 %v1011
      %v1104 = vunpack.c.h.b16 %v1011
      %v1105 = vunpack.c.l.b16 %v1012
      %v1106 = vunpack.c.h.b16 %v1012
      %v1107 = vunpack.c.l.b16 %v1013
      %v1108 = vunpack.c.h.b16 %v1013
      %v1109 = vunpack.c.l.b16 %v1014
      %v1110 = vunpack.c.h.b16 %v1014
      %v1111 = vpack.c.b16 %v1047, %v1047
      %v1112 = vpack.c.b16 %v1048, %v1048
      %v1113 = vpack.c.b16 %v1049, %v1049
      %v1114 = vpack.c.b16 %v1050, %v1050
      %v1115 = vpack.c.b16 %v1051, %v1051
      %v1116 = vpack.c.b16 %v1052, %v1052
      %v1117 = vpack.c.b16 %v1053, %v1053
      %v1118 = vpack.c.b16 %v1054, %v1054
      %v1119 = vpack.c.b16 %v1055, %v1055
      %v1120 = vpack.c.b16 %v1056, %v1056
      %v1121 = vpack.c.b16 %v1057, %v1057
      %v1122 = vpack.c.b16 %v1058, %v1058
      %v1123 = vpack.c.b16 %v1059, %v1059
      %v1124 = vpack.c.b16 %v1060, %v1060
      %v1125 = vpack.c.b16 %v1061, %v1061
      %v1126 = vpack.c.b16 %v1062, %v1062
      %v1127 = vpack.c.b16 %v1063, %v1063
      %v1128 = vpack.c.b16 %v1064, %v1064
      %v1129 = vpack.c.b16 %v1065, %v1065
      %v1130 = vpack.c.b16 %v1066, %v1066
      %v1131 = vpack.c.b16 %v1067, %v1067
      %v1132 = vpack.c.b16 %v1068, %v1068
      %v1133 = vpack.c.b16 %v1069, %v1069
      %v1134 = vpack.c.b16 %v1070, %v1070
      %v1135 = vpack.c.b16 %v1071, %v1071
      %v1136 = vpack.c.b16 %v1072, %v1072
      %v1137 = vpack.c.b16 %v1073, %v1073
      %v1138 = vpack.c.b16 %v1074, %v1074
      %v1139 = vpack.c.b16 %v1075, %v1075
      %v1140 = vpack.c.b16 %v1076, %v1076
      %v1141 = vpack.c.b16 %v1077, %v1077
      %v1142 = vpack.c.b16 %v1078, %v1078
      %v1143 = vpack.c.b16 %v1079, %v1079
      %v1144 = vpack.c.b16 %v1080, %v1080
      %v1145 = vpack.c.b16 %v1081, %v1081
      %v1146 = vpack.c.b16 %v1082, %v1082
      %v1147 = vpack.c.b16 %v1083, %v1083
      %v1148 = vpack.c.b16 %v1084, %v1084
      %v1149 = vpack.c.b16 %v1085, %v1085
      %v1150 = vpack.c.b16 %v1086, %v1086
      %v1151 = vpack.c.b16 %v1087, %v1087
      %v1152 = vpack.c.b16 %v1088, %v1088
      %v1153 = vpack.c.b16 %v1089, %v1089
      %v1154 = vpack.c.b16 %v1090, %v1090
      %v1155 = vpack.c.b16 %v1091, %v1091
      %v1156 = vpack.c.b16 %v1092, %v1092
      %v1157 = vpack.c.b16 %v1093, %v1093
      %v1158 = vpack.c.b16 %v1094, %v1094
      %v1159 = vpack.c.b16 %v1095, %v1095
      %v1160 = vpack.c.b16 %v1096, %v1096
      %v1161 = vpack.c.b16 %v1097, %v1097
      %v1162 = vpack.c.b16 %v1098, %v1098
      %v1163 = vpack.c.b16 %v1099, %v1099
      %v1164 = vpack.c.b16 %v1100, %v1100
      %v1165 = vpack.c.b16 %v1101, %v1101
      %v1166 = vpack.c.b16 %v1102, %v1102
      %v1167 = vpack.c.b16 %v1103, %v1103
      %v1168 = vpack.c.b16 %v1104, %v1104
      %v1169 = vpack.c.b16 %v1105, %v1105
      %v1170 = vpack.c.b16 %v1106, %v1106
      %v1171 = vpack.c.b16 %v1107, %v1107
      %v1172 = vpack.c.b16 %v1108, %v1108
      %v1173 = vpack.c.b16 %v1109, %v1109
      %v1174 = vpack.c.b16 %v1110, %v1110
      %1239 = vst [vmem:[%s172] sm:$0xf] %v1111
      %1240 = vst [vmem:[%s172 + $0x4] sm:$0xf] %v1112
      %1241 = vst [vmem:[%s172 + $0x8] sm:$0xf] %v1113
      %1242 = vst [vmem:[%s172 + $0xc] sm:$0xf] %v1114
      %1243 = vst [vmem:[%s172 + $0x10] sm:$0xf] %v1115
      %1244 = vst [vmem:[%s172 + $0x14] sm:$0xf] %v1116
      %1245 = vst [vmem:[%s172 + $0x18] sm:$0xf] %v1117
      %1246 = vst [vmem:[%s172 + $0x1c] sm:$0xf] %v1118
      %1247 = vst [vmem:[%s172 + $0x20] sm:$0xf] %v1119
      %1248 = vst [vmem:[%s172 + $0x24] sm:$0xf] %v1120
      %1249 = vst [vmem:[%s172 + $0x28] sm:$0xf] %v1121
      %1250 = vst [vmem:[%s172 + $0x2c] sm:$0xf] %v1122
      %1251 = vst [vmem:[%s172 + $0x30] sm:$0xf] %v1123
      %1252 = vst [vmem:[%s172 + $0x34] sm:$0xf] %v1124
      %1253 = vst [vmem:[%s172 + $0x38] sm:$0xf] %v1125
      %1254 = vst [vmem:[%s172 + $0x3c] sm:$0xf] %v1126
      %1255 = vst [vmem:[%s172 + $0x40] sm:$0xf] %v1127
      %1256 = vst [vmem:[%s172 + $0x44] sm:$0xf] %v1128
      %1257 = vst [vmem:[%s172 + $0x48] sm:$0xf] %v1129
      %1258 = vst [vmem:[%s172 + $0x4c] sm:$0xf] %v1130
      %1259 = vst [vmem:[%s172 + $0x50] sm:$0xf] %v1131
      %1260 = vst [vmem:[%s172 + $0x54] sm:$0xf] %v1132
      %1261 = vst [vmem:[%s172 + $0x58] sm:$0xf] %v1133
      %1262 = vst [vmem:[%s172 + $0x5c] sm:$0xf] %v1134
      %1263 = vst [vmem:[%s172 + $0x60] sm:$0xf] %v1135
      %1264 = vst [vmem:[%s172 + $0x64] sm:$0xf] %v1136
      %1265 = vst [vmem:[%s172 + $0x68] sm:$0xf] %v1137
      %1266 = vst [vmem:[%s172 + $0x6c] sm:$0xf] %v1138
      %1267 = vst [vmem:[%s172 + $0x70] sm:$0xf] %v1139
      %1268 = vst [vmem:[%s172 + $0x74] sm:$0xf] %v1140
      %1269 = vst [vmem:[%s172 + $0x78] sm:$0xf] %v1141
      %1270 = vst [vmem:[%s172 + $0x7c] sm:$0xf] %v1142
      %1271 = vst [vmem:[%s172 + $0x80] sm:$0xf] %v1143
      %1272 = vst [vmem:[%s172 + $0x84] sm:$0xf] %v1144
      %1273 = vst [vmem:[%s172 + $0x88] sm:$0xf] %v1145
      %1274 = vst [vmem:[%s172 + $0x8c] sm:$0xf] %v1146
      %1275 = vst [vmem:[%s172 + $0x90] sm:$0xf] %v1147
      %1276 = vst [vmem:[%s172 + $0x94] sm:$0xf] %v1148
      %1277 = vst [vmem:[%s172 + $0x98] sm:$0xf] %v1149
      %1278 = vst [vmem:[%s172 + $0x9c] sm:$0xf] %v1150
      %1279 = vst [vmem:[%s172 + $0xa0] sm:$0xf] %v1151
      %1280 = vst [vmem:[%s172 + $0xa4] sm:$0xf] %v1152
      %1281 = vst [vmem:[%s172 + $0xa8] sm:$0xf] %v1153
      %1282 = vst [vmem:[%s172 + $0xac] sm:$0xf] %v1154
      %1283 = vst [vmem:[%s172 + $0xb0] sm:$0xf] %v1155
      %1284 = vst [vmem:[%s172 + $0xb4] sm:$0xf] %v1156
      %1285 = vst [vmem:[%s172 + $0xb8] sm:$0xf] %v1157
      %1286 = vst [vmem:[%s172 + $0xbc] sm:$0xf] %v1158
      %1287 = vst [vmem:[%s172 + $0xc0] sm:$0xf] %v1159
      %1288 = vst [vmem:[%s172 + $0xc4] sm:$0xf] %v1160
      %1289 = vst [vmem:[%s172 + $0xc8] sm:$0xf] %v1161
      %1290 = vst [vmem:[%s172 + $0xcc] sm:$0xf] %v1162
      %1291 = vst [vmem:[%s172 + $0xd0] sm:$0xf] %v1163
      %1292 = vst [vmem:[%s172 + $0xd4] sm:$0xf] %v1164
      %1293 = vst [vmem:[%s172 + $0xd8] sm:$0xf] %v1165
      %1294 = vst [vmem:[%s172 + $0xdc] sm:$0xf] %v1166
      %1295 = vst [vmem:[%s172 + $0xe0] sm:$0xf] %v1167
      %1296 = vst [vmem:[%s172 + $0xe4] sm:$0xf] %v1168
      %1297 = vst [vmem:[%s172 + $0xe8] sm:$0xf] %v1169
      %1298 = vst [vmem:[%s172 + $0xec] sm:$0xf] %v1170
      %1299 = vst [vmem:[%s172 + $0xf0] sm:$0xf] %v1171
      %1300 = vst [vmem:[%s172 + $0xf4] sm:$0xf] %v1172
      %1301 = vst [vmem:[%s172 + $0xf8] sm:$0xf] %v1173
      %1302 = vst [vmem:[%s172 + $0xfc] sm:$0xf] %v1174
      %s1303 = smul.u32 64, %s14
      %p1304 = scmp.lt.s32.totalorder %s1303, 255
      %s1305 = scalar_select %p1304, %s1303, 255
      %s1306 = smul.addr %s1305, 4
      %s1307 = scalar_lea.vmem %s3, %s1306
      // Predicated region
      $region33: #{discriminator_forward.9} parent=31 // pred_check
        %p1308 = pneg %p100
      $region34: #{discriminator_forward.9} parent=31 // pred_check_branch
        %1310 = sbr.rel (%p1308) target = $region36
      $region35: #{discriminator_forward.9} parent=31 // pred_region
        %s1311 = smul.u32 64, %s14
      $region36: #{discriminator_forward.9} parent=31 // pred_fallthru
        _
    $region32: #{discriminator_forward.9} parent=5 // pred_fallthru
      _
    %p1312 = scmp.le.s32.totalorder 2, %s9
    // Predicated region
    $region37: #{discriminator_forward.9} parent=5 // pred_check
      %p1313 = pneg %p1312
    $region38: #{discriminator_forward.9} parent=5 // pred_check_branch
      %1315 = sbr.rel (%p1313) target = $region40
    $region39: #{discriminator_forward.9} parent=5 // pred_region
      %s1316 = ssub.s32 %s9, 2
      // Predicated region
      $region41: #{discriminator_forward.9} parent=39 // pred_check
        %p1317 = pneg %p106
      $region42: #{discriminator_forward.9} parent=39 // pred_check_branch
        %1319 = sbr.rel (%p1317) target = $region44
      $region43: #{discriminator_forward.9} parent=39 // pred_region
        %s1320 = smul.u32 64, %s15
        %p1321 = scmp.lt.s32.totalorder %s1320, 255
        %s1322 = scalar_select %p1321, %s1320, 255
        %s1323 = smul.addr %s1322, 4
        %s1324 = scalar_lea.vmem %s3, %s1323
      $region44: #{discriminator_forward.9} parent=39 // pred_fallthru
        _
    $region40: #{discriminator_forward.9} parent=5 // pred_fallthru
      _
  $region6: #{discriminator_forward.9} parent=0 // loop_footer
    %s13 = sadd.s32 1, %s9
  $region7: #{discriminator_forward.9} parent=0 // loop_footer_branch
    %8 = sbr.rel target = $region3
  $region8: #{discriminator_forward.9} parent=0 // loop_exit
    _

// kernel: discriminator_forward.10
$region0: #{discriminator_forward.10}
  #allocation0 [shape = 'u32[]', space=smem, size = 0x4, offset = 0x4, fixed_abs, tag = 'smem constant byte address 0x4 - core index']
  #allocation1 [shape = 'u32[144,128]{1,0:T(1,128)}', space=vmem, size = 0x12000, scoped, tag = 'internal scratch']
  %s0 = inlined_call_operand.vmem [shape: bf16[512,128], index: 0, kind: input, shape index: {}]
  %s1 = inlined_call_operand.vmem [shape: bf16[128,128], index: 1, kind: input, shape index: {}]
  %s2 = inlined_call_operand.vmem [shape: f32[1,128], index: 2, kind: input, shape index: {}]
  %s3 = inlined_call_operand.vmem [shape: bf16[512,128], index: 3, kind: output, shape index: {}]
  %s4 = sld [smem:[#allocation0]]
  $region45: #{discriminator_forward.10} parent=0
    _
  %s6 = ssub.s32 1, %s4
  %s7 = scalar_select 0, %s6, %s4
  loop: start=0, step=1, limit=4
  $region2: #{discriminator_forward.10} parent=0 // loop_pre_header
    _
  $region3: #{discriminator_forward.10} parent=0 // loop_header
    %s9 = sphi 0, %s13
    %p10 = scmp.ge.s32.totalorder %s9, 4
    %s19 = sphi 0, %s21
    %s22 = sphi 0, %s19
    %s23 = sphi 0, %s22
    %s39 = sphi 0, %s23
    %s43 = sphi 0, %s43
    %s45 = sphi 0, %s43
    %s46 = sphi 0, %s45
    %s60 = sphi 0, %s46
    %s64 = sphi 0, %s64
    %s66 = sphi 0, %s64
    %s67 = sphi 0, %s66
    %s81 = sphi 0, %s67
    %s87 = sphi 0, %s89
    %s90 = sphi 0, %s87
    %s91 = sphi 0, %s90
    %s107 = sphi 0, %s91
  $region4: #{discriminator_forward.10} parent=0 // loop_header_branch
    %12 = sbr.rel (%p10) target = $region8
  $region5: #{discriminator_forward.10} parent=0 // loop_body
    %s14 = ssub.s32 %s9, 1
    %s15 = ssub.s32 %s9, 2
    %s16 = sadd.s32 %s9, 1
    %s17 = ssub.s32 %s9, %s16
    %p18 = scmp.eq.s32.totalorder %s17, 0
    %s20 = sadd.s32 %s19, 1
    %s21 = scalar_select %p18, %s19, %s20
    %p24 = pneg %p18
    %p25 = scmp.eq.s32.totalorder %s9, 1
    %p26 = por %p24, %p25
    %p27 = scmp.ne.s32.totalorder %s19, %s22
    %p28 = scmp.eq.s32.totalorder %s9, 0
    %p29 = por %p27, %p28
    %p30 = scmp.ne.s32.totalorder %s19, %s22
    %p31 = scmp.eq.s32.totalorder %s14, 1
    %p32 = por %p30, %p31
    %p33 = scmp.ne.s32.totalorder %s22, %s23
    %p34 = scmp.eq.s32.totalorder %s14, 0
    %p35 = por %p33, %p34
    %p36 = scmp.ne.s32.totalorder %s22, %s23
    %p37 = scmp.eq.s32.totalorder %s15, 1
    %p38 = por %p36, %p37
    %p40 = scmp.ne.s32.totalorder %s23, %s39
    %p41 = scmp.eq.s32.totalorder %s15, 0
    %p42 = por %p40, %p41
    %s44 = sadd.s32 %s43, 1
    %p47 = scmp.eq.s32.totalorder %s9, 1
    %p48 = scmp.ne.s32.totalorder %s43, %s45
    %p49 = scmp.eq.s32.totalorder %s9, 0
    %p50 = por %p48, %p49
    %p51 = scmp.ne.s32.totalorder %s43, %s45
    %p52 = scmp.eq.s32.totalorder %s14, 1
    %p53 = por %p51, %p52
    %p54 = scmp.ne.s32.totalorder %s45, %s46
    %p55 = scmp.eq.s32.totalorder %s14, 0
    %p56 = por %p54, %p55
    %p57 = scmp.ne.s32.totalorder %s45, %s46
    %p58 = scmp.eq.s32.totalorder %s15, 1
    %p59 = por %p57, %p58
    %p61 = scmp.ne.s32.totalorder %s46, %s60
    %p62 = scmp.eq.s32.totalorder %s15, 0
    %p63 = por %p61, %p62
    %s65 = sadd.s32 %s64, 1
    %p68 = scmp.eq.s32.totalorder %s9, 1
    %p69 = scmp.ne.s32.totalorder %s64, %s66
    %p70 = scmp.eq.s32.totalorder %s9, 0
    %p71 = por %p69, %p70
    %p72 = scmp.ne.s32.totalorder %s64, %s66
    %p73 = scmp.eq.s32.totalorder %s14, 1
    %p74 = por %p72, %p73
    %p75 = scmp.ne.s32.totalorder %s66, %s67
    %p76 = scmp.eq.s32.totalorder %s14, 0
    %p77 = por %p75, %p76
    %p78 = scmp.ne.s32.totalorder %s66, %s67
    %p79 = scmp.eq.s32.totalorder %s15, 1
    %p80 = por %p78, %p79
    %p82 = scmp.ne.s32.totalorder %s67, %s81
    %p83 = scmp.eq.s32.totalorder %s15, 0
    %p84 = por %p82, %p83
    %s85 = ssub.s32 %s9, %s16
    %p86 = scmp.eq.s32.totalorder %s85, 0
    %s88 = sadd.s32 %s87, 1
    %s89 = scalar_select %p86, %s87, %s88
    %p92 = pneg %p86
    %p93 = scmp.eq.s32.totalorder %s9, 1
    %p94 = por %p92, %p93
    %p95 = scmp.ne.s32.totalorder %s87, %s90
    %p96 = scmp.eq.s32.totalorder %s9, 0
    %p97 = por %p95, %p96
    %p98 = scmp.ne.s32.totalorder %s87, %s90
    %p99 = scmp.eq.s32.totalorder %s14, 1
    %p100 = por %p98, %p99
    %p101 = scmp.ne.s32.totalorder %s90, %s91
    %p102 = scmp.eq.s32.totalorder %s14, 0
    %p103 = por %p101, %p102
    %p104 = scmp.ne.s32.totalorder %s90, %s91
    %p105 = scmp.eq.s32.totalorder %s15, 1
    %p106 = por %p104, %p105
    %p108 = scmp.ne.s32.totalorder %s91, %s107
    %p109 = scmp.eq.s32.totalorder %s15, 0
    %p110 = por %p108, %p109
    %p111 = scmp.le.s32.totalorder 1, %s9
    %p112 = scmp.lt.s32.totalorder %s9, 3
    %p113 = pnand %p111, %p112
    %p114 = pneg %p113
    // Predicated region
    $region9: #{discriminator_forward.10} parent=5 // pred_check
      _
    $region10: #{discriminator_forward.10} parent=5 // pred_check_branch
      %116 = sbr.rel (%p113) target = $region12
    $region11: #{discriminator_forward.10} parent=5 // pred_region
      %s117 = ssub.s32 %s9, 1
      // Predicated region
      $region13: #{discriminator_forward.10} parent=11 // pred_check
        %p118 = pneg %p56
      $region14: #{discriminator_forward.10} parent=11 // pred_check_branch
        %120 = sbr.rel (%p118) target = $region16
      $region15: #{discriminator_forward.10} parent=11 // pred_region
        _
      $region16: #{discriminator_forward.10} parent=11 // pred_fallthru
        _
      // Predicated region
      $region17: #{discriminator_forward.10} parent=11 // pred_check
        %p121 = pneg %p77
      $region18: #{discriminator_forward.10} parent=11 // pred_check_branch
        %123 = sbr.rel (%p121) target = $region20
      $region19: #{discriminator_forward.10} parent=11 // pred_region
        _
      $region20: #{discriminator_forward.10} parent=11 // pred_fallthru
        _
    $region12: #{discriminator_forward.10} parent=5 // pred_fallthru
      _
    %p124 = scmp.lt.s32.totalorder %s9, 2
    // Predicated region
    $region21: #{discriminator_forward.10} parent=5 // pred_check
      %p125 = pneg %p124
    $region22: #{discriminator_forward.10} parent=5 // pred_check_branch
      %127 = sbr.rel (%p125) target = $region24
    $region23: #{discriminator_forward.10} parent=5 // pred_region
      // Predicated region
      $region25: #{discriminator_forward.10} parent=23 // pred_check
        %p128 = pneg %p29
      $region26: #{discriminator_forward.10} parent=23 // pred_check_branch
        %130 = sbr.rel (%p128) target = $region28
      $region27: #{discriminator_forward.10} parent=23 // pred_region
        %s131 = smul.u32 32, %s9
        %p132 = scmp.lt.s32.totalorder %s131, 63
        %s133 = scalar_select %p132, %s131, 63
        %s134 = smul.addr %s133, 4
        %s135 = scalar_lea.vmem %s0, %s134
        %s136 = smul.u32 32, %s9
      $region28: #{discriminator_forward.10} parent=23 // pred_fallthru
        _
    $region24: #{discriminator_forward.10} parent=5 // pred_fallthru
      _
    %p137 = scmp.le.s32.totalorder 1, %s9
    %p138 = scmp.lt.s32.totalorder %s9, 3
    %p139 = pnand %p137, %p138
    %p140 = pneg %p139
    // Predicated region
    $region29: #{discriminator_forward.10} parent=5 // pred_check
      _
    $region30: #{discriminator_forward.10} parent=5 // pred_check_branch
      %142 = sbr.rel (%p139) target = $region32
    $region31: #{discriminator_forward.10} parent=5 // pred_region
      %s143 = ssub.s32 %s9, 1
      %s144 = smul.u32 32, %s14
      %p145 = scmp.lt.s32.totalorder %s144, 63
      %s146 = scalar_select %p145, %s144, 63
      %s147 = smul.addr %s146, 4
      %s148 = scalar_lea.vmem %s0, %s147
      %p149 = pneg %p35
      %p150 = pneg %p32
      %p151 = pneg %p56
      %p152 = pneg %p53
      %p153 = pneg %p77
      %p154 = pneg %p74
      %p155 = pneg %p103
      %p156 = pneg %p100
      %s157 = smul.u32 32, %s14
      %p158 = scmp.lt.s32.totalorder %s157, 63
      %s159 = scalar_select %p158, %s157, 63
      %s160 = smul.addr %s159, 4
      %s161 = scalar_lea.vmem %s3, %s160
      %s162 = smul.u32 32, %s14
      %p163 = scmp.lt.s32.totalorder %s162, 63
      %s164 = scalar_select %p163, %s162, 63
      %s165 = smul.addr %s164, 4
      %s166 = scalar_lea.vmem %s0, %s165
      %s167 = smul.u32 32, %s14
      %s168 = smul.u32 32, %s14
      %p169 = scmp.lt.s32.totalorder %s168, 63
      %s170 = scalar_select %p169, %s168, 63
      %s171 = smul.addr %s170, 4
      %s172 = scalar_lea.vmem %s3, %s171
      %s173 = smul.u32 32, %s14
      %v175 = vld [vmem:[%s166] sm:$0xf]
      %v176 = vld [vmem:[%s166 + $0x4] sm:$0xf]
      %v177 = vld [vmem:[%s166 + $0x8] sm:$0xf]
      %v178 = vld [vmem:[%s166 + $0xc] sm:$0xf]
      %v179 = vld [vmem:[%s166 + $0x10] sm:$0xf]
      %v180 = vld [vmem:[%s166 + $0x14] sm:$0xf]
      %v181 = vld [vmem:[%s166 + $0x18] sm:$0xf]
      %v182 = vld [vmem:[%s166 + $0x1c] sm:$0xf]
      %v183 = vld [vmem:[%s166 + $0x20] sm:$0xf]
      %v184 = vld [vmem:[%s166 + $0x24] sm:$0xf]
      %v185 = vld [vmem:[%s166 + $0x28] sm:$0xf]
      %v186 = vld [vmem:[%s166 + $0x2c] sm:$0xf]
      %v187 = vld [vmem:[%s166 + $0x30] sm:$0xf]
      %v188 = vld [vmem:[%s166 + $0x34] sm:$0xf]
      %v189 = vld [vmem:[%s166 + $0x38] sm:$0xf]
      %v190 = vld [vmem:[%s166 + $0x3c] sm:$0xf]
      %v191 = vld [vmem:[%s166 + $0x40] sm:$0xf]
      %v192 = vld [vmem:[%s166 + $0x44] sm:$0xf]
      %v193 = vld [vmem:[%s166 + $0x48] sm:$0xf]
      %v194 = vld [vmem:[%s166 + $0x4c] sm:$0xf]
      %v195 = vld [vmem:[%s166 + $0x50] sm:$0xf]
      %v196 = vld [vmem:[%s166 + $0x54] sm:$0xf]
      %v197 = vld [vmem:[%s166 + $0x58] sm:$0xf]
      %v198 = vld [vmem:[%s166 + $0x5c] sm:$0xf]
      %v199 = vld [vmem:[%s166 + $0x60] sm:$0xf]
      %v200 = vld [vmem:[%s166 + $0x64] sm:$0xf]
      %v201 = vld [vmem:[%s166 + $0x68] sm:$0xf]
      %v202 = vld [vmem:[%s166 + $0x6c] sm:$0xf]
      %v203 = vld [vmem:[%s166 + $0x70] sm:$0xf]
      %v204 = vld [vmem:[%s166 + $0x74] sm:$0xf]
      %v205 = vld [vmem:[%s166 + $0x78] sm:$0xf]
      %v206 = vld [vmem:[%s166 + $0x7c] sm:$0xf]
      %v207 = vld [vmem:[%s1] sm:$0xf]
      %v208 = vld [vmem:[%s1 + $0x4] sm:$0xf]
      %v209 = vld [vmem:[%s1 + $0x8] sm:$0xf]
      %v210 = vld [vmem:[%s1 + $0xc] sm:$0xf]
      %v211 = vld [vmem:[%s1 + $0x10] sm:$0xf]
      %v212 = vld [vmem:[%s1 + $0x14] sm:$0xf]
      %v213 = vld [vmem:[%s1 + $0x18] sm:$0xf]
      %v214 = vld [vmem:[%s1 + $0x1c] sm:$0xf]
      %v215 = vld [vmem:[%s1 + $0x20] sm:$0xf]
      %v216 = vld [vmem:[%s1 + $0x24] sm:$0xf]
      %v217 = vld [vmem:[%s1 + $0x28] sm:$0xf]
      %v218 = vld [vmem:[%s1 + $0x2c] sm:$0xf]
      %v219 = vld [vmem:[%s1 + $0x30] sm:$0xf]
      %v220 = vld [vmem:[%s1 + $0x34] sm:$0xf]
      %v221 = vld [vmem:[%s1 + $0x38] sm:$0xf]
      %v222 = vld [vmem:[%s1 + $0x3c] sm:$0xf]
      %v223 = vld [vmem:[%s2] sm:$0x1]
      %v225 = vlaneseq
      %v226 = vshrl.u32 %v225, 7
      %v227 = vsub.s32 0, %v226
      %v228 = vrot.slane %v223, %v227
      %v262 = vunpack.c.l.b16 %v175
      %v263 = vunpack.c.l.b16 %v176
      %v264 = vunpack.c.l.b16 %v177
      %v265 = vunpack.c.l.b16 %v178
      %v266 = vunpack.c.l.b16 %v179
      %v267 = vunpack.c.l.b16 %v180
      %v268 = vunpack.c.l.b16 %v181
      %v269 = vunpack.c.l.b16 %v182
      %v270 = vunpack.c.l.b16 %v183
      %v271 = vunpack.c.l.b16 %v184
      %v272 = vunpack.c.l.b16 %v185
      %v273 = vunpack.c.l.b16 %v186
      %v274 = vunpack.c.l.b16 %v187
      %v275 = vunpack.c.l.b16 %v188
      %v276 = vunpack.c.l.b16 %v189
      %v277 = vunpack.c.l.b16 %v190
      %v278 = vunpack.c.l.b16 %v191
      %v279 = vunpack.c.l.b16 %v192
      %v280 = vunpack.c.l.b16 %v193
      %v281 = vunpack.c.l.b16 %v194
      %v282 = vunpack.c.l.b16 %v195
      %v283 = vunpack.c.l.b16 %v196
      %v284 = vunpack.c.l.b16 %v197
      %v285 = vunpack.c.l.b16 %v198
      %v286 = vunpack.c.l.b16 %v199
      %v287 = vunpack.c.l.b16 %v200
      %v288 = vunpack.c.l.b16 %v201
      %v289 = vunpack.c.l.b16 %v202
      %v290 = vunpack.c.l.b16 %v203
      %v291 = vunpack.c.l.b16 %v204
      %v292 = vunpack.c.l.b16 %v205
      %v293 = vunpack.c.l.b16 %v206
      %v294 = vpack.c.b16 %v263, %v262
      %v295 = vpack.c.b16 %v265, %v264
      %v296 = vpack.c.b16 %v267, %v266
      %v297 = vpack.c.b16 %v269, %v268
      %v298 = vpack.c.b16 %v271, %v270
      %v299 = vpack.c.b16 %v273, %v272
      %v300 = vpack.c.b16 %v275, %v274
      %v301 = vpack.c.b16 %v277, %v276
      %v302 = vpack.c.b16 %v279, %v278
      %v303 = vpack.c.b16 %v281, %v280
      %v304 = vpack.c.b16 %v283, %v282
      %v305 = vpack.c.b16 %v285, %v284
      %v306 = vpack.c.b16 %v287, %v286
      %v307 = vpack.c.b16 %v289, %v288
      %v308 = vpack.c.b16 %v291, %v290
      %v309 = vpack.c.b16 %v293, %v292
      %v342 = vunpack.c.l.b16 %v207
      %v343 = vunpack.c.l.b16 %v208
      %v344 = vunpack.c.l.b16 %v209
      %v345 = vunpack.c.l.b16 %v210
      %v346 = vunpack.c.l.b16 %v211
      %v347 = vunpack.c.l.b16 %v212
      %v348 = vunpack.c.l.b16 %v213
      %v349 = vunpack.c.l.b16 %v214
      %v350 = vunpack.c.l.b16 %v215
      %v351 = vunpack.c.l.b16 %v216
      %v352 = vunpack.c.l.b16 %v217
      %v353 = vunpack.c.l.b16 %v218
      %v354 = vunpack.c.l.b16 %v219
      %v355 = vunpack.c.l.b16 %v220
      %v356 = vunpack.c.l.b16 %v221
      %v357 = vunpack.c.l.b16 %v222
      %v358 = vpack.c.b16 %v343, %v342
      %v359 = vpack.c.b16 %v345, %v344
      %v360 = vpack.c.b16 %v347, %v346
      %v361 = vpack.c.b16 %v349, %v348
      %v362 = vpack.c.b16 %v351, %v350
      %v363 = vpack.c.b16 %v353, %v352
      %v364 = vpack.c.b16 %v355, %v354
      %v365 = vpack.c.b16 %v357, %v356
      %374 = vmatprep.subr.bf16.mxu0 0
      %375 = vmatpush1.bf16.msra.mxu0 %v358
      %376 = vmatprep.subr.bf16.mxu0 0
      %377 = vmatpush1.bf16.msra.mxu0 %v359
      %378 = vmatprep.subr.bf16.mxu0 0
      %379 = vmatpush1.bf16.msra.mxu0 %v360
      %380 = vmatprep.subr.bf16.mxu0 0
      %381 = vmatpush1.bf16.msra.mxu0 %v361
      %382 = vmatprep.subr.bf16.mxu0 0
      %383 = vmatpush1.bf16.msra.mxu0 %v362
      %384 = vmatprep.subr.bf16.mxu0 0
      %385 = vmatpush1.bf16.msra.mxu0 %v363
      %386 = vmatprep.subr.bf16.mxu0 0
      %387 = vmatpush1.bf16.msra.mxu0 %v364
      %388 = vmatprep.subr.bf16.mxu0 0
      %389 = vmatpush1.bf16.msra.mxu0 %v365
      %390 = vmatprep.subr.bf16.mxu0 0
      %391 = vmatpush1.bf16.msra.mxu0 0
      %392 = vmatprep.subr.bf16.mxu0 0
      %393 = vmatpush1.bf16.msra.mxu0 0
      %394 = vmatprep.subr.bf16.mxu0 0
      %395 = vmatpush1.bf16.msra.mxu0 0
      %396 = vmatprep.subr.bf16.mxu0 0
      %397 = vmatpush1.bf16.msra.mxu0 0
      %398 = vmatprep.subr.bf16.mxu0 0
      %399 = vmatpush1.bf16.msra.mxu0 0
      %400 = vmatprep.subr.bf16.mxu0 0
      %401 = vmatpush1.bf16.msra.mxu0 0
      %402 = vmatprep.subr.bf16.mxu0 0
      %403 = vmatpush1.bf16.msra.mxu0 0
      %404 = vmatprep.subr.bf16.mxu0 0
      %405 = vmatpush1.bf16.msra.mxu0 0
      %406 = vmatprep.mubr.bf16.mxu0 0
      %407 = vmatmul.mubr.bf16.gmra.mrb[0].mxu0 %v294
      %v408 = vpop.f32.mrb[0].mxu0
      %v409 = vadd.f32 %v228, %v408
      %v410 = vpop.f32.mrb[0].mxu0
      %v411 = vpop.f32.mrb[0].mxu0
      %v412 = vadd.f32 %v228, %v411
      %v413 = vpop.f32.mrb[0].mxu0
      %414 = vmatprep.mubr.bf16.mxu0 0
      %415 = vmatmul.mubr.bf16.gmra.mrb[0].mxu0 %v295
      %v416 = vpop.f32.mrb[0].mxu0
      %v417 = vadd.f32 %v228, %v416
      %v418 = vpop.f32.mrb[0].mxu0
      %v419 = vpop.f32.mrb[0].mxu0
      %v420 = vadd.f32 %v228, %v419
      %v421 = vpop.f32.mrb[0].mxu0
      %422 = vmatprep.mubr.bf16.mxu0 0
      %423 = vmatmul.mubr.bf16.gmra.mrb[0].mxu0 %v296
      %v424 = vpop.f32.mrb[0].mxu0
      %v425 = vadd.f32 %v228, %v424
      %v426 = vpop.f32.mrb[0].mxu0
      %v427 = vpop.f32.mrb[0].mxu0
      %v428 = vadd.f32 %v228, %v427
      %v429 = vpop.f32.mrb[0].mxu0
      %430 = vmatprep.mubr.bf16.mxu0 0
      %431 = vmatmul.mubr.bf16.gmra.mrb[0].mxu0 %v297
      %v432 = vpop.f32.mrb[0].mxu0
      %v433 = vadd.f32 %v228, %v432
      %v434 = vpop.f32.mrb[0].mxu0
      %v435 = vpop.f32.mrb[0].mxu0
      %v436 = vadd.f32 %v228, %v435
      %v437 = vpop.f32.mrb[0].mxu0
      %438 = vmatprep.mubr.bf16.mxu0 0
      %439 = vmatmul.mubr.bf16.gmra.mrb[0].mxu0 %v298
      %v440 = vpop.f32.mrb[0].mxu0
      %v441 = vadd.f32 %v228, %v440
      %v442 = vpop.f32.mrb[0].mxu0
      %v443 = vpop.f32.mrb[0].mxu0
      %v444 = vadd.f32 %v228, %v443
      %v445 = vpop.f32.mrb[0].mxu0
      %446 = vmatprep.mubr.bf16.mxu0 0
      %447 = vmatmul.mubr.bf16.gmra.mrb[0].mxu0 %v299
      %v448 = vpop.f32.mrb[0].mxu0
      %v449 = vadd.f32 %v228, %v448
      %v450 = vpop.f32.mrb[0].mxu0
      %v451 = vpop.f32.mrb[0].mxu0
      %v452 = vadd.f32 %v228, %v451
      %v453 = vpop.f32.mrb[0].mxu0
      %454 = vmatprep.mubr.bf16.mxu0 0
      %455 = vmatmul.mubr.bf16.gmra.mrb[0].mxu0 %v300
      %v456 = vpop.f32.mrb[0].mxu0
      %v457 = vadd.f32 %v228, %v456
      %v458 = vpop.f32.mrb[0].mxu0
      %v459 = vpop.f32.mrb[0].mxu0
      %v460 = vadd.f32 %v228, %v459
      %v461 = vpop.f32.mrb[0].mxu0
      %462 = vmatprep.mubr.bf16.mxu0 0
      %463 = vmatmul.mubr.bf16.gmra.mrb[0].mxu0 %v301
      %v464 = vpop.f32.mrb[0].mxu0
      %v465 = vadd.f32 %v228, %v464
      %v466 = vpop.f32.mrb[0].mxu0
      %v467 = vpop.f32.mrb[0].mxu0
      %v468 = vadd.f32 %v228, %v467
      %v469 = vpop.f32.mrb[0].mxu0
      %470 = vmatprep.mubr.bf16.mxu0 0
      %471 = vmatmul.mubr.bf16.gmra.mrb[0].mxu0 %v302
      %v472 = vpop.f32.mrb[0].mxu0
      %v473 = vadd.f32 %v228, %v472
      %v474 = vpop.f32.mrb[0].mxu0
      %v475 = vpop.f32.mrb[0].mxu0
      %v476 = vadd.f32 %v228, %v475
      %v477 = vpop.f32.mrb[0].mxu0
      %478 = vmatprep.mubr.bf16.mxu0 0
      %479 = vmatmul.mubr.bf16.gmra.mrb[0].mxu0 %v303
      %v480 = vpop.f32.mrb[0].mxu0
      %v481 = vadd.f32 %v228, %v480
      %v482 = vpop.f32.mrb[0].mxu0
      %v483 = vpop.f32.mrb[0].mxu0
      %v484 = vadd.f32 %v228, %v483
      %v485 = vpop.f32.mrb[0].mxu0
      %486 = vmatprep.mubr.bf16.mxu0 0
      %487 = vmatmul.mubr.bf16.gmra.mrb[0].mxu0 %v304
      %v488 = vpop.f32.mrb[0].mxu0
      %v489 = vadd.f32 %v228, %v488
      %v490 = vpop.f32.mrb[0].mxu0
      %v491 = vpop.f32.mrb[0].mxu0
      %v492 = vadd.f32 %v228, %v491
      %v493 = vpop.f32.mrb[0].mxu0
      %494 = vmatprep.mubr.bf16.mxu0 0
      %495 = vmatmul.mubr.bf16.gmra.mrb[0].mxu0 %v305
      %v496 = vpop.f32.mrb[0].mxu0
      %v497 = vadd.f32 %v228, %v496
      %v498 = vpop.f32.mrb[0].mxu0
      %v499 = vpop.f32.mrb[0].mxu0
      %v500 = vadd.f32 %v228, %v499
      %v501 = vpop.f32.mrb[0].mxu0
      %502 = vmatprep.mubr.bf16.mxu0 0
      %503 = vmatmul.mubr.bf16.gmra.mrb[0].mxu0 %v306
      %v504 = vpop.f32.mrb[0].mxu0
      %v505 = vadd.f32 %v228, %v504
      %v506 = vpop.f32.mrb[0].mxu0
      %v507 = vpop.f32.mrb[0].mxu0
      %v508 = vadd.f32 %v228, %v507
      %v509 = vpop.f32.mrb[0].mxu0
      %510 = vmatprep.mubr.bf16.mxu0 0
      %511 = vmatmul.mubr.bf16.gmra.mrb[0].mxu0 %v307
      %v512 = vpop.f32.mrb[0].mxu0
      %v513 = vadd.f32 %v228, %v512
      %v514 = vpop.f32.mrb[0].mxu0
      %v515 = vpop.f32.mrb[0].mxu0
      %v516 = vadd.f32 %v228, %v515
      %v517 = vpop.f32.mrb[0].mxu0
      %518 = vmatprep.mubr.bf16.mxu0 0
      %519 = vmatmul.mubr.bf16.gmra.mrb[0].mxu0 %v308
      %v520 = vpop.f32.mrb[0].mxu0
      %v521 = vadd.f32 %v228, %v520
      %v522 = vpop.f32.mrb[0].mxu0
      %v523 = vpop.f32.mrb[0].mxu0
      %v524 = vadd.f32 %v228, %v523
      %v525 = vpop.f32.mrb[0].mxu0
      %526 = vmatprep.mubr.bf16.mxu0 0
      %527 = vmatmul.mubr.bf16.gmra.mrb[0].mxu0 %v309
      %v528 = vpop.f32.mrb[0].mxu0
      %v529 = vadd.f32 %v228, %v528
      %v530 = vpop.f32.mrb[0].mxu0
      %v531 = vpop.f32.mrb[0].mxu0
      %v532 = vadd.f32 %v228, %v531
      %v533 = vpop.f32.mrb[0].mxu0
      %534 = vdwg.mxu0
      %vm535 = vcmp.ge.f32.partialorder %v409, 0.0
      %vm536 = vcmp.ge.f32.partialorder %v412, 0.0
      %vm537 = vcmp.ge.f32.partialorder %v417, 0.0
      %vm538 = vcmp.ge.f32.partialorder %v420, 0.0
      %vm539 = vcmp.ge.f32.partialorder %v425, 0.0
      %vm540 = vcmp.ge.f32.partialorder %v428, 0.0
      %vm541 = vcmp.ge.f32.partialorder %v433, 0.0
      %vm542 = vcmp.ge.f32.partialorder %v436, 0.0
      %vm543 = vcmp.ge.f32.partialorder %v441, 0.0
      %vm544 = vcmp.ge.f32.partialorder %v444, 0.0
      %vm545 = vcmp.ge.f32.partialorder %v449, 0.0
      %vm546 = vcmp.ge.f32.partialorder %v452, 0.0
      %vm547 = vcmp.ge.f32.partialorder %v457, 0.0
      %vm548 = vcmp.ge.f32.partialorder %v460, 0.0
      %vm549 = vcmp.ge.f32.partialorder %v465, 0.0
      %vm550 = vcmp.ge.f32.partialorder %v468, 0.0
      %vm551 = vcmp.ge.f32.partialorder %v473, 0.0
      %vm552 = vcmp.ge.f32.partialorder %v476, 0.0
      %vm553 = vcmp.ge.f32.partialorder %v481, 0.0
      %vm554 = vcmp.ge.f32.partialorder %v484, 0.0
      %vm555 = vcmp.ge.f32.partialorder %v489, 0.0
      %vm556 = vcmp.ge.f32.partialorder %v492, 0.0
      %vm557 = vcmp.ge.f32.partialorder %v497, 0.0
      %vm558 = vcmp.ge.f32.partialorder %v500, 0.0
      %vm559 = vcmp.ge.f32.partialorder %v505, 0.0
      %vm560 = vcmp.ge.f32.partialorder %v508, 0.0
      %vm561 = vcmp.ge.f32.partialorder %v513, 0.0
      %vm562 = vcmp.ge.f32.partialorder %v516, 0.0
      %vm563 = vcmp.ge.f32.partialorder %v521, 0.0
      %vm564 = vcmp.ge.f32.partialorder %v524, 0.0
      %vm565 = vcmp.ge.f32.partialorder %v529, 0.0
      %vm566 = vcmp.ge.f32.partialorder %v532, 0.0
      %v567 = vmul.f32 %v409, 0.01
      %v568 = vmul.f32 %v412, 0.01
      %v569 = vmul.f32 %v417, 0.01
      %v570 = vmul.f32 %v420, 0.01
      %v571 = vmul.f32 %v425, 0.01
      %v572 = vmul.f32 %v428, 0.01
      %v573 = vmul.f32 %v433, 0.01
      %v574 = vmul.f32 %v436, 0.01
      %v575 = vmul.f32 %v441, 0.01
      %v576 = vmul.f32 %v444, 0.01
      %v577 = vmul.f32 %v449, 0.01
      %v578 = vmul.f32 %v452, 0.01
      %v579 = vmul.f32 %v457, 0.01
      %v580 = vmul.f32 %v460, 0.01
      %v581 = vmul.f32 %v465, 0.01
      %v582 = vmul.f32 %v468, 0.01
      %v583 = vmul.f32 %v473, 0.01
      %v584 = vmul.f32 %v476, 0.01
      %v585 = vmul.f32 %v481, 0.01
      %v586 = vmul.f32 %v484, 0.01
      %v587 = vmul.f32 %v489, 0.01
      %v588 = vmul.f32 %v492, 0.01
      %v589 = vmul.f32 %v497, 0.01
      %v590 = vmul.f32 %v500, 0.01
      %v591 = vmul.f32 %v505, 0.01
      %v592 = vmul.f32 %v508, 0.01
      %v593 = vmul.f32 %v513, 0.01
      %v594 = vmul.f32 %v516, 0.01
      %v595 = vmul.f32 %v521, 0.01
      %v596 = vmul.f32 %v524, 0.01
      %v597 = vmul.f32 %v529, 0.01
      %v598 = vmul.f32 %v532, 0.01
      %v599 = vsel %vm535, %v409, %v567
      %v600 = vsel %vm536, %v412, %v568
      %v601 = vsel %vm537, %v417, %v569
      %v602 = vsel %vm538, %v420, %v570
      %v603 = vsel %vm539, %v425, %v571
      %v604 = vsel %vm540, %v428, %v572
      %v605 = vsel %vm541, %v433, %v573
      %v606 = vsel %vm542, %v436, %v574
      %v607 = vsel %vm543, %v441, %v575
      %v608 = vsel %vm544, %v444, %v576
      %v609 = vsel %vm545, %v449, %v577
      %v610 = vsel %vm546, %v452, %v578
      %v611 = vsel %vm547, %v457, %v579
      %v612 = vsel %vm548, %v460, %v580
      %v613 = vsel %vm549, %v465, %v581
      %v614 = vsel %vm550, %v468, %v582
      %v615 = vsel %vm551, %v473, %v583
      %v616 = vsel %vm552, %v476, %v584
      %v617 = vsel %vm553, %v481, %v585
      %v618 = vsel %vm554, %v484, %v586
      %v619 = vsel %vm555, %v489, %v587
      %v620 = vsel %vm556, %v492, %v588
      %v621 = vsel %vm557, %v497, %v589
      %v622 = vsel %vm558, %v500, %v590
      %v623 = vsel %vm559, %v505, %v591
      %v624 = vsel %vm560, %v508, %v592
      %v625 = vsel %vm561, %v513, %v593
      %v626 = vsel %vm562, %v516, %v594
      %v627 = vsel %vm563, %v521, %v595
      %v628 = vsel %vm564, %v524, %v596
      %v629 = vsel %vm565, %v529, %v597
      %v630 = vsel %vm566, %v532, %v598
      %v631 = vpack.c.bf16 %v600, %v599
      %v632 = vpack.c.bf16 %v602, %v601
      %v633 = vpack.c.bf16 %v604, %v603
      %v634 = vpack.c.bf16 %v606, %v605
      %v635 = vpack.c.bf16 %v608, %v607
      %v636 = vpack.c.bf16 %v610, %v609
      %v637 = vpack.c.bf16 %v612, %v611
      %v638 = vpack.c.bf16 %v614, %v613
      %v639 = vpack.c.bf16 %v616, %v615
      %v640 = vpack.c.bf16 %v618, %v617
      %v641 = vpack.c.bf16 %v620, %v619
      %v642 = vpack.c.bf16 %v622, %v621
      %v643 = vpack.c.bf16 %v624, %v623
      %v644 = vpack.c.bf16 %v626, %v625
      %v645 = vpack.c.bf16 %v628, %v627
      %v646 = vpack.c.bf16 %v630, %v629
      %v663 = vunpack.c.l.b16 %v631
      %v664 = vunpack.c.h.b16 %v631
      %v665 = vunpack.c.l.b16 %v632
      %v666 = vunpack.c.h.b16 %v632
      %v667 = vunpack.c.l.b16 %v633
      %v668 = vunpack.c.h.b16 %v633
      %v669 = vunpack.c.l.b16 %v634
      %v670 = vunpack.c.h.b16 %v634
      %v671 = vunpack.c.l.b16 %v635
      %v672 = vunpack.c.h.b16 %v635
      %v673 = vunpack.c.l.b16 %v636
      %v674 = vunpack.c.h.b16 %v636
      %v675 = vunpack.c.l.b16 %v637
      %v676 = vunpack.c.h.b16 %v637
      %v677 = vunpack.c.l.b16 %v638
      %v678 = vunpack.c.h.b16 %v638
      %v679 = vunpack.c.l.b16 %v639
      %v680 = vunpack.c.h.b16 %v639
      %v681 = vunpack.c.l.b16 %v640
      %v682 = vunpack.c.h.b16 %v640
      %v683 = vunpack.c.l.b16 %v641
      %v684 = vunpack.c.h.b16 %v641
      %v685 = vunpack.c.l.b16 %v642
      %v686 = vunpack.c.h.b16 %v642
      %v687 = vunpack.c.l.b16 %v643
      %v688 = vunpack.c.h.b16 %v643
      %v689 = vunpack.c.l.b16 %v644
      %v690 = vunpack.c.h.b16 %v644
      %v691 = vunpack.c.l.b16 %v645
      %v692 = vunpack.c.h.b16 %v645
      %v693 = vunpack.c.l.b16 %v646
      %v694 = vunpack.c.h.b16 %v646
      %v695 = vpack.c.b16 %v663, %v663
      %v696 = vpack.c.b16 %v664, %v664
      %v697 = vpack.c.b16 %v665, %v665
      %v698 = vpack.c.b16 %v666, %v666
      %v699 = vpack.c.b16 %v667, %v667
      %v700 = vpack.c.b16 %v668, %v668
      %v701 = vpack.c.b16 %v669, %v669
      %v702 = vpack.c.b16 %v670, %v670
      %v703 = vpack.c.b16 %v671, %v671
      %v704 = vpack.c.b16 %v672, %v672
      %v705 = vpack.c.b16 %v673, %v673
      %v706 = vpack.c.b16 %v674, %v674
      %v707 = vpack.c.b16 %v675, %v675
      %v708 = vpack.c.b16 %v676, %v676
      %v709 = vpack.c.b16 %v677, %v677
      %v710 = vpack.c.b16 %v678, %v678
      %v711 = vpack.c.b16 %v679, %v679
      %v712 = vpack.c.b16 %v680, %v680
      %v713 = vpack.c.b16 %v681, %v681
      %v714 = vpack.c.b16 %v682, %v682
      %v715 = vpack.c.b16 %v683, %v683
      %v716 = vpack.c.b16 %v684, %v684
      %v717 = vpack.c.b16 %v685, %v685
      %v718 = vpack.c.b16 %v686, %v686
      %v719 = vpack.c.b16 %v687, %v687
      %v720 = vpack.c.b16 %v688, %v688
      %v721 = vpack.c.b16 %v689, %v689
      %v722 = vpack.c.b16 %v690, %v690
      %v723 = vpack.c.b16 %v691, %v691
      %v724 = vpack.c.b16 %v692, %v692
      %v725 = vpack.c.b16 %v693, %v693
      %v726 = vpack.c.b16 %v694, %v694
      %759 = vst [vmem:[%s172] sm:$0xf] %v695
      %760 = vst [vmem:[%s172 + $0x4] sm:$0xf] %v696
      %761 = vst [vmem:[%s172 + $0x8] sm:$0xf] %v697
      %762 = vst [vmem:[%s172 + $0xc] sm:$0xf] %v698
      %763 = vst [vmem:[%s172 + $0x10] sm:$0xf] %v699
      %764 = vst [vmem:[%s172 + $0x14] sm:$0xf] %v700
      %765 = vst [vmem:[%s172 + $0x18] sm:$0xf] %v701
      %766 = vst [vmem:[%s172 + $0x1c] sm:$0xf] %v702
      %767 = vst [vmem:[%s172 + $0x20] sm:$0xf] %v703
      %768 = vst [vmem:[%s172 + $0x24] sm:$0xf] %v704
      %769 = vst [vmem:[%s172 + $0x28] sm:$0xf] %v705
      %770 = vst [vmem:[%s172 + $0x2c] sm:$0xf] %v706
      %771 = vst [vmem:[%s172 + $0x30] sm:$0xf] %v707
      %772 = vst [vmem:[%s172 + $0x34] sm:$0xf] %v708
      %773 = vst [vmem:[%s172 + $0x38] sm:$0xf] %v709
      %774 = vst [vmem:[%s172 + $0x3c] sm:$0xf] %v710
      %775 = vst [vmem:[%s172 + $0x40] sm:$0xf] %v711
      %776 = vst [vmem:[%s172 + $0x44] sm:$0xf] %v712
      %777 = vst [vmem:[%s172 + $0x48] sm:$0xf] %v713
      %778 = vst [vmem:[%s172 + $0x4c] sm:$0xf] %v714
      %779 = vst [vmem:[%s172 + $0x50] sm:$0xf] %v715
      %780 = vst [vmem:[%s172 + $0x54] sm:$0xf] %v716
      %781 = vst [vmem:[%s172 + $0x58] sm:$0xf] %v717
      %782 = vst [vmem:[%s172 + $0x5c] sm:$0xf] %v718
      %783 = vst [vmem:[%s172 + $0x60] sm:$0xf] %v719
      %784 = vst [vmem:[%s172 + $0x64] sm:$0xf] %v720
      %785 = vst [vmem:[%s172 + $0x68] sm:$0xf] %v721
      %786 = vst [vmem:[%s172 + $0x6c] sm:$0xf] %v722
      %787 = vst [vmem:[%s172 + $0x70] sm:$0xf] %v723
      %788 = vst [vmem:[%s172 + $0x74] sm:$0xf] %v724
      %789 = vst [vmem:[%s172 + $0x78] sm:$0xf] %v725
      %790 = vst [vmem:[%s172 + $0x7c] sm:$0xf] %v726
      %s791 = smul.u32 32, %s14
      %p792 = scmp.lt.s32.totalorder %s791, 63
      %s793 = scalar_select %p792, %s791, 63
      %s794 = smul.addr %s793, 4
      %s795 = scalar_lea.vmem %s3, %s794
      // Predicated region
      $region33: #{discriminator_forward.10} parent=31 // pred_check
        %p796 = pneg %p100
      $region34: #{discriminator_forward.10} parent=31 // pred_check_branch
        %798 = sbr.rel (%p796) target = $region36
      $region35: #{discriminator_forward.10} parent=31 // pred_region
        %s799 = smul.u32 32, %s14
      $region36: #{discriminator_forward.10} parent=31 // pred_fallthru
        _
    $region32: #{discriminator_forward.10} parent=5 // pred_fallthru
      _
    %p800 = scmp.le.s32.totalorder 2, %s9
    // Predicated region
    $region37: #{discriminator_forward.10} parent=5 // pred_check
      %p801 = pneg %p800
    $region38: #{discriminator_forward.10} parent=5 // pred_check_branch
      %803 = sbr.rel (%p801) target = $region40
    $region39: #{discriminator_forward.10} parent=5 // pred_region
      %s804 = ssub.s32 %s9, 2
      // Predicated region
      $region41: #{discriminator_forward.10} parent=39 // pred_check
        %p805 = pneg %p106
      $region42: #{discriminator_forward.10} parent=39 // pred_check_branch
        %807 = sbr.rel (%p805) target = $region44
      $region43: #{discriminator_forward.10} parent=39 // pred_region
        %s808 = smul.u32 32, %s15
        %p809 = scmp.lt.s32.totalorder %s808, 63
        %s810 = scalar_select %p809, %s808, 63
        %s811 = smul.addr %s810, 4
        %s812 = scalar_lea.vmem %s3, %s811
      $region44: #{discriminator_forward.10} parent=39 // pred_fallthru
        _
    $region40: #{discriminator_forward.10} parent=5 // pred_fallthru
      _
  $region6: #{discriminator_forward.10} parent=0 // loop_footer
    %s13 = sadd.s32 1, %s9
  $region7: #{discriminator_forward.10} parent=0 // loop_footer_branch
    %8 = sbr.rel target = $region3
  $region8: #{discriminator_forward.10} parent=0 // loop_exit
    _

// kernel: discriminator_forward.12
$region0: #{discriminator_forward.12}
  #allocation0 [shape = 'u32[]', space=smem, size = 0x4, offset = 0x4, fixed_abs, tag = 'smem constant byte address 0x4 - core index']
  #allocation1 [shape = 'u32[144,128]{1,0:T(1,128)}', space=vmem, size = 0x12000, scoped, tag = 'internal scratch']
  %s0 = inlined_call_operand.vmem [shape: bf16[128,256], index: 0, kind: input, shape index: {}]
  %s1 = inlined_call_operand.vmem [shape: bf16[256,128], index: 1, kind: input, shape index: {}]
  %s2 = inlined_call_operand.vmem [shape: f32[1,128], index: 2, kind: input, shape index: {}]
  %s3 = inlined_call_operand.vmem [shape: bf16[128,128], index: 3, kind: output, shape index: {}]
  %s4 = sld [smem:[#allocation0]]
  $region45: #{discriminator_forward.12} parent=0
    _
  %s6 = ssub.s32 1, %s4
  %s7 = scalar_select 0, %s6, %s4
  loop: start=0, step=1, limit=4
  $region2: #{discriminator_forward.12} parent=0 // loop_pre_header
    _
  $region3: #{discriminator_forward.12} parent=0 // loop_header
    %s9 = sphi 0, %s13
    %p10 = scmp.ge.s32.totalorder %s9, 4
    %s19 = sphi 0, %s21
    %s22 = sphi 0, %s19
    %s23 = sphi 0, %s22
    %s39 = sphi 0, %s23
    %s43 = sphi 0, %s43
    %s45 = sphi 0, %s43
    %s46 = sphi 0, %s45
    %s60 = sphi 0, %s46
    %s64 = sphi 0, %s64
    %s66 = sphi 0, %s64
    %s67 = sphi 0, %s66
    %s81 = sphi 0, %s67
    %s87 = sphi 0, %s89
    %s90 = sphi 0, %s87
    %s91 = sphi 0, %s90
    %s107 = sphi 0, %s91
  $region4: #{discriminator_forward.12} parent=0 // loop_header_branch
    %12 = sbr.rel (%p10) target = $region8
  $region5: #{discriminator_forward.12} parent=0 // loop_body
    %s14 = ssub.s32 %s9, 1
    %s15 = ssub.s32 %s9, 2
    %s16 = sadd.s32 %s9, 1
    %s17 = ssub.s32 %s9, %s16
    %p18 = scmp.eq.s32.totalorder %s17, 0
    %s20 = sadd.s32 %s19, 1
    %s21 = scalar_select %p18, %s19, %s20
    %p24 = pneg %p18
    %p25 = scmp.eq.s32.totalorder %s9, 1
    %p26 = por %p24, %p25
    %p27 = scmp.ne.s32.totalorder %s19, %s22
    %p28 = scmp.eq.s32.totalorder %s9, 0
    %p29 = por %p27, %p28
    %p30 = scmp.ne.s32.totalorder %s19, %s22
    %p31 = scmp.eq.s32.totalorder %s14, 1
    %p32 = por %p30, %p31
    %p33 = scmp.ne.s32.totalorder %s22, %s23
    %p34 = scmp.eq.s32.totalorder %s14, 0
    %p35 = por %p33, %p34
    %p36 = scmp.ne.s32.totalorder %s22, %s23
    %p37 = scmp.eq.s32.totalorder %s15, 1
    %p38 = por %p36, %p37
    %p40 = scmp.ne.s32.totalorder %s23, %s39
    %p41 = scmp.eq.s32.totalorder %s15, 0
    %p42 = por %p40, %p41
    %s44 = sadd.s32 %s43, 1
    %p47 = scmp.eq.s32.totalorder %s9, 1
    %p48 = scmp.ne.s32.totalorder %s43, %s45
    %p49 = scmp.eq.s32.totalorder %s9, 0
    %p50 = por %p48, %p49
    %p51 = scmp.ne.s32.totalorder %s43, %s45
    %p52 = scmp.eq.s32.totalorder %s14, 1
    %p53 = por %p51, %p52
    %p54 = scmp.ne.s32.totalorder %s45, %s46
    %p55 = scmp.eq.s32.totalorder %s14, 0
    %p56 = por %p54, %p55
    %p57 = scmp.ne.s32.totalorder %s45, %s46
    %p58 = scmp.eq.s32.totalorder %s15, 1
    %p59 = por %p57, %p58
    %p61 = scmp.ne.s32.totalorder %s46, %s60
    %p62 = scmp.eq.s32.totalorder %s15, 0
    %p63 = por %p61, %p62
    %s65 = sadd.s32 %s64, 1
    %p68 = scmp.eq.s32.totalorder %s9, 1
    %p69 = scmp.ne.s32.totalorder %s64, %s66
    %p70 = scmp.eq.s32.totalorder %s9, 0
    %p71 = por %p69, %p70
    %p72 = scmp.ne.s32.totalorder %s64, %s66
    %p73 = scmp.eq.s32.totalorder %s14, 1
    %p74 = por %p72, %p73
    %p75 = scmp.ne.s32.totalorder %s66, %s67
    %p76 = scmp.eq.s32.totalorder %s14, 0
    %p77 = por %p75, %p76
    %p78 = scmp.ne.s32.totalorder %s66, %s67
    %p79 = scmp.eq.s32.totalorder %s15, 1
    %p80 = por %p78, %p79
    %p82 = scmp.ne.s32.totalorder %s67, %s81
    %p83 = scmp.eq.s32.totalorder %s15, 0
    %p84 = por %p82, %p83
    %s85 = ssub.s32 %s9, %s16
    %p86 = scmp.eq.s32.totalorder %s85, 0
    %s88 = sadd.s32 %s87, 1
    %s89 = scalar_select %p86, %s87, %s88
    %p92 = pneg %p86
    %p93 = scmp.eq.s32.totalorder %s9, 1
    %p94 = por %p92, %p93
    %p95 = scmp.ne.s32.totalorder %s87, %s90
    %p96 = scmp.eq.s32.totalorder %s9, 0
    %p97 = por %p95, %p96
    %p98 = scmp.ne.s32.totalorder %s87, %s90
    %p99 = scmp.eq.s32.totalorder %s14, 1
    %p100 = por %p98, %p99
    %p101 = scmp.ne.s32.totalorder %s90, %s91
    %p102 = scmp.eq.s32.totalorder %s14, 0
    %p103 = por %p101, %p102
    %p104 = scmp.ne.s32.totalorder %s90, %s91
    %p105 = scmp.eq.s32.totalorder %s15, 1
    %p106 = por %p104, %p105
    %p108 = scmp.ne.s32.totalorder %s91, %s107
    %p109 = scmp.eq.s32.totalorder %s15, 0
    %p110 = por %p108, %p109
    %p111 = scmp.le.s32.totalorder 1, %s9
    %p112 = scmp.lt.s32.totalorder %s9, 3
    %p113 = pnand %p111, %p112
    %p114 = pneg %p113
    // Predicated region
    $region9: #{discriminator_forward.12} parent=5 // pred_check
      _
    $region10: #{discriminator_forward.12} parent=5 // pred_check_branch
      %116 = sbr.rel (%p113) target = $region12
    $region11: #{discriminator_forward.12} parent=5 // pred_region
      %s117 = ssub.s32 %s9, 1
      // Predicated region
      $region13: #{discriminator_forward.12} parent=11 // pred_check
        %p118 = pneg %p56
      $region14: #{discriminator_forward.12} parent=11 // pred_check_branch
        %120 = sbr.rel (%p118) target = $region16
      $region15: #{discriminator_forward.12} parent=11 // pred_region
        _
      $region16: #{discriminator_forward.12} parent=11 // pred_fallthru
        _
      // Predicated region
      $region17: #{discriminator_forward.12} parent=11 // pred_check
        %p121 = pneg %p77
      $region18: #{discriminator_forward.12} parent=11 // pred_check_branch
        %123 = sbr.rel (%p121) target = $region20
      $region19: #{discriminator_forward.12} parent=11 // pred_region
        _
      $region20: #{discriminator_forward.12} parent=11 // pred_fallthru
        _
    $region12: #{discriminator_forward.12} parent=5 // pred_fallthru
      _
    %p124 = scmp.lt.s32.totalorder %s9, 2
    // Predicated region
    $region21: #{discriminator_forward.12} parent=5 // pred_check
      %p125 = pneg %p124
    $region22: #{discriminator_forward.12} parent=5 // pred_check_branch
      %127 = sbr.rel (%p125) target = $region24
    $region23: #{discriminator_forward.12} parent=5 // pred_region
      // Predicated region
      $region25: #{discriminator_forward.12} parent=23 // pred_check
        %p128 = pneg %p29
      $region26: #{discriminator_forward.12} parent=23 // pred_check_branch
        %130 = sbr.rel (%p128) target = $region28
      $region27: #{discriminator_forward.12} parent=23 // pred_region
        %s131 = smul.u32 8, %s9
        %p132 = scmp.lt.s32.totalorder %s131, 15
        %s133 = scalar_select %p132, %s131, 15
        %s134 = smul.addr %s133, 2
        %s135 = smul.addr %s134, 4
        %s136 = scalar_lea.vmem %s0, %s135
        %s137 = smul.u32 8, %s9
      $region28: #{discriminator_forward.12} parent=23 // pred_fallthru
        _
    $region24: #{discriminator_forward.12} parent=5 // pred_fallthru
      _
    %p138 = scmp.le.s32.totalorder 1, %s9
    %p139 = scmp.lt.s32.totalorder %s9, 3
    %p140 = pnand %p138, %p139
    %p141 = pneg %p140
    // Predicated region
    $region29: #{discriminator_forward.12} parent=5 // pred_check
      _
    $region30: #{discriminator_forward.12} parent=5 // pred_check_branch
      %143 = sbr.rel (%p140) target = $region32
    $region31: #{discriminator_forward.12} parent=5 // pred_region
      %s144 = ssub.s32 %s9, 1
      %s145 = smul.u32 8, %s14
      %p146 = scmp.lt.s32.totalorder %s145, 15
      %s147 = scalar_select %p146, %s145, 15
      %s148 = smul.addr %s147, 2
      %s149 = smul.addr %s148, 4
      %s150 = scalar_lea.vmem %s0, %s149
      %p151 = pneg %p35
      %p152 = pneg %p32
      %p153 = pneg %p56
      %p154 = pneg %p53
      %p155 = pneg %p77
      %p156 = pneg %p74
      %p157 = pneg %p103
      %p158 = pneg %p100
      %s159 = smul.u32 8, %s14
      %p160 = scmp.lt.s32.totalorder %s159, 15
      %s161 = scalar_select %p160, %s159, 15
      %s162 = smul.addr %s161, 4
      %s163 = scalar_lea.vmem %s3, %s162
      %s164 = smul.u32 8, %s14
      %p165 = scmp.lt.s32.totalorder %s164, 15
      %s166 = scalar_select %p165, %s164, 15
      %s167 = smul.addr %s166, 2
      %s168 = smul.addr %s167, 4
      %s169 = scalar_lea.vmem %s0, %s168
      %s170 = smul.u32 8, %s14
      %s171 = smul.u32 8, %s14
      %p172 = scmp.lt.s32.totalorder %s171, 15
      %s173 = scalar_select %p172, %s171, 15
      %s174 = smul.addr %s173, 4
      %s175 = scalar_lea.vmem %s3, %s174
      %s176 = smul.u32 8, %s14
      %v178 = vld [vmem:[%s169] sm:$0xff]
      %v179 = vld [vmem:[%s169 + $0x8] sm:$0xff]
      %v180 = vld [vmem:[%s169 + $0x10] sm:$0xff]
      %v181 = vld [vmem:[%s169 + $0x18] sm:$0xff]
      %v182 = vld [vmem:[%s169 + $0x20] sm:$0xff]
      %v183 = vld [vmem:[%s169 + $0x28] sm:$0xff]
      %v184 = vld [vmem:[%s169 + $0x30] sm:$0xff]
      %v185 = vld [vmem:[%s169 + $0x38] sm:$0xff]
      %v186 = vld [vmem:[%s1] sm:$0xf]
      %v187 = vld [vmem:[%s1 + $0x4] sm:$0xf]
      %v188 = vld [vmem:[%s1 + $0x8] sm:$0xf]
      %v189 = vld [vmem:[%s1 + $0xc] sm:$0xf]
      %v190 = vld [vmem:[%s1 + $0x10] sm:$0xf]
      %v191 = vld [vmem:[%s1 + $0x14] sm:$0xf]
      %v192 = vld [vmem:[%s1 + $0x18] sm:$0xf]
      %v193 = vld [vmem:[%s1 + $0x1c] sm:$0xf]
      %v194 = vld [vmem:[%s1 + $0x20] sm:$0xf]
      %v195 = vld [vmem:[%s1 + $0x24] sm:$0xf]
      %v196 = vld [vmem:[%s1 + $0x28] sm:$0xf]
      %v197 = vld [vmem:[%s1 + $0x2c] sm:$0xf]
      %v198 = vld [vmem:[%s1 + $0x30] sm:$0xf]
      %v199 = vld [vmem:[%s1 + $0x34] sm:$0xf]
      %v200 = vld [vmem:[%s1 + $0x38] sm:$0xf]
      %v201 = vld [vmem:[%s1 + $0x3c] sm:$0xf]
      %v202 = vld [vmem:[%s1 + $0x40] sm:$0xf]
      %v203 = vld [vmem:[%s1 + $0x44] sm:$0xf]
      %v204 = vld [vmem:[%s1 + $0x48] sm:$0xf]
      %v205 = vld [vmem:[%s1 + $0x4c] sm:$0xf]
      %v206 = vld [vmem:[%s1 + $0x50] sm:$0xf]
      %v207 = vld [vmem:[%s1 + $0x54] sm:$0xf]
      %v208 = vld [vmem:[%s1 + $0x58] sm:$0xf]
      %v209 = vld [vmem:[%s1 + $0x5c] sm:$0xf]
      %v210 = vld [vmem:[%s1 + $0x60] sm:$0xf]
      %v211 = vld [vmem:[%s1 + $0x64] sm:$0xf]
      %v212 = vld [vmem:[%s1 + $0x68] sm:$0xf]
      %v213 = vld [vmem:[%s1 + $0x6c] sm:$0xf]
      %v214 = vld [vmem:[%s1 + $0x70] sm:$0xf]
      %v215 = vld [vmem:[%s1 + $0x74] sm:$0xf]
      %v216 = vld [vmem:[%s1 + $0x78] sm:$0xf]
      %v217 = vld [vmem:[%s1 + $0x7c] sm:$0xf]
      %v218 = vld [vmem:[%s2] sm:$0x1]
      %v220 = vlaneseq
      %v221 = vshrl.u32 %v220, 7
      %v222 = vsub.s32 0, %v221
      %v223 = vrot.slane %v218, %v222
      %v233 = vunpack.c.l.b16 %v178
      %v234 = vunpack.c.h.b16 %v178
      %v235 = vunpack.c.l.b16 %v179
      %v236 = vunpack.c.h.b16 %v179
      %v237 = vunpack.c.l.b16 %v180
      %v238 = vunpack.c.h.b16 %v180
      %v239 = vunpack.c.l.b16 %v181
      %v240 = vunpack.c.h.b16 %v181
      %v241 = vunpack.c.l.b16 %v182
      %v242 = vunpack.c.h.b16 %v182
      %v243 = vunpack.c.l.b16 %v183
      %v244 = vunpack.c.h.b16 %v183
      %v245 = vunpack.c.l.b16 %v184
      %v246 = vunpack.c.h.b16 %v184
      %v247 = vunpack.c.l.b16 %v185
      %v248 = vunpack.c.h.b16 %v185
      %v249 = vpack.c.b16 %v235, %v233
      %v250 = vpack.c.b16 %v236, %v234
      %v251 = vpack.c.b16 %v239, %v237
      %v252 = vpack.c.b16 %v240, %v238
      %v253 = vpack.c.b16 %v243, %v241
      %v254 = vpack.c.b16 %v244, %v242
      %v255 = vpack.c.b16 %v247, %v245
      %v256 = vpack.c.b16 %v248, %v246
      %v297 = vunpack.c.l.b16 %v186
      %v298 = vunpack.c.l.b16 %v187
      %v299 = vunpack.c.l.b16 %v188
      %v300 = vunpack.c.l.b16 %v189
      %v301 = vunpack.c.l.b16 %v190
      %v302 = vunpack.c.l.b16 %v191
      %v303 = vunpack.c.l.b16 %v192
      %v304 = vunpack.c.l.b16 %v193
      %v305 = vunpack.c.l.b16 %v194
      %v306 = vunpack.c.l.b16 %v195
      %v307 = vunpack.c.l.b16 %v196
      %v308 = vunpack.c.l.b16 %v197
      %v309 = vunpack.c.l.b16 %v198
      %v310 = vunpack.c.l.b16 %v199
      %v311 = vunpack.c.l.b16 %v200
      %v312 = vunpack.c.l.b16 %v201
      %v313 = vunpack.c.l.b16 %v202
      %v314 = vunpack.c.l.b16 %v203
      %v315 = vunpack.c.l.b16 %v204
      %v316 = vunpack.c.l.b16 %v205
      %v317 = vunpack.c.l.b16 %v206
      %v318 = vunpack.c.l.b16 %v207
      %v319 = vunpack.c.l.b16 %v208
      %v320 = vunpack.c.l.b16 %v209
      %v321 = vunpack.c.l.b16 %v210
      %v322 = vunpack.c.l.b16 %v211
      %v323 = vunpack.c.l.b16 %v212
      %v324 = vunpack.c.l.b16 %v213
      %v325 = vunpack.c.l.b16 %v214
      %v326 = vunpack.c.l.b16 %v215
      %v327 = vunpack.c.l.b16 %v216
      %v328 = vunpack.c.l.b16 %v217
      %v329 = vpack.c.b16 %v298, %v297
      %v330 = vpack.c.b16 %v300, %v299
      %v331 = vpack.c.b16 %v302, %v301
      %v332 = vpack.c.b16 %v304, %v303
      %v333 = vpack.c.b16 %v306, %v305
      %v334 = vpack.c.b16 %v308, %v307
      %v335 = vpack.c.b16 %v310, %v309
      %v336 = vpack.c.b16 %v312, %v311
      %v337 = vpack.c.b16 %v314, %v313
      %v338 = vpack.c.b16 %v316, %v315
      %v339 = vpack.c.b16 %v318, %v317
      %v340 = vpack.c.b16 %v320, %v319
      %v341 = vpack.c.b16 %v322, %v321
      %v342 = vpack.c.b16 %v324, %v323
      %v343 = vpack.c.b16 %v326, %v325
      %v344 = vpack.c.b16 %v328, %v327
      %361 = vmatprep.subr.bf16.mxu0 0
      %362 = vmatpush1.bf16.msra.mxu0 %v329
      %363 = vmatprep.subr.bf16.mxu0 0
      %364 = vmatpush1.bf16.msra.mxu0 %v330
      %365 = vmatprep.subr.bf16.mxu0 0
      %366 = vmatpush1.bf16.msra.mxu0 %v331
      %367 = vmatprep.subr.bf16.mxu0 0
      %368 = vmatpush1.bf16.msra.mxu0 %v332
      %369 = vmatprep.subr.bf16.mxu0 0
      %370 = vmatpush1.bf16.msra.mxu0 %v333
      %371 = vmatprep.subr.bf16.mxu0 0
      %372 = vmatpush1.bf16.msra.mxu0 %v334
      %373 = vmatprep.subr.bf16.mxu0 0
      %374 = vmatpush1.bf16.msra.mxu0 %v335
      %375 = vmatprep.subr.bf16.mxu0 0
      %376 = vmatpush1.bf16.msra.mxu0 %v336
      %377 = vmatprep.subr.bf16.mxu0 0
      %378 = vmatpush1.bf16.msra.mxu0 %v337
      %379 = vmatprep.subr.bf16.mxu0 0
      %380 = vmatpush1.bf16.msra.mxu0 %v338
      %381 = vmatprep.subr.bf16.mxu0 0
      %382 = vmatpush1.bf16.msra.mxu0 %v339
      %383 = vmatprep.subr.bf16.mxu0 0
      %384 = vmatpush1.bf16.msra.mxu0 %v340
      %385 = vmatprep.subr.bf16.mxu0 0
      %386 = vmatpush1.bf16.msra.mxu0 %v341
      %387 = vmatprep.subr.bf16.mxu0 0
      %388 = vmatpush1.bf16.msra.mxu0 %v342
      %389 = vmatprep.subr.bf16.mxu0 0
      %390 = vmatpush1.bf16.msra.mxu0 %v343
      %391 = vmatprep.subr.bf16.mxu0 0
      %392 = vmatpush1.bf16.msra.mxu0 %v344
      %393 = vmatprep.mubr.bf16.mxu0 %v250
      %394 = vmatmul.mubr.bf16.gmra.mrb[0].mxu0 %v249
      %v395 = vpop.f32.mrb[0].mxu0
      %v396 = vadd.f32 %v223, %v395
      %v397 = vpop.f32.mrb[0].mxu0
      %v398 = vpop.f32.mrb[0].mxu0
      %v399 = vadd.f32 %v223, %v398
      %v400 = vpop.f32.mrb[0].mxu0
      %401 = vmatprep.mubr.bf16.mxu0 %v252
      %402 = vmatmul.mubr.bf16.gmra.mrb[0].mxu0 %v251
      %v403 = vpop.f32.mrb[0].mxu0
      %v404 = vadd.f32 %v223, %v403
      %v405 = vpop.f32.mrb[0].mxu0
      %v406 = vpop.f32.mrb[0].mxu0
      %v407 = vadd.f32 %v223, %v406
      %v408 = vpop.f32.mrb[0].mxu0
      %409 = vmatprep.mubr.bf16.mxu0 %v254
      %410 = vmatmul.mubr.bf16.gmra.mrb[0].mxu0 %v253
      %v411 = vpop.f32.mrb[0].mxu0
      %v412 = vadd.f32 %v223, %v411
      %v413 = vpop.f32.mrb[0].mxu0
      %v414 = vpop.f32.mrb[0].mxu0
      %v415 = vadd.f32 %v223, %v414
      %v416 = vpop.f32.mrb[0].mxu0
      %417 = vmatprep.mubr.bf16.mxu0 %v256
      %418 = vmatmul.mubr.bf16.gmra.mrb[0].mxu0 %v255
      %v419 = vpop.f32.mrb[0].mxu0
      %v420 = vadd.f32 %v223, %v419
      %v421 = vpop.f32.mrb[0].mxu0
      %v422 = vpop.f32.mrb[0].mxu0
      %v423 = vadd.f32 %v223, %v422
      %v424 = vpop.f32.mrb[0].mxu0
      %425 = vdwg.mxu0
      %vm426 = vcmp.ge.f32.partialorder %v396, 0.0
      %vm427 = vcmp.ge.f32.partialorder %v399, 0.0
      %vm428 = vcmp.ge.f32.partialorder %v404, 0.0
      %vm429 = vcmp.ge.f32.partialorder %v407, 0.0
      %vm430 = vcmp.ge.f32.partialorder %v412, 0.0
      %vm431 = vcmp.ge.f32.partialorder %v415, 0.0
      %vm432 = vcmp.ge.f32.partialorder %v420, 0.0
      %vm433 = vcmp.ge.f32.partialorder %v423, 0.0
      %v434 = vmul.f32 %v396, 0.01
      %v435 = vmul.f32 %v399, 0.01
      %v436 = vmul.f32 %v404, 0.01
      %v437 = vmul.f32 %v407, 0.01
      %v438 = vmul.f32 %v412, 0.01
      %v439 = vmul.f32 %v415, 0.01
      %v440 = vmul.f32 %v420, 0.01
      %v441 = vmul.f32 %v423, 0.01
      %v442 = vsel %vm426, %v396, %v434
      %v443 = vsel %vm427, %v399, %v435
      %v444 = vsel %vm428, %v404, %v436
      %v445 = vsel %vm429, %v407, %v437
      %v446 = vsel %vm430, %v412, %v438
      %v447 = vsel %vm431, %v415, %v439
      %v448 = vsel %vm432, %v420, %v440
      %v449 = vsel %vm433, %v423, %v441
      %v450 = vpack.c.bf16 %v443, %v442
      %v451 = vpack.c.bf16 %v445, %v444
      %v452 = vpack.c.bf16 %v447, %v446
      %v453 = vpack.c.bf16 %v449, %v448
      %v458 = vunpack.c.l.b16 %v450
      %v459 = vunpack.c.h.b16 %v450
      %v460 = vunpack.c.l.b16 %v451
      %v461 = vunpack.c.h.b16 %v451
      %v462 = vunpack.c.l.b16 %v452
      %v463 = vunpack.c.h.b16 %v452
      %v464 = vunpack.c.l.b16 %v453
      %v465 = vunpack.c.h.b16 %v453
      %v466 = vpack.c.b16 %v458, %v458
      %v467 = vpack.c.b16 %v459, %v459
      %v468 = vpack.c.b16 %v460, %v460
      %v469 = vpack.c.b16 %v461, %v461
      %v470 = vpack.c.b16 %v462, %v462
      %v471 = vpack.c.b16 %v463, %v463
      %v472 = vpack.c.b16 %v464, %v464
      %v473 = vpack.c.b16 %v465, %v465
      %482 = vst [vmem:[%s175] sm:$0xf] %v466
      %483 = vst [vmem:[%s175 + $0x4] sm:$0xf] %v467
      %484 = vst [vmem:[%s175 + $0x8] sm:$0xf] %v468
      %485 = vst [vmem:[%s175 + $0xc] sm:$0xf] %v469
      %486 = vst [vmem:[%s175 + $0x10] sm:$0xf] %v470
      %487 = vst [vmem:[%s175 + $0x14] sm:$0xf] %v471
      %488 = vst [vmem:[%s175 + $0x18] sm:$0xf] %v472
      %489 = vst [vmem:[%s175 + $0x1c] sm:$0xf] %v473
      %s490 = smul.u32 8, %s14
      %p491 = scmp.lt.s32.totalorder %s490, 15
      %s492 = scalar_select %p491, %s490, 15
      %s493 = smul.addr %s492, 4
      %s494 = scalar_lea.vmem %s3, %s493
      // Predicated region
      $region33: #{discriminator_forward.12} parent=31 // pred_check
        %p495 = pneg %p100
      $region34: #{discriminator_forward.12} parent=31 // pred_check_branch
        %497 = sbr.rel (%p495) target = $region36
      $region35: #{discriminator_forward.12} parent=31 // pred_region
        %s498 = smul.u32 8, %s14
      $region36: #{discriminator_forward.12} parent=31 // pred_fallthru
        _
    $region32: #{discriminator_forward.12} parent=5 // pred_fallthru
      _
    %p499 = scmp.le.s32.totalorder 2, %s9
    // Predicated region
    $region37: #{discriminator_forward.12} parent=5 // pred_check
      %p500 = pneg %p499
    $region38: #{discriminator_forward.12} parent=5 // pred_check_branch
      %502 = sbr.rel (%p500) target = $region40
    $region39: #{discriminator_forward.12} parent=5 // pred_region
      %s503 = ssub.s32 %s9, 2
      // Predicated region
      $region41: #{discriminator_forward.12} parent=39 // pred_check
        %p504 = pneg %p106
      $region42: #{discriminator_forward.12} parent=39 // pred_check_branch
        %506 = sbr.rel (%p504) target = $region44
      $region43: #{discriminator_forward.12} parent=39 // pred_region
        %s507 = smul.u32 8, %s15
        %p508 = scmp.lt.s32.totalorder %s507, 15
        %s509 = scalar_select %p508, %s507, 15
        %s510 = smul.addr %s509, 4
        %s511 = scalar_lea.vmem %s3, %s510
      $region44: #{discriminator_forward.12} parent=39 // pred_fallthru
        _
    $region40: #{discriminator_forward.12} parent=5 // pred_fallthru
      _
  $region6: #{discriminator_forward.12} parent=0 // loop_footer
    %s13 = sadd.s32 1, %s9
  $region7: #{discriminator_forward.12} parent=0 // loop_footer_branch
    %8 = sbr.rel target = $region3
  $region8: #{discriminator_forward.12} parent=0 // loop_exit
    _

// kernel: discriminator_forward.14
$region0: #{discriminator_forward.14}
  #allocation0 [shape = 'u32[]', space=smem, size = 0x4, offset = 0x4, fixed_abs, tag = 'smem constant byte address 0x4 - core index']
  #allocation1 [shape = 'u32[144,128]{1,0:T(1,128)}', space=vmem, size = 0x12000, scoped, tag = 'internal scratch']
  %s0 = inlined_call_operand.vmem [shape: bf16[32,384], index: 0, kind: input, shape index: {}]
  %s1 = inlined_call_operand.vmem [shape: bf16[384,128], index: 1, kind: input, shape index: {}]
  %s2 = inlined_call_operand.vmem [shape: f32[1,128], index: 2, kind: input, shape index: {}]
  %s3 = inlined_call_operand.vmem [shape: bf16[32,128], index: 3, kind: output, shape index: {}]
  %s4 = sld [smem:[#allocation0]]
  $region45: #{discriminator_forward.14} parent=0
    _
  %s6 = ssub.s32 1, %s4
  %s7 = scalar_select 0, %s6, %s4
  loop: start=0, step=1, limit=4
  $region2: #{discriminator_forward.14} parent=0 // loop_pre_header
    _
  $region3: #{discriminator_forward.14} parent=0 // loop_header
    %s9 = sphi 0, %s13
    %p10 = scmp.ge.s32.totalorder %s9, 4
    %s19 = sphi 0, %s21
    %s22 = sphi 0, %s19
    %s23 = sphi 0, %s22
    %s39 = sphi 0, %s23
    %s43 = sphi 0, %s43
    %s45 = sphi 0, %s43
    %s46 = sphi 0, %s45
    %s60 = sphi 0, %s46
    %s64 = sphi 0, %s64
    %s66 = sphi 0, %s64
    %s67 = sphi 0, %s66
    %s81 = sphi 0, %s67
    %s87 = sphi 0, %s89
    %s90 = sphi 0, %s87
    %s91 = sphi 0, %s90
    %s107 = sphi 0, %s91
  $region4: #{discriminator_forward.14} parent=0 // loop_header_branch
    %12 = sbr.rel (%p10) target = $region8
  $region5: #{discriminator_forward.14} parent=0 // loop_body
    %s14 = ssub.s32 %s9, 1
    %s15 = ssub.s32 %s9, 2
    %s16 = sadd.s32 %s9, 1
    %s17 = ssub.s32 %s9, %s16
    %p18 = scmp.eq.s32.totalorder %s17, 0
    %s20 = sadd.s32 %s19, 1
    %s21 = scalar_select %p18, %s19, %s20
    %p24 = pneg %p18
    %p25 = scmp.eq.s32.totalorder %s9, 1
    %p26 = por %p24, %p25
    %p27 = scmp.ne.s32.totalorder %s19, %s22
    %p28 = scmp.eq.s32.totalorder %s9, 0
    %p29 = por %p27, %p28
    %p30 = scmp.ne.s32.totalorder %s19, %s22
    %p31 = scmp.eq.s32.totalorder %s14, 1
    %p32 = por %p30, %p31
    %p33 = scmp.ne.s32.totalorder %s22, %s23
    %p34 = scmp.eq.s32.totalorder %s14, 0
    %p35 = por %p33, %p34
    %p36 = scmp.ne.s32.totalorder %s22, %s23
    %p37 = scmp.eq.s32.totalorder %s15, 1
    %p38 = por %p36, %p37
    %p40 = scmp.ne.s32.totalorder %s23, %s39
    %p41 = scmp.eq.s32.totalorder %s15, 0
    %p42 = por %p40, %p41
    %s44 = sadd.s32 %s43, 1
    %p47 = scmp.eq.s32.totalorder %s9, 1
    %p48 = scmp.ne.s32.totalorder %s43, %s45
    %p49 = scmp.eq.s32.totalorder %s9, 0
    %p50 = por %p48, %p49
    %p51 = scmp.ne.s32.totalorder %s43, %s45
    %p52 = scmp.eq.s32.totalorder %s14, 1
    %p53 = por %p51, %p52
    %p54 = scmp.ne.s32.totalorder %s45, %s46
    %p55 = scmp.eq.s32.totalorder %s14, 0
    %p56 = por %p54, %p55
    %p57 = scmp.ne.s32.totalorder %s45, %s46
    %p58 = scmp.eq.s32.totalorder %s15, 1
    %p59 = por %p57, %p58
    %p61 = scmp.ne.s32.totalorder %s46, %s60
    %p62 = scmp.eq.s32.totalorder %s15, 0
    %p63 = por %p61, %p62
    %s65 = sadd.s32 %s64, 1
    %p68 = scmp.eq.s32.totalorder %s9, 1
    %p69 = scmp.ne.s32.totalorder %s64, %s66
    %p70 = scmp.eq.s32.totalorder %s9, 0
    %p71 = por %p69, %p70
    %p72 = scmp.ne.s32.totalorder %s64, %s66
    %p73 = scmp.eq.s32.totalorder %s14, 1
    %p74 = por %p72, %p73
    %p75 = scmp.ne.s32.totalorder %s66, %s67
    %p76 = scmp.eq.s32.totalorder %s14, 0
    %p77 = por %p75, %p76
    %p78 = scmp.ne.s32.totalorder %s66, %s67
    %p79 = scmp.eq.s32.totalorder %s15, 1
    %p80 = por %p78, %p79
    %p82 = scmp.ne.s32.totalorder %s67, %s81
    %p83 = scmp.eq.s32.totalorder %s15, 0
    %p84 = por %p82, %p83
    %s85 = ssub.s32 %s9, %s16
    %p86 = scmp.eq.s32.totalorder %s85, 0
    %s88 = sadd.s32 %s87, 1
    %s89 = scalar_select %p86, %s87, %s88
    %p92 = pneg %p86
    %p93 = scmp.eq.s32.totalorder %s9, 1
    %p94 = por %p92, %p93
    %p95 = scmp.ne.s32.totalorder %s87, %s90
    %p96 = scmp.eq.s32.totalorder %s9, 0
    %p97 = por %p95, %p96
    %p98 = scmp.ne.s32.totalorder %s87, %s90
    %p99 = scmp.eq.s32.totalorder %s14, 1
    %p100 = por %p98, %p99
    %p101 = scmp.ne.s32.totalorder %s90, %s91
    %p102 = scmp.eq.s32.totalorder %s14, 0
    %p103 = por %p101, %p102
    %p104 = scmp.ne.s32.totalorder %s90, %s91
    %p105 = scmp.eq.s32.totalorder %s15, 1
    %p106 = por %p104, %p105
    %p108 = scmp.ne.s32.totalorder %s91, %s107
    %p109 = scmp.eq.s32.totalorder %s15, 0
    %p110 = por %p108, %p109
    %p111 = scmp.le.s32.totalorder 1, %s9
    %p112 = scmp.lt.s32.totalorder %s9, 3
    %p113 = pnand %p111, %p112
    %p114 = pneg %p113
    // Predicated region
    $region9: #{discriminator_forward.14} parent=5 // pred_check
      _
    $region10: #{discriminator_forward.14} parent=5 // pred_check_branch
      %116 = sbr.rel (%p113) target = $region12
    $region11: #{discriminator_forward.14} parent=5 // pred_region
      %s117 = ssub.s32 %s9, 1
      // Predicated region
      $region13: #{discriminator_forward.14} parent=11 // pred_check
        %p118 = pneg %p56
      $region14: #{discriminator_forward.14} parent=11 // pred_check_branch
        %120 = sbr.rel (%p118) target = $region16
      $region15: #{discriminator_forward.14} parent=11 // pred_region
        _
      $region16: #{discriminator_forward.14} parent=11 // pred_fallthru
        _
      // Predicated region
      $region17: #{discriminator_forward.14} parent=11 // pred_check
        %p121 = pneg %p77
      $region18: #{discriminator_forward.14} parent=11 // pred_check_branch
        %123 = sbr.rel (%p121) target = $region20
      $region19: #{discriminator_forward.14} parent=11 // pred_region
        _
      $region20: #{discriminator_forward.14} parent=11 // pred_fallthru
        _
    $region12: #{discriminator_forward.14} parent=5 // pred_fallthru
      _
    %p124 = scmp.lt.s32.totalorder %s9, 2
    // Predicated region
    $region21: #{discriminator_forward.14} parent=5 // pred_check
      %p125 = pneg %p124
    $region22: #{discriminator_forward.14} parent=5 // pred_check_branch
      %127 = sbr.rel (%p125) target = $region24
    $region23: #{discriminator_forward.14} parent=5 // pred_region
      // Predicated region
      $region25: #{discriminator_forward.14} parent=23 // pred_check
        %p128 = pneg %p29
      $region26: #{discriminator_forward.14} parent=23 // pred_check_branch
        %130 = sbr.rel (%p128) target = $region28
      $region27: #{discriminator_forward.14} parent=23 // pred_region
        %s131 = smul.u32 2, %s9
        %p132 = scmp.lt.s32.totalorder %s131, 3
        %s133 = scalar_select %p132, %s131, 3
        %s134 = smul.addr %s133, 3
        %s135 = smul.addr %s134, 4
        %s136 = scalar_lea.vmem %s0, %s135
        %s137 = smul.u32 2, %s9
      $region28: #{discriminator_forward.14} parent=23 // pred_fallthru
        _
    $region24: #{discriminator_forward.14} parent=5 // pred_fallthru
      _
    %p138 = scmp.le.s32.totalorder 1, %s9
    %p139 = scmp.lt.s32.totalorder %s9, 3
    %p140 = pnand %p138, %p139
    %p141 = pneg %p140
    // Predicated region
    $region29: #{discriminator_forward.14} parent=5 // pred_check
      _
    $region30: #{discriminator_forward.14} parent=5 // pred_check_branch
      %143 = sbr.rel (%p140) target = $region32
    $region31: #{discriminator_forward.14} parent=5 // pred_region
      %s144 = ssub.s32 %s9, 1
      %s145 = smul.u32 2, %s14
      %p146 = scmp.lt.s32.totalorder %s145, 3
      %s147 = scalar_select %p146, %s145, 3
      %s148 = smul.addr %s147, 3
      %s149 = smul.addr %s148, 4
      %s150 = scalar_lea.vmem %s0, %s149
      %p151 = pneg %p35
      %p152 = pneg %p32
      %p153 = pneg %p56
      %p154 = pneg %p53
      %p155 = pneg %p77
      %p156 = pneg %p74
      %p157 = pneg %p103
      %p158 = pneg %p100
      %s159 = smul.u32 2, %s14
      %p160 = scmp.lt.s32.totalorder %s159, 3
      %s161 = scalar_select %p160, %s159, 3
      %s162 = smul.addr %s161, 4
      %s163 = scalar_lea.vmem %s3, %s162
      %s164 = smul.u32 2, %s14
      %p165 = scmp.lt.s32.totalorder %s164, 3
      %s166 = scalar_select %p165, %s164, 3
      %s167 = smul.addr %s166, 3
      %s168 = smul.addr %s167, 4
      %s169 = scalar_lea.vmem %s0, %s168
      %s170 = smul.u32 2, %s14
      %s171 = smul.u32 2, %s14
      %p172 = scmp.lt.s32.totalorder %s171, 3
      %s173 = scalar_select %p172, %s171, 3
      %s174 = smul.addr %s173, 4
      %s175 = scalar_lea.vmem %s3, %s174
      %s176 = smul.u32 2, %s14
      %v178 = vld [vmem:[%s169] sm:$0xff]
      %v179 = vld [vmem:[%s169 + $0x8] sm:$0xf]
      %v180 = vld [vmem:[%s169 + $0xc] sm:$0xff]
      %v181 = vld [vmem:[%s169 + $0x14] sm:$0xf]
      %v182 = vld [vmem:[%s1] sm:$0xf]
      %v183 = vld [vmem:[%s1 + $0x4] sm:$0xf]
      %v184 = vld [vmem:[%s1 + $0x8] sm:$0xf]
      %v185 = vld [vmem:[%s1 + $0xc] sm:$0xf]
      %v186 = vld [vmem:[%s1 + $0x10] sm:$0xf]
      %v187 = vld [vmem:[%s1 + $0x14] sm:$0xf]
      %v188 = vld [vmem:[%s1 + $0x18] sm:$0xf]
      %v189 = vld [vmem:[%s1 + $0x1c] sm:$0xf]
      %v190 = vld [vmem:[%s1 + $0x20] sm:$0xf]
      %v191 = vld [vmem:[%s1 + $0x24] sm:$0xf]
      %v192 = vld [vmem:[%s1 + $0x28] sm:$0xf]
      %v193 = vld [vmem:[%s1 + $0x2c] sm:$0xf]
      %v194 = vld [vmem:[%s1 + $0x30] sm:$0xf]
      %v195 = vld [vmem:[%s1 + $0x34] sm:$0xf]
      %v196 = vld [vmem:[%s1 + $0x38] sm:$0xf]
      %v197 = vld [vmem:[%s1 + $0x3c] sm:$0xf]
      %v198 = vld [vmem:[%s1 + $0x40] sm:$0xf]
      %v199 = vld [vmem:[%s1 + $0x44] sm:$0xf]
      %v200 = vld [vmem:[%s1 + $0x48] sm:$0xf]
      %v201 = vld [vmem:[%s1 + $0x4c] sm:$0xf]
      %v202 = vld [vmem:[%s1 + $0x50] sm:$0xf]
      %v203 = vld [vmem:[%s1 + $0x54] sm:$0xf]
      %v204 = vld [vmem:[%s1 + $0x58] sm:$0xf]
      %v205 = vld [vmem:[%s1 + $0x5c] sm:$0xf]
      %v206 = vld [vmem:[%s1 + $0x60] sm:$0xf]
      %v207 = vld [vmem:[%s1 + $0x64] sm:$0xf]
      %v208 = vld [vmem:[%s1 + $0x68] sm:$0xf]
      %v209 = vld [vmem:[%s1 + $0x6c] sm:$0xf]
      %v210 = vld [vmem:[%s1 + $0x70] sm:$0xf]
      %v211 = vld [vmem:[%s1 + $0x74] sm:$0xf]
      %v212 = vld [vmem:[%s1 + $0x78] sm:$0xf]
      %v213 = vld [vmem:[%s1 + $0x7c] sm:$0xf]
      %v214 = vld [vmem:[%s1 + $0x80] sm:$0xf]
      %v215 = vld [vmem:[%s1 + $0x84] sm:$0xf]
      %v216 = vld [vmem:[%s1 + $0x88] sm:$0xf]
      %v217 = vld [vmem:[%s1 + $0x8c] sm:$0xf]
      %v218 = vld [vmem:[%s1 + $0x90] sm:$0xf]
      %v219 = vld [vmem:[%s1 + $0x94] sm:$0xf]
      %v220 = vld [vmem:[%s1 + $0x98] sm:$0xf]
      %v221 = vld [vmem:[%s1 + $0x9c] sm:$0xf]
      %v222 = vld [vmem:[%s1 + $0xa0] sm:$0xf]
      %v223 = vld [vmem:[%s1 + $0xa4] sm:$0xf]
      %v224 = vld [vmem:[%s1 + $0xa8] sm:$0xf]
      %v225 = vld [vmem:[%s1 + $0xac] sm:$0xf]
      %v226 = vld [vmem:[%s1 + $0xb0] sm:$0xf]
      %v227 = vld [vmem:[%s1 + $0xb4] sm:$0xf]
      %v228 = vld [vmem:[%s1 + $0xb8] sm:$0xf]
      %v229 = vld [vmem:[%s1 + $0xbc] sm:$0xf]
      %v230 = vld [vmem:[%s2] sm:$0x1]
      %v232 = vlaneseq
      %v233 = vshrl.u32 %v232, 7
      %v234 = vsub.s32 0, %v233
      %v235 = vrot.slane %v230, %v234
      %v241 = vunpack.c.l.b16 %v178
      %v242 = vunpack.c.h.b16 %v178
      %v243 = vunpack.c.l.b16 %v179
      %v244 = vunpack.c.l.b16 %v180
      %v245 = vunpack.c.h.b16 %v180
      %v246 = vunpack.c.l.b16 %v181
      %v247 = vpack.c.b16 %v244, %v241
      %v248 = vpack.c.b16 %v245, %v242
      %v249 = vpack.c.b16 %v246, %v243
      %v301 = vunpack.c.l.b16 %v182
      %v302 = vunpack.c.l.b16 %v183
      %v303 = vunpack.c.l.b16 %v184
      %v304 = vunpack.c.l.b16 %v185
      %v305 = vunpack.c.l.b16 %v186
      %v306 = vunpack.c.l.b16 %v187
      %v307 = vunpack.c.l.b16 %v188
      %v308 = vunpack.c.l.b16 %v189
      %v309 = vunpack.c.l.b16 %v190
      %v310 = vunpack.c.l.b16 %v191
      %v311 = vunpack.c.l.b16 %v192
      %v312 = vunpack.c.l.b16 %v193
      %v313 = vunpack.c.l.b16 %v194
      %v314 = vunpack.c.l.b16 %v195
      %v315 = vunpack.c.l.b16 %v196
      %v316 = vunpack.c.l.b16 %v197
      %v317 = vunpack.c.l.b16 %v198
      %v318 = vunpack.c.l.b16 %v199
      %v319 = vunpack.c.l.b16 %v200
      %v320 = vunpack.c.l.b16 %v201
      %v321 = vunpack.c.l.b16 %v202
      %v322 = vunpack.c.l.b16 %v203
      %v323 = vunpack.c.l.b16 %v204
      %v324 = vunpack.c.l.b16 %v205
      %v325 = vunpack.c.l.b16 %v206
      %v326 = vunpack.c.l.b16 %v207
      %v327 = vunpack.c.l.b16 %v208
      %v328 = vunpack.c.l.b16 %v209
      %v329 = vunpack.c.l.b16 %v210
      %v330 = vunpack.c.l.b16 %v211
      %v331 = vunpack.c.l.b16 %v212
      %v332 = vunpack.c.l.b16 %v213
      %v333 = vunpack.c.l.b16 %v214
      %v334 = vunpack.c.l.b16 %v215
      %v335 = vunpack.c.l.b16 %v216
      %v336 = vunpack.c.l.b16 %v217
      %v337 = vunpack.c.l.b16 %v218
      %v338 = vunpack.c.l.b16 %v219
      %v339 = vunpack.c.l.b16 %v220
      %v340 = vunpack.c.l.b16 %v221
      %v341 = vunpack.c.l.b16 %v222
      %v342 = vunpack.c.l.b16 %v223
      %v343 = vunpack.c.l.b16 %v224
      %v344 = vunpack.c.l.b16 %v225
      %v345 = vunpack.c.l.b16 %v226
      %v346 = vunpack.c.l.b16 %v227
      %v347 = vunpack.c.l.b16 %v228
      %v348 = vunpack.c.l.b16 %v229
      %v349 = vpack.c.b16 %v302, %v301
      %v350 = vpack.c.b16 %v304, %v303
      %v351 = vpack.c.b16 %v306, %v305
      %v352 = vpack.c.b16 %v308, %v307
      %v353 = vpack.c.b16 %v310, %v309
      %v354 = vpack.c.b16 %v312, %v311
      %v355 = vpack.c.b16 %v314, %v313
      %v356 = vpack.c.b16 %v316, %v315
      %v357 = vpack.c.b16 %v318, %v317
      %v358 = vpack.c.b16 %v320, %v319
      %v359 = vpack.c.b16 %v322, %v321
      %v360 = vpack.c.b16 %v324, %v323
      %v361 = vpack.c.b16 %v326, %v325
      %v362 = vpack.c.b16 %v328, %v327
      %v363 = vpack.c.b16 %v330, %v329
      %v364 = vpack.c.b16 %v332, %v331
      %v365 = vpack.c.b16 %v334, %v333
      %v366 = vpack.c.b16 %v336, %v335
      %v367 = vpack.c.b16 %v338, %v337
      %v368 = vpack.c.b16 %v340, %v339
      %v369 = vpack.c.b16 %v342, %v341
      %v370 = vpack.c.b16 %v344, %v343
      %v371 = vpack.c.b16 %v346, %v345
      %v372 = vpack.c.b16 %v348, %v347
      %397 = vmatprep.subr.bf16.mxu0 0
      %398 = vmatpush1.bf16.msra.mxu0 %v349
      %399 = vmatprep.subr.bf16.mxu0 0
      %400 = vmatpush1.bf16.msra.mxu0 %v350
      %401 = vmatprep.subr.bf16.mxu0 0
      %402 = vmatpush1.bf16.msra.mxu0 %v351
      %403 = vmatprep.subr.bf16.mxu0 0
      %404 = vmatpush1.bf16.msra.mxu0 %v352
      %405 = vmatprep.subr.bf16.mxu0 0
      %406 = vmatpush1.bf16.msra.mxu0 %v353
      %407 = vmatprep.subr.bf16.mxu0 0
      %408 = vmatpush1.bf16.msra.mxu0 %v354
      %409 = vmatprep.subr.bf16.mxu0 0
      %410 = vmatpush1.bf16.msra.mxu0 %v355
      %411 = vmatprep.subr.bf16.mxu0 0
      %412 = vmatpush1.bf16.msra.mxu0 %v356
      %413 = vmatprep.subr.bf16.mxu0 0
      %414 = vmatpush1.bf16.msra.mxu0 %v357
      %415 = vmatprep.subr.bf16.mxu0 0
      %416 = vmatpush1.bf16.msra.mxu0 %v358
      %417 = vmatprep.subr.bf16.mxu0 0
      %418 = vmatpush1.bf16.msra.mxu0 %v359
      %419 = vmatprep.subr.bf16.mxu0 0
      %420 = vmatpush1.bf16.msra.mxu0 %v360
      %421 = vmatprep.subr.bf16.mxu0 0
      %422 = vmatpush1.bf16.msra.mxu0 %v361
      %423 = vmatprep.subr.bf16.mxu0 0
      %424 = vmatpush1.bf16.msra.mxu0 %v362
      %425 = vmatprep.subr.bf16.mxu0 0
      %426 = vmatpush1.bf16.msra.mxu0 %v363
      %427 = vmatprep.subr.bf16.mxu0 0
      %428 = vmatpush1.bf16.msra.mxu0 %v364
      %429 = vmatprep.mubr.bf16.mxu0 %v248
      %430 = vmatmul.mubr.bf16.gmra.mrb[0].mxu0 %v247
      %v431 = vpop.f32.mrb[0].mxu0
      %v432 = vadd.f32 %v235, %v431
      %v433 = vpop.f32.mrb[0].mxu0
      %v434 = vpop.f32.mrb[0].mxu0
      %v435 = vadd.f32 %v235, %v434
      %v436 = vpop.f32.mrb[0].mxu0
      %437 = vdwg.mxu0
      %438 = vmatprep.subr.bf16.mxu0 0
      %439 = vmatpush1.bf16.msra.mxu0 %v365
      %440 = vmatprep.subr.bf16.mxu0 0
      %441 = vmatpush1.bf16.msra.mxu0 %v366
      %442 = vmatprep.subr.bf16.mxu0 0
      %443 = vmatpush1.bf16.msra.mxu0 %v367
      %444 = vmatprep.subr.bf16.mxu0 0
      %445 = vmatpush1.bf16.msra.mxu0 %v368
      %446 = vmatprep.subr.bf16.mxu0 0
      %447 = vmatpush1.bf16.msra.mxu0 %v369
      %448 = vmatprep.subr.bf16.mxu0 0
      %449 = vmatpush1.bf16.msra.mxu0 %v370
      %450 = vmatprep.subr.bf16.mxu0 0
      %451 = vmatpush1.bf16.msra.mxu0 %v371
      %452 = vmatprep.subr.bf16.mxu0 0
      %453 = vmatpush1.bf16.msra.mxu0 %v372
      %454 = vmatprep.subr.bf16.mxu0 0
      %455 = vmatpush1.bf16.msra.mxu0 0
      %456 = vmatprep.subr.bf16.mxu0 0
      %457 = vmatpush1.bf16.msra.mxu0 0
      %458 = vmatprep.subr.bf16.mxu0 0
      %459 = vmatpush1.bf16.msra.mxu0 0
      %460 = vmatprep.subr.bf16.mxu0 0
      %461 = vmatpush1.bf16.msra.mxu0 0
      %462 = vmatprep.subr.bf16.mxu0 0
      %463 = vmatpush1.bf16.msra.mxu0 0
      %464 = vmatprep.subr.bf16.mxu0 0
      %465 = vmatpush1.bf16.msra.mxu0 0
      %466 = vmatprep.subr.bf16.mxu0 0
      %467 = vmatpush1.bf16.msra.mxu0 0
      %468 = vmatprep.subr.bf16.mxu0 0
      %469 = vmatpush1.bf16.msra.mxu0 0
      %470 = vmatprep.mubr.bf16.mxu0 0
      %471 = vmatmul.mubr.bf16.gmra.mrb[0].mxu0 %v249
      %v472 = vpop.f32.mrb[0].mxu0
      %v473 = vadd.f32 %v432, %v472
      %v474 = vpop.f32.mrb[0].mxu0
      %v475 = vpop.f32.mrb[0].mxu0
      %v476 = vadd.f32 %v435, %v475
      %v477 = vpop.f32.mrb[0].mxu0
      %478 = vdwg.mxu0
      %vm479 = vcmp.ge.f32.partialorder %v473, 0.0
      %vm480 = vcmp.ge.f32.partialorder %v476, 0.0
      %v481 = vmul.f32 %v473, 0.01
      %v482 = vmul.f32 %v476, 0.01
      %v483 = vsel %vm479, %v473, %v481
      %v484 = vsel %vm480, %v476, %v482
      %v485 = vpack.c.bf16 %v484, %v483
      %v487 = vunpack.c.l.b16 %v485
      %v488 = vunpack.c.h.b16 %v485
      %v489 = vpack.c.b16 %v487, %v487
      %v490 = vpack.c.b16 %v488, %v488
      %493 = vst [vmem:[%s175] sm:$0xf] %v489
      %494 = vst [vmem:[%s175 + $0x4] sm:$0xf] %v490
      %s495 = smul.u32 2, %s14
      %p496 = scmp.lt.s32.totalorder %s495, 3
      %s497 = scalar_select %p496, %s495, 3
      %s498 = smul.addr %s497, 4
      %s499 = scalar_lea.vmem %s3, %s498
      // Predicated region
      $region33: #{discriminator_forward.14} parent=31 // pred_check
        %p500 = pneg %p100
      $region34: #{discriminator_forward.14} parent=31 // pred_check_branch
        %502 = sbr.rel (%p500) target = $region36
      $region35: #{discriminator_forward.14} parent=31 // pred_region
        %s503 = smul.u32 2, %s14
      $region36: #{discriminator_forward.14} parent=31 // pred_fallthru
        _
    $region32: #{discriminator_forward.14} parent=5 // pred_fallthru
      _
    %p504 = scmp.le.s32.totalorder 2, %s9
    // Predicated region
    $region37: #{discriminator_forward.14} parent=5 // pred_check
      %p505 = pneg %p504
    $region38: #{discriminator_forward.14} parent=5 // pred_check_branch
      %507 = sbr.rel (%p505) target = $region40
    $region39: #{discriminator_forward.14} parent=5 // pred_region
      %s508 = ssub.s32 %s9, 2
      // Predicated region
      $region41: #{discriminator_forward.14} parent=39 // pred_check
        %p509 = pneg %p106
      $region42: #{discriminator_forward.14} parent=39 // pred_check_branch
        %511 = sbr.rel (%p509) target = $region44
      $region43: #{discriminator_forward.14} parent=39 // pred_region
        %s512 = smul.u32 2, %s15
        %p513 = scmp.lt.s32.totalorder %s512, 3
        %s514 = scalar_select %p513, %s512, 3
        %s515 = smul.addr %s514, 4
        %s516 = scalar_lea.vmem %s3, %s515
      $region44: #{discriminator_forward.14} parent=39 // pred_fallthru
        _
    $region40: #{discriminator_forward.14} parent=5 // pred_fallthru
      _
  $region6: #{discriminator_forward.14} parent=0 // loop_footer
    %s13 = sadd.s32 1, %s9
  $region7: #{discriminator_forward.14} parent=0 // loop_footer_branch
    %8 = sbr.rel target = $region3
  $region8: #{discriminator_forward.14} parent=0 // loop_exit
    _

// kernel: discriminator_forward.16
$region0: #{discriminator_forward.16}
  #allocation0 [shape = 'u32[]', space=smem, size = 0x4, offset = 0x4, fixed_abs, tag = 'smem constant byte address 0x4 - core index']
  #allocation1 [shape = 'u32[144,128]{1,0:T(1,128)}', space=vmem, size = 0x12000, scoped, tag = 'internal scratch']
  %s0 = inlined_call_operand.vmem [shape: bf16[8,640], index: 0, kind: input, shape index: {}]
  %s1 = inlined_call_operand.vmem [shape: bf16[640,128], index: 1, kind: input, shape index: {}]
  %s2 = inlined_call_operand.vmem [shape: f32[1,128], index: 2, kind: input, shape index: {}]
  %s3 = inlined_call_operand.vmem [shape: bf16[8,128], index: 3, kind: output, shape index: {}]
  %s4 = sld [smem:[#allocation0]]
  $region22: #{discriminator_forward.16} parent=0
    _
  %s6 = ssub.s32 1, %s4
  %s7 = scalar_select 0, %s6, %s4
  // Predicated region
  $region2: #{discriminator_forward.16} parent=0 // pred_check
    _
  $region3: #{discriminator_forward.16} parent=0 // pred_check_branch
    %9 = sbr.rel (0) target = $region5
  $region4: #{discriminator_forward.16} parent=0 // pred_region
    _
  $region5: #{discriminator_forward.16} parent=0 // pred_fallthru
    _
  // Predicated region
  $region6: #{discriminator_forward.16} parent=0 // pred_check
    _
  $region7: #{discriminator_forward.16} parent=0 // pred_check_branch
    %11 = sbr.rel (0) target = $region9
  $region8: #{discriminator_forward.16} parent=0 // pred_region
    _
  $region9: #{discriminator_forward.16} parent=0 // pred_fallthru
    _
  // Predicated region
  $region10: #{discriminator_forward.16} parent=0 // pred_check
    _
  $region11: #{discriminator_forward.16} parent=0 // pred_check_branch
    %13 = sbr.rel (0) target = $region13
  $region12: #{discriminator_forward.16} parent=0 // pred_region
    _
  $region13: #{discriminator_forward.16} parent=0 // pred_fallthru
    _
  %v15 = vld [vmem:[%s0] sm:$0xff]
  %v16 = vld [vmem:[%s0 + $0x8] sm:$0xff]
  %v17 = vld [vmem:[%s0 + $0x10] sm:$0xf]
  %v18 = vld [vmem:[%s1] sm:$0xf]
  %v19 = vld [vmem:[%s1 + $0x4] sm:$0xf]
  %v20 = vld [vmem:[%s1 + $0x8] sm:$0xf]
  %v21 = vld [vmem:[%s1 + $0xc] sm:$0xf]
  %v22 = vld [vmem:[%s1 + $0x10] sm:$0xf]
  %v23 = vld [vmem:[%s1 + $0x14] sm:$0xf]
  %v24 = vld [vmem:[%s1 + $0x18] sm:$0xf]
  %v25 = vld [vmem:[%s1 + $0x1c] sm:$0xf]
  %v26 = vld [vmem:[%s1 + $0x20] sm:$0xf]
  %v27 = vld [vmem:[%s1 + $0x24] sm:$0xf]
  %v28 = vld [vmem:[%s1 + $0x28] sm:$0xf]
  %v29 = vld [vmem:[%s1 + $0x2c] sm:$0xf]
  %v30 = vld [vmem:[%s1 + $0x30] sm:$0xf]
  %v31 = vld [vmem:[%s1 + $0x34] sm:$0xf]
  %v32 = vld [vmem:[%s1 + $0x38] sm:$0xf]
  %v33 = vld [vmem:[%s1 + $0x3c] sm:$0xf]
  %v34 = vld [vmem:[%s1 + $0x40] sm:$0xf]
  %v35 = vld [vmem:[%s1 + $0x44] sm:$0xf]
  %v36 = vld [vmem:[%s1 + $0x48] sm:$0xf]
  %v37 = vld [vmem:[%s1 + $0x4c] sm:$0xf]
  %v38 = vld [vmem:[%s1 + $0x50] sm:$0xf]
  %v39 = vld [vmem:[%s1 + $0x54] sm:$0xf]
  %v40 = vld [vmem:[%s1 + $0x58] sm:$0xf]
  %v41 = vld [vmem:[%s1 + $0x5c] sm:$0xf]
  %v42 = vld [vmem:[%s1 + $0x60] sm:$0xf]
  %v43 = vld [vmem:[%s1 + $0x64] sm:$0xf]
  %v44 = vld [vmem:[%s1 + $0x68] sm:$0xf]
  %v45 = vld [vmem:[%s1 + $0x6c] sm:$0xf]
  %v46 = vld [vmem:[%s1 + $0x70] sm:$0xf]
  %v47 = vld [vmem:[%s1 + $0x74] sm:$0xf]
  %v48 = vld [vmem:[%s1 + $0x78] sm:$0xf]
  %v49 = vld [vmem:[%s1 + $0x7c] sm:$0xf]
  %v50 = vld [vmem:[%s1 + $0x80] sm:$0xf]
  %v51 = vld [vmem:[%s1 + $0x84] sm:$0xf]
  %v52 = vld [vmem:[%s1 + $0x88] sm:$0xf]
  %v53 = vld [vmem:[%s1 + $0x8c] sm:$0xf]
  %v54 = vld [vmem:[%s1 + $0x90] sm:$0xf]
  %v55 = vld [vmem:[%s1 + $0x94] sm:$0xf]
  %v56 = vld [vmem:[%s1 + $0x98] sm:$0xf]
  %v57 = vld [vmem:[%s1 + $0x9c] sm:$0xf]
  %v58 = vld [vmem:[%s1 + $0xa0] sm:$0xf]
  %v59 = vld [vmem:[%s1 + $0xa4] sm:$0xf]
  %v60 = vld [vmem:[%s1 + $0xa8] sm:$0xf]
  %v61 = vld [vmem:[%s1 + $0xac] sm:$0xf]
  %v62 = vld [vmem:[%s1 + $0xb0] sm:$0xf]
  %v63 = vld [vmem:[%s1 + $0xb4] sm:$0xf]
  %v64 = vld [vmem:[%s1 + $0xb8] sm:$0xf]
  %v65 = vld [vmem:[%s1 + $0xbc] sm:$0xf]
  %v66 = vld [vmem:[%s1 + $0xc0] sm:$0xf]
  %v67 = vld [vmem:[%s1 + $0xc4] sm:$0xf]
  %v68 = vld [vmem:[%s1 + $0xc8] sm:$0xf]
  %v69 = vld [vmem:[%s1 + $0xcc] sm:$0xf]
  %v70 = vld [vmem:[%s1 + $0xd0] sm:$0xf]
  %v71 = vld [vmem:[%s1 + $0xd4] sm:$0xf]
  %v72 = vld [vmem:[%s1 + $0xd8] sm:$0xf]
  %v73 = vld [vmem:[%s1 + $0xdc] sm:$0xf]
  %v74 = vld [vmem:[%s1 + $0xe0] sm:$0xf]
  %v75 = vld [vmem:[%s1 + $0xe4] sm:$0xf]
  %v76 = vld [vmem:[%s1 + $0xe8] sm:$0xf]
  %v77 = vld [vmem:[%s1 + $0xec] sm:$0xf]
  %v78 = vld [vmem:[%s1 + $0xf0] sm:$0xf]
  %v79 = vld [vmem:[%s1 + $0xf4] sm:$0xf]
  %v80 = vld [vmem:[%s1 + $0xf8] sm:$0xf]
  %v81 = vld [vmem:[%s1 + $0xfc] sm:$0xf]
  %v82 = vld [vmem:[%s1 + $0x100] sm:$0xf]
  %v83 = vld [vmem:[%s1 + $0x104] sm:$0xf]
  %v84 = vld [vmem:[%s1 + $0x108] sm:$0xf]
  %v85 = vld [vmem:[%s1 + $0x10c] sm:$0xf]
  %v86 = vld [vmem:[%s1 + $0x110] sm:$0xf]
  %v87 = vld [vmem:[%s1 + $0x114] sm:$0xf]
  %v88 = vld [vmem:[%s1 + $0x118] sm:$0xf]
  %v89 = vld [vmem:[%s1 + $0x11c] sm:$0xf]
  %v90 = vld [vmem:[%s1 + $0x120] sm:$0xf]
  %v91 = vld [vmem:[%s1 + $0x124] sm:$0xf]
  %v92 = vld [vmem:[%s1 + $0x128] sm:$0xf]
  %v93 = vld [vmem:[%s1 + $0x12c] sm:$0xf]
  %v94 = vld [vmem:[%s1 + $0x130] sm:$0xf]
  %v95 = vld [vmem:[%s1 + $0x134] sm:$0xf]
  %v96 = vld [vmem:[%s1 + $0x138] sm:$0xf]
  %v97 = vld [vmem:[%s1 + $0x13c] sm:$0xf]
  %v98 = vld [vmem:[%s2] sm:$0x1]
  %v100 = vlaneseq
  %v101 = vshrl.u32 %v100, 7
  %v102 = vsub.s32 0, %v101
  %v103 = vrot.slane %v98, %v102
  %v108 = vunpack.c.l.b16 %v15
  %v109 = vunpack.c.h.b16 %v15
  %v110 = vunpack.c.l.b16 %v16
  %v111 = vunpack.c.h.b16 %v16
  %v112 = vunpack.c.l.b16 %v17
  %v113 = vpack.c.b16 %v108, %v108
  %v114 = vpack.c.b16 %v109, %v109
  %v115 = vpack.c.b16 %v110, %v110
  %v116 = vpack.c.b16 %v111, %v111
  %v117 = vpack.c.b16 %v112, %v112
  %v203 = vunpack.c.l.b16 %v18
  %v204 = vunpack.c.l.b16 %v19
  %v205 = vunpack.c.l.b16 %v20
  %v206 = vunpack.c.l.b16 %v21
  %v207 = vunpack.c.l.b16 %v22
  %v208 = vunpack.c.l.b16 %v23
  %v209 = vunpack.c.l.b16 %v24
  %v210 = vunpack.c.l.b16 %v25
  %v211 = vunpack.c.l.b16 %v26
  %v212 = vunpack.c.l.b16 %v27
  %v213 = vunpack.c.l.b16 %v28
  %v214 = vunpack.c.l.b16 %v29
  %v215 = vunpack.c.l.b16 %v30
  %v216 = vunpack.c.l.b16 %v31
  %v217 = vunpack.c.l.b16 %v32
  %v218 = vunpack.c.l.b16 %v33
  %v219 = vunpack.c.l.b16 %v34
  %v220 = vunpack.c.l.b16 %v35
  %v221 = vunpack.c.l.b16 %v36
  %v222 = vunpack.c.l.b16 %v37
  %v223 = vunpack.c.l.b16 %v38
  %v224 = vunpack.c.l.b16 %v39
  %v225 = vunpack.c.l.b16 %v40
  %v226 = vunpack.c.l.b16 %v41
  %v227 = vunpack.c.l.b16 %v42
  %v228 = vunpack.c.l.b16 %v43
  %v229 = vunpack.c.l.b16 %v44
  %v230 = vunpack.c.l.b16 %v45
  %v231 = vunpack.c.l.b16 %v46
  %v232 = vunpack.c.l.b16 %v47
  %v233 = vunpack.c.l.b16 %v48
  %v234 = vunpack.c.l.b16 %v49
  %v235 = vunpack.c.l.b16 %v50
  %v236 = vunpack.c.l.b16 %v51
  %v237 = vunpack.c.l.b16 %v52
  %v238 = vunpack.c.l.b16 %v53
  %v239 = vunpack.c.l.b16 %v54
  %v240 = vunpack.c.l.b16 %v55
  %v241 = vunpack.c.l.b16 %v56
  %v242 = vunpack.c.l.b16 %v57
  %v243 = vunpack.c.l.b16 %v58
  %v244 = vunpack.c.l.b16 %v59
  %v245 = vunpack.c.l.b16 %v60
  %v246 = vunpack.c.l.b16 %v61
  %v247 = vunpack.c.l.b16 %v62
  %v248 = vunpack.c.l.b16 %v63
  %v249 = vunpack.c.l.b16 %v64
  %v250 = vunpack.c.l.b16 %v65
  %v251 = vunpack.c.l.b16 %v66
  %v252 = vunpack.c.l.b16 %v67
  %v253 = vunpack.c.l.b16 %v68
  %v254 = vunpack.c.l.b16 %v69
  %v255 = vunpack.c.l.b16 %v70
  %v256 = vunpack.c.l.b16 %v71
  %v257 = vunpack.c.l.b16 %v72
  %v258 = vunpack.c.l.b16 %v73
  %v259 = vunpack.c.l.b16 %v74
  %v260 = vunpack.c.l.b16 %v75
  %v261 = vunpack.c.l.b16 %v76
  %v262 = vunpack.c.l.b16 %v77
  %v263 = vunpack.c.l.b16 %v78
  %v264 = vunpack.c.l.b16 %v79
  %v265 = vunpack.c.l.b16 %v80
  %v266 = vunpack.c.l.b16 %v81
  %v267 = vunpack.c.l.b16 %v82
  %v268 = vunpack.c.l.b16 %v83
  %v269 = vunpack.c.l.b16 %v84
  %v270 = vunpack.c.l.b16 %v85
  %v271 = vunpack.c.l.b16 %v86
  %v272 = vunpack.c.l.b16 %v87
  %v273 = vunpack.c.l.b16 %v88
  %v274 = vunpack.c.l.b16 %v89
  %v275 = vunpack.c.l.b16 %v90
  %v276 = vunpack.c.l.b16 %v91
  %v277 = vunpack.c.l.b16 %v92
  %v278 = vunpack.c.l.b16 %v93
  %v279 = vunpack.c.l.b16 %v94
  %v280 = vunpack.c.l.b16 %v95
  %v281 = vunpack.c.l.b16 %v96
  %v282 = vunpack.c.l.b16 %v97
  %v283 = vpack.c.b16 %v204, %v203
  %v284 = vpack.c.b16 %v206, %v205
  %v285 = vpack.c.b16 %v208, %v207
  %v286 = vpack.c.b16 %v210, %v209
  %v287 = vpack.c.b16 %v212, %v211
  %v288 = vpack.c.b16 %v214, %v213
  %v289 = vpack.c.b16 %v216, %v215
  %v290 = vpack.c.b16 %v218, %v217
  %v291 = vpack.c.b16 %v220, %v219
  %v292 = vpack.c.b16 %v222, %v221
  %v293 = vpack.c.b16 %v224, %v223
  %v294 = vpack.c.b16 %v226, %v225
  %v295 = vpack.c.b16 %v228, %v227
  %v296 = vpack.c.b16 %v230, %v229
  %v297 = vpack.c.b16 %v232, %v231
  %v298 = vpack.c.b16 %v234, %v233
  %v299 = vpack.c.b16 %v236, %v235
  %v300 = vpack.c.b16 %v238, %v237
  %v301 = vpack.c.b16 %v240, %v239
  %v302 = vpack.c.b16 %v242, %v241
  %v303 = vpack.c.b16 %v244, %v243
  %v304 = vpack.c.b16 %v246, %v245
  %v305 = vpack.c.b16 %v248, %v247
  %v306 = vpack.c.b16 %v250, %v249
  %v307 = vpack.c.b16 %v252, %v251
  %v308 = vpack.c.b16 %v254, %v253
  %v309 = vpack.c.b16 %v256, %v255
  %v310 = vpack.c.b16 %v258, %v257
  %v311 = vpack.c.b16 %v260, %v259
  %v312 = vpack.c.b16 %v262, %v261
  %v313 = vpack.c.b16 %v264, %v263
  %v314 = vpack.c.b16 %v266, %v265
  %v315 = vpack.c.b16 %v268, %v267
  %v316 = vpack.c.b16 %v270, %v269
  %v317 = vpack.c.b16 %v272, %v271
  %v318 = vpack.c.b16 %v274, %v273
  %v319 = vpack.c.b16 %v276, %v275
  %v320 = vpack.c.b16 %v278, %v277
  %v321 = vpack.c.b16 %v280, %v279
  %v322 = vpack.c.b16 %v282, %v281
  %363 = vmatprep.subr.bf16.mxu0 0
  %364 = vmatpush1.bf16.msra.mxu0 %v283
  %365 = vmatprep.subr.bf16.mxu0 0
  %366 = vmatpush1.bf16.msra.mxu0 %v284
  %367 = vmatprep.subr.bf16.mxu0 0
  %368 = vmatpush1.bf16.msra.mxu0 %v285
  %369 = vmatprep.subr.bf16.mxu0 0
  %370 = vmatpush1.bf16.msra.mxu0 %v286
  %371 = vmatprep.subr.bf16.mxu0 0
  %372 = vmatpush1.bf16.msra.mxu0 %v287
  %373 = vmatprep.subr.bf16.mxu0 0
  %374 = vmatpush1.bf16.msra.mxu0 %v288
  %375 = vmatprep.subr.bf16.mxu0 0
  %376 = vmatpush1.bf16.msra.mxu0 %v289
  %377 = vmatprep.subr.bf16.mxu0 0
  %378 = vmatpush1.bf16.msra.mxu0 %v290
  %379 = vmatprep.subr.bf16.mxu0 0
  %380 = vmatpush1.bf16.msra.mxu0 %v291
  %381 = vmatprep.subr.bf16.mxu0 0
  %382 = vmatpush1.bf16.msra.mxu0 %v292
  %383 = vmatprep.subr.bf16.mxu0 0
  %384 = vmatpush1.bf16.msra.mxu0 %v293
  %385 = vmatprep.subr.bf16.mxu0 0
  %386 = vmatpush1.bf16.msra.mxu0 %v294
  %387 = vmatprep.subr.bf16.mxu0 0
  %388 = vmatpush1.bf16.msra.mxu0 %v295
  %389 = vmatprep.subr.bf16.mxu0 0
  %390 = vmatpush1.bf16.msra.mxu0 %v296
  %391 = vmatprep.subr.bf16.mxu0 0
  %392 = vmatpush1.bf16.msra.mxu0 %v297
  %393 = vmatprep.subr.bf16.mxu0 0
  %394 = vmatpush1.bf16.msra.mxu0 %v298
  %395 = vmatprep.mubr.bf16.mxu0 %v114
  %396 = vmatmul.mubr.bf16.gmra.mrb[0].mxu0 %v113
  %v397 = vpop.f32.mrb[0].mxu0
  %v398 = vadd.f32 %v103, %v397
  %v399 = vpop.f32.mrb[0].mxu0
  %v400 = vpop.f32.mrb[0].mxu0
  %v401 = vpop.f32.mrb[0].mxu0
  %402 = vdwg.mxu0
  %403 = vmatprep.subr.bf16.mxu0 0
  %404 = vmatpush1.bf16.msra.mxu0 %v299
  %405 = vmatprep.subr.bf16.mxu0 0
  %406 = vmatpush1.bf16.msra.mxu0 %v300
  %407 = vmatprep.subr.bf16.mxu0 0
  %408 = vmatpush1.bf16.msra.mxu0 %v301
  %409 = vmatprep.subr.bf16.mxu0 0
  %410 = vmatpush1.bf16.msra.mxu0 %v302
  %411 = vmatprep.subr.bf16.mxu0 0
  %412 = vmatpush1.bf16.msra.mxu0 %v303
  %413 = vmatprep.subr.bf16.mxu0 0
  %414 = vmatpush1.bf16.msra.mxu0 %v304
  %415 = vmatprep.subr.bf16.mxu0 0
  %416 = vmatpush1.bf16.msra.mxu0 %v305
  %417 = vmatprep.subr.bf16.mxu0 0
  %418 = vmatpush1.bf16.msra.mxu0 %v306
  %419 = vmatprep.subr.bf16.mxu0 0
  %420 = vmatpush1.bf16.msra.mxu0 %v307
  %421 = vmatprep.subr.bf16.mxu0 0
  %422 = vmatpush1.bf16.msra.mxu0 %v308
  %423 = vmatprep.subr.bf16.mxu0 0
  %424 = vmatpush1.bf16.msra.mxu0 %v309
  %425 = vmatprep.subr.bf16.mxu0 0
  %426 = vmatpush1.bf16.msra.mxu0 %v310
  %427 = vmatprep.subr.bf16.mxu0 0
  %428 = vmatpush1.bf16.msra.mxu0 %v311
  %429 = vmatprep.subr.bf16.mxu0 0
  %430 = vmatpush1.bf16.msra.mxu0 %v312
  %431 = vmatprep.subr.bf16.mxu0 0
  %432 = vmatpush1.bf16.msra.mxu0 %v313
  %433 = vmatprep.subr.bf16.mxu0 0
  %434 = vmatpush1.bf16.msra.mxu0 %v314
  %435 = vmatprep.mubr.bf16.mxu0 %v116
  %436 = vmatmul.mubr.bf16.gmra.mrb[0].mxu0 %v115
  %v437 = vpop.f32.mrb[0].mxu0
  %v438 = vadd.f32 %v398, %v437
  %v439 = vpop.f32.mrb[0].mxu0
  %v440 = vpop.f32.mrb[0].mxu0
  %v441 = vpop.f32.mrb[0].mxu0
  %442 = vdwg.mxu0
  %443 = vmatprep.subr.bf16.mxu0 0
  %444 = vmatpush1.bf16.msra.mxu0 %v315
  %445 = vmatprep.subr.bf16.mxu0 0
  %446 = vmatpush1.bf16.msra.mxu0 %v316
  %447 = vmatprep.subr.bf16.mxu0 0
  %448 = vmatpush1.bf16.msra.mxu0 %v317
  %449 = vmatprep.subr.bf16.mxu0 0
  %450 = vmatpush1.bf16.msra.mxu0 %v318
  %451 = vmatprep.subr.bf16.mxu0 0
  %452 = vmatpush1.bf16.msra.mxu0 %v319
  %453 = vmatprep.subr.bf16.mxu0 0
  %454 = vmatpush1.bf16.msra.mxu0 %v320
  %455 = vmatprep.subr.bf16.mxu0 0
  %456 = vmatpush1.bf16.msra.mxu0 %v321
  %457 = vmatprep.subr.bf16.mxu0 0
  %458 = vmatpush1.bf16.msra.mxu0 %v322
  %459 = vmatprep.subr.bf16.mxu0 0
  %460 = vmatpush1.bf16.msra.mxu0 0
  %461 = vmatprep.subr.bf16.mxu0 0
  %462 = vmatpush1.bf16.msra.mxu0 0
  %463 = vmatprep.subr.bf16.mxu0 0
  %464 = vmatpush1.bf16.msra.mxu0 0
  %465 = vmatprep.subr.bf16.mxu0 0
  %466 = vmatpush1.bf16.msra.mxu0 0
  %467 = vmatprep.subr.bf16.mxu0 0
  %468 = vmatpush1.bf16.msra.mxu0 0
  %469 = vmatprep.subr.bf16.mxu0 0
  %470 = vmatpush1.bf16.msra.mxu0 0
  %471 = vmatprep.subr.bf16.mxu0 0
  %472 = vmatpush1.bf16.msra.mxu0 0
  %473 = vmatprep.subr.bf16.mxu0 0
  %474 = vmatpush1.bf16.msra.mxu0 0
  %475 = vmatprep.mubr.bf16.mxu0 0
  %476 = vmatmul.mubr.bf16.gmra.mrb[0].mxu0 %v117
  %v477 = vpop.f32.mrb[0].mxu0
  %v478 = vadd.f32 %v438, %v477
  %v479 = vpop.f32.mrb[0].mxu0
  %v480 = vpop.f32.mrb[0].mxu0
  %v481 = vpop.f32.mrb[0].mxu0
  %482 = vdwg.mxu0
  %vm483 = vcmp.ge.f32.partialorder %v478, 0.0
  %v484 = vmul.f32 %v478, 0.01
  %v485 = vsel %vm483, %v478, %v484
  %v486 = vpack.c.bf16 %v485, %v485
  %487 = vst [vmem:[%s3] sm:$0xf] %v486
  // Predicated region
  $region14: #{discriminator_forward.16} parent=0 // pred_check
    _
  $region15: #{discriminator_forward.16} parent=0 // pred_check_branch
    %489 = sbr.rel (0) target = $region17
  $region16: #{discriminator_forward.16} parent=0 // pred_region
    _
  $region17: #{discriminator_forward.16} parent=0 // pred_fallthru
    _
  // Predicated region
  $region18: #{discriminator_forward.16} parent=0 // pred_check
    _
  $region19: #{discriminator_forward.16} parent=0 // pred_check_branch
    %491 = sbr.rel (0) target = $region21
  $region20: #{discriminator_forward.16} parent=0 // pred_region
    _
  $region21: #{discriminator_forward.16} parent=0 // pred_fallthru
    _

// kernel: discriminator_forward.17
$region0: #{discriminator_forward.17}
  #allocation0 [shape = 'u32[]', space=smem, size = 0x4, offset = 0x4, fixed_abs, tag = 'smem constant byte address 0x4 - core index']
  #allocation1 [shape = 'u32[144,128]{1,0:T(1,128)}', space=vmem, size = 0x12000, scoped, tag = 'internal scratch']
  #allocation2 [shape = 'f32[1,1]{1,0:T(1,128)S(1)}', space=vmem, size = 0x200, scoped, tag = 'scoped memory for discriminator_forward.17']
  %s0 = inlined_call_operand.vmem [shape: bf16[8,512], index: 0, kind: input, shape index: {}]
  %s1 = inlined_call_operand.vmem [shape: bf16[512,1024], index: 1, kind: input, shape index: {}]
  %s2 = inlined_call_operand.vmem [shape: f32[1,1024], index: 2, kind: input, shape index: {}]
  %s3 = inlined_call_operand.vmem [shape: f32[1,1024], index: 3, kind: input, shape index: {}]
  %s4 = inlined_call_operand.<no memory space> [shape: f32[1,1], index: 4, kind: input, shape index: {}]
  %s5 = inlined_call_operand.vmem [shape: f32[8,1], index: 5, kind: output, shape index: {}]
  %s6 = sld [smem:[#allocation0]]
  $region30: #{discriminator_forward.17} parent=0
    _
  %s8 = ssub.s32 1, %s6
  %s9 = scalar_select 0, %s8, %s6
  %v10 = vstv %s4
  %11 = vst [vmem:[#allocation2] sm:$0x1] %v10
  // Predicated region
  $region2: #{discriminator_forward.17} parent=0 // pred_check
    _
  $region3: #{discriminator_forward.17} parent=0 // pred_check_branch
    %13 = sbr.rel (0) target = $region5
  $region4: #{discriminator_forward.17} parent=0 // pred_region
    _
  $region5: #{discriminator_forward.17} parent=0 // pred_fallthru
    _
  // Predicated region
  $region6: #{discriminator_forward.17} parent=0 // pred_check
    _
  $region7: #{discriminator_forward.17} parent=0 // pred_check_branch
    %15 = sbr.rel (0) target = $region9
  $region8: #{discriminator_forward.17} parent=0 // pred_region
    _
  $region9: #{discriminator_forward.17} parent=0 // pred_fallthru
    _
  // Predicated region
  $region10: #{discriminator_forward.17} parent=0 // pred_check
    _
  $region11: #{discriminator_forward.17} parent=0 // pred_check_branch
    %17 = sbr.rel (0) target = $region13
  $region12: #{discriminator_forward.17} parent=0 // pred_region
    _
  $region13: #{discriminator_forward.17} parent=0 // pred_fallthru
    _
  // Predicated region
  $region14: #{discriminator_forward.17} parent=0 // pred_check
    _
  $region15: #{discriminator_forward.17} parent=0 // pred_check_branch
    %19 = sbr.rel (0) target = $region17
  $region16: #{discriminator_forward.17} parent=0 // pred_region
    _
  $region17: #{discriminator_forward.17} parent=0 // pred_fallthru
    _
  // Predicated region
  $region18: #{discriminator_forward.17} parent=0 // pred_check
    _
  $region19: #{discriminator_forward.17} parent=0 // pred_check_branch
    %21 = sbr.rel (0) target = $region21
  $region20: #{discriminator_forward.17} parent=0 // pred_region
    _
  $region21: #{discriminator_forward.17} parent=0 // pred_fallthru
    _
  %v22 = vld [vmem:[%s0] sm:$0xff]
  %v23 = vld [vmem:[%s0 + $0x8] sm:$0xff]
  %v24 = vld [vmem:[%s1] sm:$0xff]
  %v25 = vld [vmem:[%s1 + $0x8] sm:$0xff]
  %v26 = vld [vmem:[%s1 + $0x10] sm:$0xff]
  %v27 = vld [vmem:[%s1 + $0x18] sm:$0xff]
  %v28 = vld [vmem:[%s1 + $0x20] sm:$0xff]
  %v29 = vld [vmem:[%s1 + $0x28] sm:$0xff]
  %v30 = vld [vmem:[%s1 + $0x30] sm:$0xff]
  %v31 = vld [vmem:[%s1 + $0x38] sm:$0xff]
  %v32 = vld [vmem:[%s1 + $0x40] sm:$0xff]
  %v33 = vld [vmem:[%s1 + $0x48] sm:$0xff]
  %v34 = vld [vmem:[%s1 + $0x50] sm:$0xff]
  %v35 = vld [vmem:[%s1 + $0x58] sm:$0xff]
  %v36 = vld [vmem:[%s1 + $0x60] sm:$0xff]
  %v37 = vld [vmem:[%s1 + $0x68] sm:$0xff]
  %v38 = vld [vmem:[%s1 + $0x70] sm:$0xff]
  %v39 = vld [vmem:[%s1 + $0x78] sm:$0xff]
  %v40 = vld [vmem:[%s1 + $0x80] sm:$0xff]
  %v41 = vld [vmem:[%s1 + $0x88] sm:$0xff]
  %v42 = vld [vmem:[%s1 + $0x90] sm:$0xff]
  %v43 = vld [vmem:[%s1 + $0x98] sm:$0xff]
  %v44 = vld [vmem:[%s1 + $0xa0] sm:$0xff]
  %v45 = vld [vmem:[%s1 + $0xa8] sm:$0xff]
  %v46 = vld [vmem:[%s1 + $0xb0] sm:$0xff]
  %v47 = vld [vmem:[%s1 + $0xb8] sm:$0xff]
  %v48 = vld [vmem:[%s1 + $0xc0] sm:$0xff]
  %v49 = vld [vmem:[%s1 + $0xc8] sm:$0xff]
  %v50 = vld [vmem:[%s1 + $0xd0] sm:$0xff]
  %v51 = vld [vmem:[%s1 + $0xd8] sm:$0xff]
  %v52 = vld [vmem:[%s1 + $0xe0] sm:$0xff]
  %v53 = vld [vmem:[%s1 + $0xe8] sm:$0xff]
  %v54 = vld [vmem:[%s1 + $0xf0] sm:$0xff]
  %v55 = vld [vmem:[%s1 + $0xf8] sm:$0xff]
  %v56 = vld [vmem:[%s1 + $0x100] sm:$0xff]
  %v57 = vld [vmem:[%s1 + $0x108] sm:$0xff]
  %v58 = vld [vmem:[%s1 + $0x110] sm:$0xff]
  %v59 = vld [vmem:[%s1 + $0x118] sm:$0xff]
  %v60 = vld [vmem:[%s1 + $0x120] sm:$0xff]
  %v61 = vld [vmem:[%s1 + $0x128] sm:$0xff]
  %v62 = vld [vmem:[%s1 + $0x130] sm:$0xff]
  %v63 = vld [vmem:[%s1 + $0x138] sm:$0xff]
  %v64 = vld [vmem:[%s1 + $0x140] sm:$0xff]
  %v65 = vld [vmem:[%s1 + $0x148] sm:$0xff]
  %v66 = vld [vmem:[%s1 + $0x150] sm:$0xff]
  %v67 = vld [vmem:[%s1 + $0x158] sm:$0xff]
  %v68 = vld [vmem:[%s1 + $0x160] sm:$0xff]
  %v69 = vld [vmem:[%s1 + $0x168] sm:$0xff]
  %v70 = vld [vmem:[%s1 + $0x170] sm:$0xff]
  %v71 = vld [vmem:[%s1 + $0x178] sm:$0xff]
  %v72 = vld [vmem:[%s1 + $0x180] sm:$0xff]
  %v73 = vld [vmem:[%s1 + $0x188] sm:$0xff]
  %v74 = vld [vmem:[%s1 + $0x190] sm:$0xff]
  %v75 = vld [vmem:[%s1 + $0x198] sm:$0xff]
  %v76 = vld [vmem:[%s1 + $0x1a0] sm:$0xff]
  %v77 = vld [vmem:[%s1 + $0x1a8] sm:$0xff]
  %v78 = vld [vmem:[%s1 + $0x1b0] sm:$0xff]
  %v79 = vld [vmem:[%s1 + $0x1b8] sm:$0xff]
  %v80 = vld [vmem:[%s1 + $0x1c0] sm:$0xff]
  %v81 = vld [vmem:[%s1 + $0x1c8] sm:$0xff]
  %v82 = vld [vmem:[%s1 + $0x1d0] sm:$0xff]
  %v83 = vld [vmem:[%s1 + $0x1d8] sm:$0xff]
  %v84 = vld [vmem:[%s1 + $0x1e0] sm:$0xff]
  %v85 = vld [vmem:[%s1 + $0x1e8] sm:$0xff]
  %v86 = vld [vmem:[%s1 + $0x1f0] sm:$0xff]
  %v87 = vld [vmem:[%s1 + $0x1f8] sm:$0xff]
  %v88 = vld [vmem:[%s1 + $0x200] sm:$0xff]
  %v89 = vld [vmem:[%s1 + $0x208] sm:$0xff]
  %v90 = vld [vmem:[%s1 + $0x210] sm:$0xff]
  %v91 = vld [vmem:[%s1 + $0x218] sm:$0xff]
  %v92 = vld [vmem:[%s1 + $0x220] sm:$0xff]
  %v93 = vld [vmem:[%s1 + $0x228] sm:$0xff]
  %v94 = vld [vmem:[%s1 + $0x230] sm:$0xff]
  %v95 = vld [vmem:[%s1 + $0x238] sm:$0xff]
  %v96 = vld [vmem:[%s1 + $0x240] sm:$0xff]
  %v97 = vld [vmem:[%s1 + $0x248] sm:$0xff]
  %v98 = vld [vmem:[%s1 + $0x250] sm:$0xff]
  %v99 = vld [vmem:[%s1 + $0x258] sm:$0xff]
  %v100 = vld [vmem:[%s1 + $0x260] sm:$0xff]
  %v101 = vld [vmem:[%s1 + $0x268] sm:$0xff]
  %v102 = vld [vmem:[%s1 + $0x270] sm:$0xff]
  %v103 = vld [vmem:[%s1 + $0x278] sm:$0xff]
  %v104 = vld [vmem:[%s1 + $0x280] sm:$0xff]
  %v105 = vld [vmem:[%s1 + $0x288] sm:$0xff]
  %v106 = vld [vmem:[%s1 + $0x290] sm:$0xff]
  %v107 = vld [vmem:[%s1 + $0x298] sm:$0xff]
  %v108 = vld [vmem:[%s1 + $0x2a0] sm:$0xff]
  %v109 = vld [vmem:[%s1 + $0x2a8] sm:$0xff]
  %v110 = vld [vmem:[%s1 + $0x2b0] sm:$0xff]
  %v111 = vld [vmem:[%s1 + $0x2b8] sm:$0xff]
  %v112 = vld [vmem:[%s1 + $0x2c0] sm:$0xff]
  %v113 = vld [vmem:[%s1 + $0x2c8] sm:$0xff]
  %v114 = vld [vmem:[%s1 + $0x2d0] sm:$0xff]
  %v115 = vld [vmem:[%s1 + $0x2d8] sm:$0xff]
  %v116 = vld [vmem:[%s1 + $0x2e0] sm:$0xff]
  %v117 = vld [vmem:[%s1 + $0x2e8] sm:$0xff]
  %v118 = vld [vmem:[%s1 + $0x2f0] sm:$0xff]
  %v119 = vld [vmem:[%s1 + $0x2f8] sm:$0xff]
  %v120 = vld [vmem:[%s1 + $0x300] sm:$0xff]
  %v121 = vld [vmem:[%s1 + $0x308] sm:$0xff]
  %v122 = vld [vmem:[%s1 + $0x310] sm:$0xff]
  %v123 = vld [vmem:[%s1 + $0x318] sm:$0xff]
  %v124 = vld [vmem:[%s1 + $0x320] sm:$0xff]
  %v125 = vld [vmem:[%s1 + $0x328] sm:$0xff]
  %v126 = vld [vmem:[%s1 + $0x330] sm:$0xff]
  %v127 = vld [vmem:[%s1 + $0x338] sm:$0xff]
  %v128 = vld [vmem:[%s1 + $0x340] sm:$0xff]
  %v129 = vld [vmem:[%s1 + $0x348] sm:$0xff]
  %v130 = vld [vmem:[%s1 + $0x350] sm:$0xff]
  %v131 = vld [vmem:[%s1 + $0x358] sm:$0xff]
  %v132 = vld [vmem:[%s1 + $0x360] sm:$0xff]
  %v133 = vld [vmem:[%s1 + $0x368] sm:$0xff]
  %v134 = vld [vmem:[%s1 + $0x370] sm:$0xff]
  %v135 = vld [vmem:[%s1 + $0x378] sm:$0xff]
  %v136 = vld [vmem:[%s1 + $0x380] sm:$0xff]
  %v137 = vld [vmem:[%s1 + $0x388] sm:$0xff]
  %v138 = vld [vmem:[%s1 + $0x390] sm:$0xff]
  %v139 = vld [vmem:[%s1 + $0x398] sm:$0xff]
  %v140 = vld [vmem:[%s1 + $0x3a0] sm:$0xff]
  %v141 = vld [vmem:[%s1 + $0x3a8] sm:$0xff]
  %v142 = vld [vmem:[%s1 + $0x3b0] sm:$0xff]
  %v143 = vld [vmem:[%s1 + $0x3b8] sm:$0xff]
  %v144 = vld [vmem:[%s1 + $0x3c0] sm:$0xff]
  %v145 = vld [vmem:[%s1 + $0x3c8] sm:$0xff]
  %v146 = vld [vmem:[%s1 + $0x3d0] sm:$0xff]
  %v147 = vld [vmem:[%s1 + $0x3d8] sm:$0xff]
  %v148 = vld [vmem:[%s1 + $0x3e0] sm:$0xff]
  %v149 = vld [vmem:[%s1 + $0x3e8] sm:$0xff]
  %v150 = vld [vmem:[%s1 + $0x3f0] sm:$0xff]
  %v151 = vld [vmem:[%s1 + $0x3f8] sm:$0xff]
  %v152 = vld [vmem:[%s1 + $0x400] sm:$0xff]
  %v153 = vld [vmem:[%s1 + $0x408] sm:$0xff]
  %v154 = vld [vmem:[%s1 + $0x410] sm:$0xff]
  %v155 = vld [vmem:[%s1 + $0x418] sm:$0xff]
  %v156 = vld [vmem:[%s1 + $0x420] sm:$0xff]
  %v157 = vld [vmem:[%s1 + $0x428] sm:$0xff]
  %v158 = vld [vmem:[%s1 + $0x430] sm:$0xff]
  %v159 = vld [vmem:[%s1 + $0x438] sm:$0xff]
  %v160 = vld [vmem:[%s1 + $0x440] sm:$0xff]
  %v161 = vld [vmem:[%s1 + $0x448] sm:$0xff]
  %v162 = vld [vmem:[%s1 + $0x450] sm:$0xff]
  %v163 = vld [vmem:[%s1 + $0x458] sm:$0xff]
  %v164 = vld [vmem:[%s1 + $0x460] sm:$0xff]
  %v165 = vld [vmem:[%s1 + $0x468] sm:$0xff]
  %v166 = vld [vmem:[%s1 + $0x470] sm:$0xff]
  %v167 = vld [vmem:[%s1 + $0x478] sm:$0xff]
  %v168 = vld [vmem:[%s1 + $0x480] sm:$0xff]
  %v169 = vld [vmem:[%s1 + $0x488] sm:$0xff]
  %v170 = vld [vmem:[%s1 + $0x490] sm:$0xff]
  %v171 = vld [vmem:[%s1 + $0x498] sm:$0xff]
  %v172 = vld [vmem:[%s1 + $0x4a0] sm:$0xff]
  %v173 = vld [vmem:[%s1 + $0x4a8] sm:$0xff]
  %v174 = vld [vmem:[%s1 + $0x4b0] sm:$0xff]
  %v175 = vld [vmem:[%s1 + $0x4b8] sm:$0xff]
  %v176 = vld [vmem:[%s1 + $0x4c0] sm:$0xff]
  %v177 = vld [vmem:[%s1 + $0x4c8] sm:$0xff]
  %v178 = vld [vmem:[%s1 + $0x4d0] sm:$0xff]
  %v179 = vld [vmem:[%s1 + $0x4d8] sm:$0xff]
  %v180 = vld [vmem:[%s1 + $0x4e0] sm:$0xff]
  %v181 = vld [vmem:[%s1 + $0x4e8] sm:$0xff]
  %v182 = vld [vmem:[%s1 + $0x4f0] sm:$0xff]
  %v183 = vld [vmem:[%s1 + $0x4f8] sm:$0xff]
  %v184 = vld [vmem:[%s1 + $0x500] sm:$0xff]
  %v185 = vld [vmem:[%s1 + $0x508] sm:$0xff]
  %v186 = vld [vmem:[%s1 + $0x510] sm:$0xff]
  %v187 = vld [vmem:[%s1 + $0x518] sm:$0xff]
  %v188 = vld [vmem:[%s1 + $0x520] sm:$0xff]
  %v189 = vld [vmem:[%s1 + $0x528] sm:$0xff]
  %v190 = vld [vmem:[%s1 + $0x530] sm:$0xff]
  %v191 = vld [vmem:[%s1 + $0x538] sm:$0xff]
  %v192 = vld [vmem:[%s1 + $0x540] sm:$0xff]
  %v193 = vld [vmem:[%s1 + $0x548] sm:$0xff]
  %v194 = vld [vmem:[%s1 + $0x550] sm:$0xff]
  %v195 = vld [vmem:[%s1 + $0x558] sm:$0xff]
  %v196 = vld [vmem:[%s1 + $0x560] sm:$0xff]
  %v197 = vld [vmem:[%s1 + $0x568] sm:$0xff]
  %v198 = vld [vmem:[%s1 + $0x570] sm:$0xff]
  %v199 = vld [vmem:[%s1 + $0x578] sm:$0xff]
  %v200 = vld [vmem:[%s1 + $0x580] sm:$0xff]
  %v201 = vld [vmem:[%s1 + $0x588] sm:$0xff]
  %v202 = vld [vmem:[%s1 + $0x590] sm:$0xff]
  %v203 = vld [vmem:[%s1 + $0x598] sm:$0xff]
  %v204 = vld [vmem:[%s1 + $0x5a0] sm:$0xff]
  %v205 = vld [vmem:[%s1 + $0x5a8] sm:$0xff]
  %v206 = vld [vmem:[%s1 + $0x5b0] sm:$0xff]
  %v207 = vld [vmem:[%s1 + $0x5b8] sm:$0xff]
  %v208 = vld [vmem:[%s1 + $0x5c0] sm:$0xff]
  %v209 = vld [vmem:[%s1 + $0x5c8] sm:$0xff]
  %v210 = vld [vmem:[%s1 + $0x5d0] sm:$0xff]
  %v211 = vld [vmem:[%s1 + $0x5d8] sm:$0xff]
  %v212 = vld [vmem:[%s1 + $0x5e0] sm:$0xff]
  %v213 = vld [vmem:[%s1 + $0x5e8] sm:$0xff]
  %v214 = vld [vmem:[%s1 + $0x5f0] sm:$0xff]
  %v215 = vld [vmem:[%s1 + $0x5f8] sm:$0xff]
  %v216 = vld [vmem:[%s1 + $0x600] sm:$0xff]
  %v217 = vld [vmem:[%s1 + $0x608] sm:$0xff]
  %v218 = vld [vmem:[%s1 + $0x610] sm:$0xff]
  %v219 = vld [vmem:[%s1 + $0x618] sm:$0xff]
  %v220 = vld [vmem:[%s1 + $0x620] sm:$0xff]
  %v221 = vld [vmem:[%s1 + $0x628] sm:$0xff]
  %v222 = vld [vmem:[%s1 + $0x630] sm:$0xff]
  %v223 = vld [vmem:[%s1 + $0x638] sm:$0xff]
  %v224 = vld [vmem:[%s1 + $0x640] sm:$0xff]
  %v225 = vld [vmem:[%s1 + $0x648] sm:$0xff]
  %v226 = vld [vmem:[%s1 + $0x650] sm:$0xff]
  %v227 = vld [vmem:[%s1 + $0x658] sm:$0xff]
  %v228 = vld [vmem:[%s1 + $0x660] sm:$0xff]
  %v229 = vld [vmem:[%s1 + $0x668] sm:$0xff]
  %v230 = vld [vmem:[%s1 + $0x670] sm:$0xff]
  %v231 = vld [vmem:[%s1 + $0x678] sm:$0xff]
  %v232 = vld [vmem:[%s1 + $0x680] sm:$0xff]
  %v233 = vld [vmem:[%s1 + $0x688] sm:$0xff]
  %v234 = vld [vmem:[%s1 + $0x690] sm:$0xff]
  %v235 = vld [vmem:[%s1 + $0x698] sm:$0xff]
  %v236 = vld [vmem:[%s1 + $0x6a0] sm:$0xff]
  %v237 = vld [vmem:[%s1 + $0x6a8] sm:$0xff]
  %v238 = vld [vmem:[%s1 + $0x6b0] sm:$0xff]
  %v239 = vld [vmem:[%s1 + $0x6b8] sm:$0xff]
  %v240 = vld [vmem:[%s1 + $0x6c0] sm:$0xff]
  %v241 = vld [vmem:[%s1 + $0x6c8] sm:$0xff]
  %v242 = vld [vmem:[%s1 + $0x6d0] sm:$0xff]
  %v243 = vld [vmem:[%s1 + $0x6d8] sm:$0xff]
  %v244 = vld [vmem:[%s1 + $0x6e0] sm:$0xff]
  %v245 = vld [vmem:[%s1 + $0x6e8] sm:$0xff]
  %v246 = vld [vmem:[%s1 + $0x6f0] sm:$0xff]
  %v247 = vld [vmem:[%s1 + $0x6f8] sm:$0xff]
  %v248 = vld [vmem:[%s1 + $0x700] sm:$0xff]
  %v249 = vld [vmem:[%s1 + $0x708] sm:$0xff]
  %v250 = vld [vmem:[%s1 + $0x710] sm:$0xff]
  %v251 = vld [vmem:[%s1 + $0x718] sm:$0xff]
  %v252 = vld [vmem:[%s1 + $0x720] sm:$0xff]
  %v253 = vld [vmem:[%s1 + $0x728] sm:$0xff]
  %v254 = vld [vmem:[%s1 + $0x730] sm:$0xff]
  %v255 = vld [vmem:[%s1 + $0x738] sm:$0xff]
  %v256 = vld [vmem:[%s1 + $0x740] sm:$0xff]
  %v257 = vld [vmem:[%s1 + $0x748] sm:$0xff]
  %v258 = vld [vmem:[%s1 + $0x750] sm:$0xff]
  %v259 = vld [vmem:[%s1 + $0x758] sm:$0xff]
  %v260 = vld [vmem:[%s1 + $0x760] sm:$0xff]
  %v261 = vld [vmem:[%s1 + $0x768] sm:$0xff]
  %v262 = vld [vmem:[%s1 + $0x770] sm:$0xff]
  %v263 = vld [vmem:[%s1 + $0x778] sm:$0xff]
  %v264 = vld [vmem:[%s1 + $0x780] sm:$0xff]
  %v265 = vld [vmem:[%s1 + $0x788] sm:$0xff]
  %v266 = vld [vmem:[%s1 + $0x790] sm:$0xff]
  %v267 = vld [vmem:[%s1 + $0x798] sm:$0xff]
  %v268 = vld [vmem:[%s1 + $0x7a0] sm:$0xff]
  %v269 = vld [vmem:[%s1 + $0x7a8] sm:$0xff]
  %v270 = vld [vmem:[%s1 + $0x7b0] sm:$0xff]
  %v271 = vld [vmem:[%s1 + $0x7b8] sm:$0xff]
  %v272 = vld [vmem:[%s1 + $0x7c0] sm:$0xff]
  %v273 = vld [vmem:[%s1 + $0x7c8] sm:$0xff]
  %v274 = vld [vmem:[%s1 + $0x7d0] sm:$0xff]
  %v275 = vld [vmem:[%s1 + $0x7d8] sm:$0xff]
  %v276 = vld [vmem:[%s1 + $0x7e0] sm:$0xff]
  %v277 = vld [vmem:[%s1 + $0x7e8] sm:$0xff]
  %v278 = vld [vmem:[%s1 + $0x7f0] sm:$0xff]
  %v279 = vld [vmem:[%s1 + $0x7f8] sm:$0xff]
  %v280 = vld [vmem:[%s2] sm:$0xff]
  %v282 = vlaneseq
  %v283 = vshrl.u32 %v282, 7
  %v284 = vsub.s32 0, %v283
  %v285 = vrot.slane %v280, %v284
  %v286 = vlaneseq
  %v287 = vshrl.u32 %v286, 7
  %v288 = vsub.s32 1, %v287
  %v289 = vrot.slane %v280, %v288
  %v290 = vlaneseq
  %v291 = vshrl.u32 %v290, 7
  %v292 = vsub.s32 2, %v291
  %v293 = vrot.slane %v280, %v292
  %v294 = vlaneseq
  %v295 = vshrl.u32 %v294, 7
  %v296 = vsub.s32 3, %v295
  %v297 = vrot.slane %v280, %v296
  %v298 = vlaneseq
  %v299 = vshrl.u32 %v298, 7
  %v300 = vsub.s32 4, %v299
  %v301 = vrot.slane %v280, %v300
  %v302 = vlaneseq
  %v303 = vshrl.u32 %v302, 7
  %v304 = vsub.s32 5, %v303
  %v305 = vrot.slane %v280, %v304
  %v306 = vlaneseq
  %v307 = vshrl.u32 %v306, 7
  %v308 = vsub.s32 6, %v307
  %v309 = vrot.slane %v280, %v308
  %v310 = vlaneseq
  %v311 = vshrl.u32 %v310, 7
  %v312 = vsub.s32 7, %v311
  %v313 = vrot.slane %v280, %v312
  %v324 = vunpack.c.l.b16 %v22
  %v325 = vunpack.c.h.b16 %v22
  %v326 = vunpack.c.l.b16 %v23
  %v327 = vunpack.c.h.b16 %v23
  %v328 = vpack.c.b16 %v324, %v324
  %v329 = vpack.c.b16 %v325, %v325
  %v330 = vpack.c.b16 %v326, %v326
  %v331 = vpack.c.b16 %v327, %v327
  %v592 = vunpack.c.l.b16 %v24
  %v593 = vunpack.c.h.b16 %v24
  %v594 = vunpack.c.l.b16 %v25
  %v595 = vunpack.c.h.b16 %v25
  %v596 = vunpack.c.l.b16 %v26
  %v597 = vunpack.c.h.b16 %v26
  %v598 = vunpack.c.l.b16 %v27
  %v599 = vunpack.c.h.b16 %v27
  %v600 = vunpack.c.l.b16 %v28
  %v601 = vunpack.c.h.b16 %v28
  %v602 = vunpack.c.l.b16 %v29
  %v603 = vunpack.c.h.b16 %v29
  %v604 = vunpack.c.l.b16 %v30
  %v605 = vunpack.c.h.b16 %v30
  %v606 = vunpack.c.l.b16 %v31
  %v607 = vunpack.c.h.b16 %v31
  %v608 = vunpack.c.l.b16 %v32
  %v609 = vunpack.c.h.b16 %v32
  %v610 = vunpack.c.l.b16 %v33
  %v611 = vunpack.c.h.b16 %v33
  %v612 = vunpack.c.l.b16 %v34
  %v613 = vunpack.c.h.b16 %v34
  %v614 = vunpack.c.l.b16 %v35
  %v615 = vunpack.c.h.b16 %v35
  %v616 = vunpack.c.l.b16 %v36
  %v617 = vunpack.c.h.b16 %v36
  %v618 = vunpack.c.l.b16 %v37
  %v619 = vunpack.c.h.b16 %v37
  %v620 = vunpack.c.l.b16 %v38
  %v621 = vunpack.c.h.b16 %v38
  %v622 = vunpack.c.l.b16 %v39
  %v623 = vunpack.c.h.b16 %v39
  %v624 = vunpack.c.l.b16 %v40
  %v625 = vunpack.c.h.b16 %v40
  %v626 = vunpack.c.l.b16 %v41
  %v627 = vunpack.c.h.b16 %v41
  %v628 = vunpack.c.l.b16 %v42
  %v629 = vunpack.c.h.b16 %v42
  %v630 = vunpack.c.l.b16 %v43
  %v631 = vunpack.c.h.b16 %v43
  %v632 = vunpack.c.l.b16 %v44
  %v633 = vunpack.c.h.b16 %v44
  %v634 = vunpack.c.l.b16 %v45
  %v635 = vunpack.c.h.b16 %v45
  %v636 = vunpack.c.l.b16 %v46
  %v637 = vunpack.c.h.b16 %v46
  %v638 = vunpack.c.l.b16 %v47
  %v639 = vunpack.c.h.b16 %v47
  %v640 = vunpack.c.l.b16 %v48
  %v641 = vunpack.c.h.b16 %v48
  %v642 = vunpack.c.l.b16 %v49
  %v643 = vunpack.c.h.b16 %v49
  %v644 = vunpack.c.l.b16 %v50
  %v645 = vunpack.c.h.b16 %v50
  %v646 = vunpack.c.l.b16 %v51
  %v647 = vunpack.c.h.b16 %v51
  %v648 = vunpack.c.l.b16 %v52
  %v649 = vunpack.c.h.b16 %v52
  %v650 = vunpack.c.l.b16 %v53
  %v651 = vunpack.c.h.b16 %v53
  %v652 = vunpack.c.l.b16 %v54
  %v653 = vunpack.c.h.b16 %v54
  %v654 = vunpack.c.l.b16 %v55
  %v655 = vunpack.c.h.b16 %v55
  %v656 = vunpack.c.l.b16 %v56
  %v657 = vunpack.c.h.b16 %v56
  %v658 = vunpack.c.l.b16 %v57
  %v659 = vunpack.c.h.b16 %v57
  %v660 = vunpack.c.l.b16 %v58
  %v661 = vunpack.c.h.b16 %v58
  %v662 = vunpack.c.l.b16 %v59
  %v663 = vunpack.c.h.b16 %v59
  %v664 = vunpack.c.l.b16 %v60
  %v665 = vunpack.c.h.b16 %v60
  %v666 = vunpack.c.l.b16 %v61
  %v667 = vunpack.c.h.b16 %v61
  %v668 = vunpack.c.l.b16 %v62
  %v669 = vunpack.c.h.b16 %v62
  %v670 = vunpack.c.l.b16 %v63
  %v671 = vunpack.c.h.b16 %v63
  %v672 = vunpack.c.l.b16 %v64
  %v673 = vunpack.c.h.b16 %v64
  %v674 = vunpack.c.l.b16 %v65
  %v675 = vunpack.c.h.b16 %v65
  %v676 = vunpack.c.l.b16 %v66
  %v677 = vunpack.c.h.b16 %v66
  %v678 = vunpack.c.l.b16 %v67
  %v679 = vunpack.c.h.b16 %v67
  %v680 = vunpack.c.l.b16 %v68
  %v681 = vunpack.c.h.b16 %v68
  %v682 = vunpack.c.l.b16 %v69
  %v683 = vunpack.c.h.b16 %v69
  %v684 = vunpack.c.l.b16 %v70
  %v685 = vunpack.c.h.b16 %v70
  %v686 = vunpack.c.l.b16 %v71
  %v687 = vunpack.c.h.b16 %v71
  %v688 = vunpack.c.l.b16 %v72
  %v689 = vunpack.c.h.b16 %v72
  %v690 = vunpack.c.l.b16 %v73
  %v691 = vunpack.c.h.b16 %v73
  %v692 = vunpack.c.l.b16 %v74
  %v693 = vunpack.c.h.b16 %v74
  %v694 = vunpack.c.l.b16 %v75
  %v695 = vunpack.c.h.b16 %v75
  %v696 = vunpack.c.l.b16 %v76
  %v697 = vunpack.c.h.b16 %v76
  %v698 = vunpack.c.l.b16 %v77
  %v699 = vunpack.c.h.b16 %v77
  %v700 = vunpack.c.l.b16 %v78
  %v701 = vunpack.c.h.b16 %v78
  %v702 = vunpack.c.l.b16 %v79
  %v703 = vunpack.c.h.b16 %v79
  %v704 = vunpack.c.l.b16 %v80
  %v705 = vunpack.c.h.b16 %v80
  %v706 = vunpack.c.l.b16 %v81
  %v707 = vunpack.c.h.b16 %v81
  %v708 = vunpack.c.l.b16 %v82
  %v709 = vunpack.c.h.b16 %v82
  %v710 = vunpack.c.l.b16 %v83
  %v711 = vunpack.c.h.b16 %v83
  %v712 = vunpack.c.l.b16 %v84
  %v713 = vunpack.c.h.b16 %v84
  %v714 = vunpack.c.l.b16 %v85
  %v715 = vunpack.c.h.b16 %v85
  %v716 = vunpack.c.l.b16 %v86
  %v717 = vunpack.c.h.b16 %v86
  %v718 = vunpack.c.l.b16 %v87
  %v719 = vunpack.c.h.b16 %v87
  %v720 = vunpack.c.l.b16 %v88
  %v721 = vunpack.c.h.b16 %v88
  %v722 = vunpack.c.l.b16 %v89
  %v723 = vunpack.c.h.b16 %v89
  %v724 = vunpack.c.l.b16 %v90
  %v725 = vunpack.c.h.b16 %v90
  %v726 = vunpack.c.l.b16 %v91
  %v727 = vunpack.c.h.b16 %v91
  %v728 = vunpack.c.l.b16 %v92
  %v729 = vunpack.c.h.b16 %v92
  %v730 = vunpack.c.l.b16 %v93
  %v731 = vunpack.c.h.b16 %v93
  %v732 = vunpack.c.l.b16 %v94
  %v733 = vunpack.c.h.b16 %v94
  %v734 = vunpack.c.l.b16 %v95
  %v735 = vunpack.c.h.b16 %v95
  %v736 = vunpack.c.l.b16 %v96
  %v737 = vunpack.c.h.b16 %v96
  %v738 = vunpack.c.l.b16 %v97
  %v739 = vunpack.c.h.b16 %v97
  %v740 = vunpack.c.l.b16 %v98
  %v741 = vunpack.c.h.b16 %v98
  %v742 = vunpack.c.l.b16 %v99
  %v743 = vunpack.c.h.b16 %v99
  %v744 = vunpack.c.l.b16 %v100
  %v745 = vunpack.c.h.b16 %v100
  %v746 = vunpack.c.l.b16 %v101
  %v747 = vunpack.c.h.b16 %v101
  %v748 = vunpack.c.l.b16 %v102
  %v749 = vunpack.c.h.b16 %v102
  %v750 = vunpack.c.l.b16 %v103
  %v751 = vunpack.c.h.b16 %v103
  %v752 = vunpack.c.l.b16 %v104
  %v753 = vunpack.c.h.b16 %v104
  %v754 = vunpack.c.l.b16 %v105
  %v755 = vunpack.c.h.b16 %v105
  %v756 = vunpack.c.l.b16 %v106
  %v757 = vunpack.c.h.b16 %v106
  %v758 = vunpack.c.l.b16 %v107
  %v759 = vunpack.c.h.b16 %v107
  %v760 = vunpack.c.l.b16 %v108
  %v761 = vunpack.c.h.b16 %v108
  %v762 = vunpack.c.l.b16 %v109
  %v763 = vunpack.c.h.b16 %v109
  %v764 = vunpack.c.l.b16 %v110
  %v765 = vunpack.c.h.b16 %v110
  %v766 = vunpack.c.l.b16 %v111
  %v767 = vunpack.c.h.b16 %v111
  %v768 = vunpack.c.l.b16 %v112
  %v769 = vunpack.c.h.b16 %v112
  %v770 = vunpack.c.l.b16 %v113
  %v771 = vunpack.c.h.b16 %v113
  %v772 = vunpack.c.l.b16 %v114
  %v773 = vunpack.c.h.b16 %v114
  %v774 = vunpack.c.l.b16 %v115
  %v775 = vunpack.c.h.b16 %v115
  %v776 = vunpack.c.l.b16 %v116
  %v777 = vunpack.c.h.b16 %v116
  %v778 = vunpack.c.l.b16 %v117
  %v779 = vunpack.c.h.b16 %v117
  %v780 = vunpack.c.l.b16 %v118
  %v781 = vunpack.c.h.b16 %v118
  %v782 = vunpack.c.l.b16 %v119
  %v783 = vunpack.c.h.b16 %v119
  %v784 = vunpack.c.l.b16 %v120
  %v785 = vunpack.c.h.b16 %v120
  %v786 = vunpack.c.l.b16 %v121
  %v787 = vunpack.c.h.b16 %v121
  %v788 = vunpack.c.l.b16 %v122
  %v789 = vunpack.c.h.b16 %v122
  %v790 = vunpack.c.l.b16 %v123
  %v791 = vunpack.c.h.b16 %v123
  %v792 = vunpack.c.l.b16 %v124
  %v793 = vunpack.c.h.b16 %v124
  %v794 = vunpack.c.l.b16 %v125
  %v795 = vunpack.c.h.b16 %v125
  %v796 = vunpack.c.l.b16 %v126
  %v797 = vunpack.c.h.b16 %v126
  %v798 = vunpack.c.l.b16 %v127
  %v799 = vunpack.c.h.b16 %v127
  %v800 = vunpack.c.l.b16 %v128
  %v801 = vunpack.c.h.b16 %v128
  %v802 = vunpack.c.l.b16 %v129
  %v803 = vunpack.c.h.b16 %v129
  %v804 = vunpack.c.l.b16 %v130
  %v805 = vunpack.c.h.b16 %v130
  %v806 = vunpack.c.l.b16 %v131
  %v807 = vunpack.c.h.b16 %v131
  %v808 = vunpack.c.l.b16 %v132
  %v809 = vunpack.c.h.b16 %v132
  %v810 = vunpack.c.l.b16 %v133
  %v811 = vunpack.c.h.b16 %v133
  %v812 = vunpack.c.l.b16 %v134
  %v813 = vunpack.c.h.b16 %v134
  %v814 = vunpack.c.l.b16 %v135
  %v815 = vunpack.c.h.b16 %v135
  %v816 = vunpack.c.l.b16 %v136
  %v817 = vunpack.c.h.b16 %v136
  %v818 = vunpack.c.l.b16 %v137
  %v819 = vunpack.c.h.b16 %v137
  %v820 = vunpack.c.l.b16 %v138
  %v821 = vunpack.c.h.b16 %v138
  %v822 = vunpack.c.l.b16 %v139
  %v823 = vunpack.c.h.b16 %v139
  %v824 = vunpack.c.l.b16 %v140
  %v825 = vunpack.c.h.b16 %v140
  %v826 = vunpack.c.l.b16 %v141
  %v827 = vunpack.c.h.b16 %v141
  %v828 = vunpack.c.l.b16 %v142
  %v829 = vunpack.c.h.b16 %v142
  %v830 = vunpack.c.l.b16 %v143
  %v831 = vunpack.c.h.b16 %v143
  %v832 = vunpack.c.l.b16 %v144
  %v833 = vunpack.c.h.b16 %v144
  %v834 = vunpack.c.l.b16 %v145
  %v835 = vunpack.c.h.b16 %v145
  %v836 = vunpack.c.l.b16 %v146
  %v837 = vunpack.c.h.b16 %v146
  %v838 = vunpack.c.l.b16 %v147
  %v839 = vunpack.c.h.b16 %v147
  %v840 = vunpack.c.l.b16 %v148
  %v841 = vunpack.c.h.b16 %v148
  %v842 = vunpack.c.l.b16 %v149
  %v843 = vunpack.c.h.b16 %v149
  %v844 = vunpack.c.l.b16 %v150
  %v845 = vunpack.c.h.b16 %v150
  %v846 = vunpack.c.l.b16 %v151
  %v847 = vunpack.c.h.b16 %v151
  %v848 = vunpack.c.l.b16 %v152
  %v849 = vunpack.c.h.b16 %v152
  %v850 = vunpack.c.l.b16 %v153
  %v851 = vunpack.c.h.b16 %v153
  %v852 = vunpack.c.l.b16 %v154
  %v853 = vunpack.c.h.b16 %v154
  %v854 = vunpack.c.l.b16 %v155
  %v855 = vunpack.c.h.b16 %v155
  %v856 = vunpack.c.l.b16 %v156
  %v857 = vunpack.c.h.b16 %v156
  %v858 = vunpack.c.l.b16 %v157
  %v859 = vunpack.c.h.b16 %v157
  %v860 = vunpack.c.l.b16 %v158
  %v861 = vunpack.c.h.b16 %v158
  %v862 = vunpack.c.l.b16 %v159
  %v863 = vunpack.c.h.b16 %v159
  %v864 = vunpack.c.l.b16 %v160
  %v865 = vunpack.c.h.b16 %v160
  %v866 = vunpack.c.l.b16 %v161
  %v867 = vunpack.c.h.b16 %v161
  %v868 = vunpack.c.l.b16 %v162
  %v869 = vunpack.c.h.b16 %v162
  %v870 = vunpack.c.l.b16 %v163
  %v871 = vunpack.c.h.b16 %v163
  %v872 = vunpack.c.l.b16 %v164
  %v873 = vunpack.c.h.b16 %v164
  %v874 = vunpack.c.l.b16 %v165
  %v875 = vunpack.c.h.b16 %v165
  %v876 = vunpack.c.l.b16 %v166
  %v877 = vunpack.c.h.b16 %v166
  %v878 = vunpack.c.l.b16 %v167
  %v879 = vunpack.c.h.b16 %v167
  %v880 = vunpack.c.l.b16 %v168
  %v881 = vunpack.c.h.b16 %v168
  %v882 = vunpack.c.l.b16 %v169
  %v883 = vunpack.c.h.b16 %v169
  %v884 = vunpack.c.l.b16 %v170
  %v885 = vunpack.c.h.b16 %v170
  %v886 = vunpack.c.l.b16 %v171
  %v887 = vunpack.c.h.b16 %v171
  %v888 = vunpack.c.l.b16 %v172
  %v889 = vunpack.c.h.b16 %v172
  %v890 = vunpack.c.l.b16 %v173
  %v891 = vunpack.c.h.b16 %v173
  %v892 = vunpack.c.l.b16 %v174
  %v893 = vunpack.c.h.b16 %v174
  %v894 = vunpack.c.l.b16 %v175
  %v895 = vunpack.c.h.b16 %v175
  %v896 = vunpack.c.l.b16 %v176
  %v897 = vunpack.c.h.b16 %v176
  %v898 = vunpack.c.l.b16 %v177
  %v899 = vunpack.c.h.b16 %v177
  %v900 = vunpack.c.l.b16 %v178
  %v901 = vunpack.c.h.b16 %v178
  %v902 = vunpack.c.l.b16 %v179
  %v903 = vunpack.c.h.b16 %v179
  %v904 = vunpack.c.l.b16 %v180
  %v905 = vunpack.c.h.b16 %v180
  %v906 = vunpack.c.l.b16 %v181
  %v907 = vunpack.c.h.b16 %v181
  %v908 = vunpack.c.l.b16 %v182
  %v909 = vunpack.c.h.b16 %v182
  %v910 = vunpack.c.l.b16 %v183
  %v911 = vunpack.c.h.b16 %v183
  %v912 = vunpack.c.l.b16 %v184
  %v913 = vunpack.c.h.b16 %v184
  %v914 = vunpack.c.l.b16 %v185
  %v915 = vunpack.c.h.b16 %v185
  %v916 = vunpack.c.l.b16 %v186
  %v917 = vunpack.c.h.b16 %v186
  %v918 = vunpack.c.l.b16 %v187
  %v919 = vunpack.c.h.b16 %v187
  %v920 = vunpack.c.l.b16 %v188
  %v921 = vunpack.c.h.b16 %v188
  %v922 = vunpack.c.l.b16 %v189
  %v923 = vunpack.c.h.b16 %v189
  %v924 = vunpack.c.l.b16 %v190
  %v925 = vunpack.c.h.b16 %v190
  %v926 = vunpack.c.l.b16 %v191
  %v927 = vunpack.c.h.b16 %v191
  %v928 = vunpack.c.l.b16 %v192
  %v929 = vunpack.c.h.b16 %v192
  %v930 = vunpack.c.l.b16 %v193
  %v931 = vunpack.c.h.b16 %v193
  %v932 = vunpack.c.l.b16 %v194
  %v933 = vunpack.c.h.b16 %v194
  %v934 = vunpack.c.l.b16 %v195
  %v935 = vunpack.c.h.b16 %v195
  %v936 = vunpack.c.l.b16 %v196
  %v937 = vunpack.c.h.b16 %v196
  %v938 = vunpack.c.l.b16 %v197
  %v939 = vunpack.c.h.b16 %v197
  %v940 = vunpack.c.l.b16 %v198
  %v941 = vunpack.c.h.b16 %v198
  %v942 = vunpack.c.l.b16 %v199
  %v943 = vunpack.c.h.b16 %v199
  %v944 = vunpack.c.l.b16 %v200
  %v945 = vunpack.c.h.b16 %v200
  %v946 = vunpack.c.l.b16 %v201
  %v947 = vunpack.c.h.b16 %v201
  %v948 = vunpack.c.l.b16 %v202
  %v949 = vunpack.c.h.b16 %v202
  %v950 = vunpack.c.l.b16 %v203
  %v951 = vunpack.c.h.b16 %v203
  %v952 = vunpack.c.l.b16 %v204
  %v953 = vunpack.c.h.b16 %v204
  %v954 = vunpack.c.l.b16 %v205
  %v955 = vunpack.c.h.b16 %v205
  %v956 = vunpack.c.l.b16 %v206
  %v957 = vunpack.c.h.b16 %v206
  %v958 = vunpack.c.l.b16 %v207
  %v959 = vunpack.c.h.b16 %v207
  %v960 = vunpack.c.l.b16 %v208
  %v961 = vunpack.c.h.b16 %v208
  %v962 = vunpack.c.l.b16 %v209
  %v963 = vunpack.c.h.b16 %v209
  %v964 = vunpack.c.l.b16 %v210
  %v965 = vunpack.c.h.b16 %v210
  %v966 = vunpack.c.l.b16 %v211
  %v967 = vunpack.c.h.b16 %v211
  %v968 = vunpack.c.l.b16 %v212
  %v969 = vunpack.c.h.b16 %v212
  %v970 = vunpack.c.l.b16 %v213
  %v971 = vunpack.c.h.b16 %v213
  %v972 = vunpack.c.l.b16 %v214
  %v973 = vunpack.c.h.b16 %v214
  %v974 = vunpack.c.l.b16 %v215
  %v975 = vunpack.c.h.b16 %v215
  %v976 = vunpack.c.l.b16 %v216
  %v977 = vunpack.c.h.b16 %v216
  %v978 = vunpack.c.l.b16 %v217
  %v979 = vunpack.c.h.b16 %v217
  %v980 = vunpack.c.l.b16 %v218
  %v981 = vunpack.c.h.b16 %v218
  %v982 = vunpack.c.l.b16 %v219
  %v983 = vunpack.c.h.b16 %v219
  %v984 = vunpack.c.l.b16 %v220
  %v985 = vunpack.c.h.b16 %v220
  %v986 = vunpack.c.l.b16 %v221
  %v987 = vunpack.c.h.b16 %v221
  %v988 = vunpack.c.l.b16 %v222
  %v989 = vunpack.c.h.b16 %v222
  %v990 = vunpack.c.l.b16 %v223
  %v991 = vunpack.c.h.b16 %v223
  %v992 = vunpack.c.l.b16 %v224
  %v993 = vunpack.c.h.b16 %v224
  %v994 = vunpack.c.l.b16 %v225
  %v995 = vunpack.c.h.b16 %v225
  %v996 = vunpack.c.l.b16 %v226
  %v997 = vunpack.c.h.b16 %v226
  %v998 = vunpack.c.l.b16 %v227
  %v999 = vunpack.c.h.b16 %v227
  %v1000 = vunpack.c.l.b16 %v228
  %v1001 = vunpack.c.h.b16 %v228
  %v1002 = vunpack.c.l.b16 %v229
  %v1003 = vunpack.c.h.b16 %v229
  %v1004 = vunpack.c.l.b16 %v230
  %v1005 = vunpack.c.h.b16 %v230
  %v1006 = vunpack.c.l.b16 %v231
  %v1007 = vunpack.c.h.b16 %v231
  %v1008 = vunpack.c.l.b16 %v232
  %v1009 = vunpack.c.h.b16 %v232
  %v1010 = vunpack.c.l.b16 %v233
  %v1011 = vunpack.c.h.b16 %v233
  %v1012 = vunpack.c.l.b16 %v234
  %v1013 = vunpack.c.h.b16 %v234
  %v1014 = vunpack.c.l.b16 %v235
  %v1015 = vunpack.c.h.b16 %v235
  %v1016 = vunpack.c.l.b16 %v236
  %v1017 = vunpack.c.h.b16 %v236
  %v1018 = vunpack.c.l.b16 %v237
  %v1019 = vunpack.c.h.b16 %v237
  %v1020 = vunpack.c.l.b16 %v238
  %v1021 = vunpack.c.h.b16 %v238
  %v1022 = vunpack.c.l.b16 %v239
  %v1023 = vunpack.c.h.b16 %v239
  %v1024 = vunpack.c.l.b16 %v240
  %v1025 = vunpack.c.h.b16 %v240
  %v1026 = vunpack.c.l.b16 %v241
  %v1027 = vunpack.c.h.b16 %v241
  %v1028 = vunpack.c.l.b16 %v242
  %v1029 = vunpack.c.h.b16 %v242
  %v1030 = vunpack.c.l.b16 %v243
  %v1031 = vunpack.c.h.b16 %v243
  %v1032 = vunpack.c.l.b16 %v244
  %v1033 = vunpack.c.h.b16 %v244
  %v1034 = vunpack.c.l.b16 %v245
  %v1035 = vunpack.c.h.b16 %v245
  %v1036 = vunpack.c.l.b16 %v246
  %v1037 = vunpack.c.h.b16 %v246
  %v1038 = vunpack.c.l.b16 %v247
  %v1039 = vunpack.c.h.b16 %v247
  %v1040 = vunpack.c.l.b16 %v248
  %v1041 = vunpack.c.h.b16 %v248
  %v1042 = vunpack.c.l.b16 %v249
  %v1043 = vunpack.c.h.b16 %v249
  %v1044 = vunpack.c.l.b16 %v250
  %v1045 = vunpack.c.h.b16 %v250
  %v1046 = vunpack.c.l.b16 %v251
  %v1047 = vunpack.c.h.b16 %v251
  %v1048 = vunpack.c.l.b16 %v252
  %v1049 = vunpack.c.h.b16 %v252
  %v1050 = vunpack.c.l.b16 %v253
  %v1051 = vunpack.c.h.b16 %v253
  %v1052 = vunpack.c.l.b16 %v254
  %v1053 = vunpack.c.h.b16 %v254
  %v1054 = vunpack.c.l.b16 %v255
  %v1055 = vunpack.c.h.b16 %v255
  %v1056 = vunpack.c.l.b16 %v256
  %v1057 = vunpack.c.h.b16 %v256
  %v1058 = vunpack.c.l.b16 %v257
  %v1059 = vunpack.c.h.b16 %v257
  %v1060 = vunpack.c.l.b16 %v258
  %v1061 = vunpack.c.h.b16 %v258
  %v1062 = vunpack.c.l.b16 %v259
  %v1063 = vunpack.c.h.b16 %v259
  %v1064 = vunpack.c.l.b16 %v260
  %v1065 = vunpack.c.h.b16 %v260
  %v1066 = vunpack.c.l.b16 %v261
  %v1067 = vunpack.c.h.b16 %v261
  %v1068 = vunpack.c.l.b16 %v262
  %v1069 = vunpack.c.h.b16 %v262
  %v1070 = vunpack.c.l.b16 %v263
  %v1071 = vunpack.c.h.b16 %v263
  %v1072 = vunpack.c.l.b16 %v264
  %v1073 = vunpack.c.h.b16 %v264
  %v1074 = vunpack.c.l.b16 %v265
  %v1075 = vunpack.c.h.b16 %v265
  %v1076 = vunpack.c.l.b16 %v266
  %v1077 = vunpack.c.h.b16 %v266
  %v1078 = vunpack.c.l.b16 %v267
  %v1079 = vunpack.c.h.b16 %v267
  %v1080 = vunpack.c.l.b16 %v268
  %v1081 = vunpack.c.h.b16 %v268
  %v1082 = vunpack.c.l.b16 %v269
  %v1083 = vunpack.c.h.b16 %v269
  %v1084 = vunpack.c.l.b16 %v270
  %v1085 = vunpack.c.h.b16 %v270
  %v1086 = vunpack.c.l.b16 %v271
  %v1087 = vunpack.c.h.b16 %v271
  %v1088 = vunpack.c.l.b16 %v272
  %v1089 = vunpack.c.h.b16 %v272
  %v1090 = vunpack.c.l.b16 %v273
  %v1091 = vunpack.c.h.b16 %v273
  %v1092 = vunpack.c.l.b16 %v274
  %v1093 = vunpack.c.h.b16 %v274
  %v1094 = vunpack.c.l.b16 %v275
  %v1095 = vunpack.c.h.b16 %v275
  %v1096 = vunpack.c.l.b16 %v276
  %v1097 = vunpack.c.h.b16 %v276
  %v1098 = vunpack.c.l.b16 %v277
  %v1099 = vunpack.c.h.b16 %v277
  %v1100 = vunpack.c.l.b16 %v278
  %v1101 = vunpack.c.h.b16 %v278
  %v1102 = vunpack.c.l.b16 %v279
  %v1103 = vunpack.c.h.b16 %v279
  %v1104 = vpack.c.b16 %v600, %v592
  %v1105 = vpack.c.b16 %v601, %v593
  %v1106 = vpack.c.b16 %v602, %v594
  %v1107 = vpack.c.b16 %v603, %v595
  %v1108 = vpack.c.b16 %v604, %v596
  %v1109 = vpack.c.b16 %v605, %v597
  %v1110 = vpack.c.b16 %v606, %v598
  %v1111 = vpack.c.b16 %v607, %v599
  %v1112 = vpack.c.b16 %v616, %v608
  %v1113 = vpack.c.b16 %v617, %v609
  %v1114 = vpack.c.b16 %v618, %v610
  %v1115 = vpack.c.b16 %v619, %v611
  %v1116 = vpack.c.b16 %v620, %v612
  %v1117 = vpack.c.b16 %v621, %v613
  %v1118 = vpack.c.b16 %v622, %v614
  %v1119 = vpack.c.b16 %v623, %v615
  %v1120 = vpack.c.b16 %v632, %v624
  %v1121 = vpack.c.b16 %v633, %v625
  %v1122 = vpack.c.b16 %v634, %v626
  %v1123 = vpack.c.b16 %v635, %v627
  %v1124 = vpack.c.b16 %v636, %v628
  %v1125 = vpack.c.b16 %v637, %v629
  %v1126 = vpack.c.b16 %v638, %v630
  %v1127 = vpack.c.b16 %v639, %v631
  %v1128 = vpack.c.b16 %v648, %v640
  %v1129 = vpack.c.b16 %v649, %v641
  %v1130 = vpack.c.b16 %v650, %v642
  %v1131 = vpack.c.b16 %v651, %v643
  %v1132 = vpack.c.b16 %v652, %v644
  %v1133 = vpack.c.b16 %v653, %v645
  %v1134 = vpack.c.b16 %v654, %v646
  %v1135 = vpack.c.b16 %v655, %v647
  %v1136 = vpack.c.b16 %v664, %v656
  %v1137 = vpack.c.b16 %v665, %v657
  %v1138 = vpack.c.b16 %v666, %v658
  %v1139 = vpack.c.b16 %v667, %v659
  %v1140 = vpack.c.b16 %v668, %v660
  %v1141 = vpack.c.b16 %v669, %v661
  %v1142 = vpack.c.b16 %v670, %v662
  %v1143 = vpack.c.b16 %v671, %v663
  %v1144 = vpack.c.b16 %v680, %v672
  %v1145 = vpack.c.b16 %v681, %v673
  %v1146 = vpack.c.b16 %v682, %v674
  %v1147 = vpack.c.b16 %v683, %v675
  %v1148 = vpack.c.b16 %v684, %v676
  %v1149 = vpack.c.b16 %v685, %v677
  %v1150 = vpack.c.b16 %v686, %v678
  %v1151 = vpack.c.b16 %v687, %v679
  %v1152 = vpack.c.b16 %v696, %v688
  %v1153 = vpack.c.b16 %v697, %v689
  %v1154 = vpack.c.b16 %v698, %v690
  %v1155 = vpack.c.b16 %v699, %v691
  %v1156 = vpack.c.b16 %v700, %v692
  %v1157 = vpack.c.b16 %v701, %v693
  %v1158 = vpack.c.b16 %v702, %v694
  %v1159 = vpack.c.b16 %v703, %v695
  %v1160 = vpack.c.b16 %v712, %v704
  %v1161 = vpack.c.b16 %v713, %v705
  %v1162 = vpack.c.b16 %v714, %v706
  %v1163 = vpack.c.b16 %v715, %v707
  %v1164 = vpack.c.b16 %v716, %v708
  %v1165 = vpack.c.b16 %v717, %v709
  %v1166 = vpack.c.b16 %v718, %v710
  %v1167 = vpack.c.b16 %v719, %v711
  %v1168 = vpack.c.b16 %v728, %v720
  %v1169 = vpack.c.b16 %v729, %v721
  %v1170 = vpack.c.b16 %v730, %v722
  %v1171 = vpack.c.b16 %v731, %v723
  %v1172 = vpack.c.b16 %v732, %v724
  %v1173 = vpack.c.b16 %v733, %v725
  %v1174 = vpack.c.b16 %v734, %v726
  %v1175 = vpack.c.b16 %v735, %v727
  %v1176 = vpack.c.b16 %v744, %v736
  %v1177 = vpack.c.b16 %v745, %v737
  %v1178 = vpack.c.b16 %v746, %v738
  %v1179 = vpack.c.b16 %v747, %v739
  %v1180 = vpack.c.b16 %v748, %v740
  %v1181 = vpack.c.b16 %v749, %v741
  %v1182 = vpack.c.b16 %v750, %v742
  %v1183 = vpack.c.b16 %v751, %v743
  %v1184 = vpack.c.b16 %v760, %v752
  %v1185 = vpack.c.b16 %v761, %v753
  %v1186 = vpack.c.b16 %v762, %v754
  %v1187 = vpack.c.b16 %v763, %v755
  %v1188 = vpack.c.b16 %v764, %v756
  %v1189 = vpack.c.b16 %v765, %v757
  %v1190 = vpack.c.b16 %v766, %v758
  %v1191 = vpack.c.b16 %v767, %v759
  %v1192 = vpack.c.b16 %v776, %v768
  %v1193 = vpack.c.b16 %v777, %v769
  %v1194 = vpack.c.b16 %v778, %v770
  %v1195 = vpack.c.b16 %v779, %v771
  %v1196 = vpack.c.b16 %v780, %v772
  %v1197 = vpack.c.b16 %v781, %v773
  %v1198 = vpack.c.b16 %v782, %v774
  %v1199 = vpack.c.b16 %v783, %v775
  %v1200 = vpack.c.b16 %v792, %v784
  %v1201 = vpack.c.b16 %v793, %v785
  %v1202 = vpack.c.b16 %v794, %v786
  %v1203 = vpack.c.b16 %v795, %v787
  %v1204 = vpack.c.b16 %v796, %v788
  %v1205 = vpack.c.b16 %v797, %v789
  %v1206 = vpack.c.b16 %v798, %v790
  %v1207 = vpack.c.b16 %v799, %v791
  %v1208 = vpack.c.b16 %v808, %v800
  %v1209 = vpack.c.b16 %v809, %v801
  %v1210 = vpack.c.b16 %v810, %v802
  %v1211 = vpack.c.b16 %v811, %v803
  %v1212 = vpack.c.b16 %v812, %v804
  %v1213 = vpack.c.b16 %v813, %v805
  %v1214 = vpack.c.b16 %v814, %v806
  %v1215 = vpack.c.b16 %v815, %v807
  %v1216 = vpack.c.b16 %v824, %v816
  %v1217 = vpack.c.b16 %v825, %v817
  %v1218 = vpack.c.b16 %v826, %v818
  %v1219 = vpack.c.b16 %v827, %v819
  %v1220 = vpack.c.b16 %v828, %v820
  %v1221 = vpack.c.b16 %v829, %v821
  %v1222 = vpack.c.b16 %v830, %v822
  %v1223 = vpack.c.b16 %v831, %v823
  %v1224 = vpack.c.b16 %v840, %v832
  %v1225 = vpack.c.b16 %v841, %v833
  %v1226 = vpack.c.b16 %v842, %v834
  %v1227 = vpack.c.b16 %v843, %v835
  %v1228 = vpack.c.b16 %v844, %v836
  %v1229 = vpack.c.b16 %v845, %v837
  %v1230 = vpack.c.b16 %v846, %v838
  %v1231 = vpack.c.b16 %v847, %v839
  %v1232 = vpack.c.b16 %v856, %v848
  %v1233 = vpack.c.b16 %v857, %v849
  %v1234 = vpack.c.b16 %v858, %v850
  %v1235 = vpack.c.b16 %v859, %v851
  %v1236 = vpack.c.b16 %v860, %v852
  %v1237 = vpack.c.b16 %v861, %v853
  %v1238 = vpack.c.b16 %v862, %v854
  %v1239 = vpack.c.b16 %v863, %v855
  %v1240 = vpack.c.b16 %v872, %v864
  %v1241 = vpack.c.b16 %v873, %v865
  %v1242 = vpack.c.b16 %v874, %v866
  %v1243 = vpack.c.b16 %v875, %v867
  %v1244 = vpack.c.b16 %v876, %v868
  %v1245 = vpack.c.b16 %v877, %v869
  %v1246 = vpack.c.b16 %v878, %v870
  %v1247 = vpack.c.b16 %v879, %v871
  %v1248 = vpack.c.b16 %v888, %v880
  %v1249 = vpack.c.b16 %v889, %v881
  %v1250 = vpack.c.b16 %v890, %v882
  %v1251 = vpack.c.b16 %v891, %v883
  %v1252 = vpack.c.b16 %v892, %v884
  %v1253 = vpack.c.b16 %v893, %v885
  %v1254 = vpack.c.b16 %v894, %v886
  %v1255 = vpack.c.b16 %v895, %v887
  %v1256 = vpack.c.b16 %v904, %v896
  %v1257 = vpack.c.b16 %v905, %v897
  %v1258 = vpack.c.b16 %v906, %v898
  %v1259 = vpack.c.b16 %v907, %v899
  %v1260 = vpack.c.b16 %v908, %v900
  %v1261 = vpack.c.b16 %v909, %v901
  %v1262 = vpack.c.b16 %v910, %v902
  %v1263 = vpack.c.b16 %v911, %v903
  %v1264 = vpack.c.b16 %v920, %v912
  %v1265 = vpack.c.b16 %v921, %v913
  %v1266 = vpack.c.b16 %v922, %v914
  %v1267 = vpack.c.b16 %v923, %v915
  %v1268 = vpack.c.b16 %v924, %v916
  %v1269 = vpack.c.b16 %v925, %v917
  %v1270 = vpack.c.b16 %v926, %v918
  %v1271 = vpack.c.b16 %v927, %v919
  %v1272 = vpack.c.b16 %v936, %v928
  %v1273 = vpack.c.b16 %v937, %v929
  %v1274 = vpack.c.b16 %v938, %v930
  %v1275 = vpack.c.b16 %v939, %v931
  %v1276 = vpack.c.b16 %v940, %v932
  %v1277 = vpack.c.b16 %v941, %v933
  %v1278 = vpack.c.b16 %v942, %v934
  %v1279 = vpack.c.b16 %v943, %v935
  %v1280 = vpack.c.b16 %v952, %v944
  %v1281 = vpack.c.b16 %v953, %v945
  %v1282 = vpack.c.b16 %v954, %v946
  %v1283 = vpack.c.b16 %v955, %v947
  %v1284 = vpack.c.b16 %v956, %v948
  %v1285 = vpack.c.b16 %v957, %v949
  %v1286 = vpack.c.b16 %v958, %v950
  %v1287 = vpack.c.b16 %v959, %v951
  %v1288 = vpack.c.b16 %v968, %v960
  %v1289 = vpack.c.b16 %v969, %v961
  %v1290 = vpack.c.b16 %v970, %v962
  %v1291 = vpack.c.b16 %v971, %v963
  %v1292 = vpack.c.b16 %v972, %v964
  %v1293 = vpack.c.b16 %v973, %v965
  %v1294 = vpack.c.b16 %v974, %v966
  %v1295 = vpack.c.b16 %v975, %v967
  %v1296 = vpack.c.b16 %v984, %v976
  %v1297 = vpack.c.b16 %v985, %v977
  %v1298 = vpack.c.b16 %v986, %v978
  %v1299 = vpack.c.b16 %v987, %v979
  %v1300 = vpack.c.b16 %v988, %v980
  %v1301 = vpack.c.b16 %v989, %v981
  %v1302 = vpack.c.b16 %v990, %v982
  %v1303 = vpack.c.b16 %v991, %v983
  %v1304 = vpack.c.b16 %v1000, %v992
  %v1305 = vpack.c.b16 %v1001, %v993
  %v1306 = vpack.c.b16 %v1002, %v994
  %v1307 = vpack.c.b16 %v1003, %v995
  %v1308 = vpack.c.b16 %v1004, %v996
  %v1309 = vpack.c.b16 %v1005, %v997
  %v1310 = vpack.c.b16 %v1006, %v998
  %v1311 = vpack.c.b16 %v1007, %v999
  %v1312 = vpack.c.b16 %v1016, %v1008
  %v1313 = vpack.c.b16 %v1017, %v1009
  %v1314 = vpack.c.b16 %v1018, %v1010
  %v1315 = vpack.c.b16 %v1019, %v1011
  %v1316 = vpack.c.b16 %v1020, %v1012
  %v1317 = vpack.c.b16 %v1021, %v1013
  %v1318 = vpack.c.b16 %v1022, %v1014
  %v1319 = vpack.c.b16 %v1023, %v1015
  %v1320 = vpack.c.b16 %v1032, %v1024
  %v1321 = vpack.c.b16 %v1033, %v1025
  %v1322 = vpack.c.b16 %v1034, %v1026
  %v1323 = vpack.c.b16 %v1035, %v1027
  %v1324 = vpack.c.b16 %v1036, %v1028
  %v1325 = vpack.c.b16 %v1037, %v1029
  %v1326 = vpack.c.b16 %v1038, %v1030
  %v1327 = vpack.c.b16 %v1039, %v1031
  %v1328 = vpack.c.b16 %v1048, %v1040
  %v1329 = vpack.c.b16 %v1049, %v1041
  %v1330 = vpack.c.b16 %v1050, %v1042
  %v1331 = vpack.c.b16 %v1051, %v1043
  %v1332 = vpack.c.b16 %v1052, %v1044
  %v1333 = vpack.c.b16 %v1053, %v1045
  %v1334 = vpack.c.b16 %v1054, %v1046
  %v1335 = vpack.c.b16 %v1055, %v1047
  %v1336 = vpack.c.b16 %v1064, %v1056
  %v1337 = vpack.c.b16 %v1065, %v1057
  %v1338 = vpack.c.b16 %v1066, %v1058
  %v1339 = vpack.c.b16 %v1067, %v1059
  %v1340 = vpack.c.b16 %v1068, %v1060
  %v1341 = vpack.c.b16 %v1069, %v1061
  %v1342 = vpack.c.b16 %v1070, %v1062
  %v1343 = vpack.c.b16 %v1071, %v1063
  %v1344 = vpack.c.b16 %v1080, %v1072
  %v1345 = vpack.c.b16 %v1081, %v1073
  %v1346 = vpack.c.b16 %v1082, %v1074
  %v1347 = vpack.c.b16 %v1083, %v1075
  %v1348 = vpack.c.b16 %v1084, %v1076
  %v1349 = vpack.c.b16 %v1085, %v1077
  %v1350 = vpack.c.b16 %v1086, %v1078
  %v1351 = vpack.c.b16 %v1087, %v1079
  %v1352 = vpack.c.b16 %v1096, %v1088
  %v1353 = vpack.c.b16 %v1097, %v1089
  %v1354 = vpack.c.b16 %v1098, %v1090
  %v1355 = vpack.c.b16 %v1099, %v1091
  %v1356 = vpack.c.b16 %v1100, %v1092
  %v1357 = vpack.c.b16 %v1101, %v1093
  %v1358 = vpack.c.b16 %v1102, %v1094
  %v1359 = vpack.c.b16 %v1103, %v1095
  %1616 = vmatprep.subr.bf16.mxu0 %v1105
  %1617 = vmatpush1.bf16.msra.mxu0 %v1104
  %1618 = vmatprep.subr.bf16.mxu0 %v1113
  %1619 = vmatpush1.bf16.msra.mxu0 %v1112
  %1620 = vmatprep.subr.bf16.mxu0 %v1121
  %1621 = vmatpush1.bf16.msra.mxu0 %v1120
  %1622 = vmatprep.subr.bf16.mxu0 %v1129
  %1623 = vmatpush1.bf16.msra.mxu0 %v1128
  %1624 = vmatprep.subr.bf16.mxu0 %v1137
  %1625 = vmatpush1.bf16.msra.mxu0 %v1136
  %1626 = vmatprep.subr.bf16.mxu0 %v1145
  %1627 = vmatpush1.bf16.msra.mxu0 %v1144
  %1628 = vmatprep.subr.bf16.mxu0 %v1153
  %1629 = vmatpush1.bf16.msra.mxu0 %v1152
  %1630 = vmatprep.subr.bf16.mxu0 %v1161
  %1631 = vmatpush1.bf16.msra.mxu0 %v1160
  %1632 = vmatprep.subr.bf16.mxu0 %v1169
  %1633 = vmatpush1.bf16.msra.mxu0 %v1168
  %1634 = vmatprep.subr.bf16.mxu0 %v1177
  %1635 = vmatpush1.bf16.msra.mxu0 %v1176
  %1636 = vmatprep.subr.bf16.mxu0 %v1185
  %1637 = vmatpush1.bf16.msra.mxu0 %v1184
  %1638 = vmatprep.subr.bf16.mxu0 %v1193
  %1639 = vmatpush1.bf16.msra.mxu0 %v1192
  %1640 = vmatprep.subr.bf16.mxu0 %v1201
  %1641 = vmatpush1.bf16.msra.mxu0 %v1200
  %1642 = vmatprep.subr.bf16.mxu0 %v1209
  %1643 = vmatpush1.bf16.msra.mxu0 %v1208
  %1644 = vmatprep.subr.bf16.mxu0 %v1217
  %1645 = vmatpush1.bf16.msra.mxu0 %v1216
  %1646 = vmatprep.subr.bf16.mxu0 %v1225
  %1647 = vmatpush1.bf16.msra.mxu0 %v1224
  %1648 = vmatprep.mubr.bf16.mxu0 %v329
  %1649 = vmatmul.mubr.bf16.gmra.mrb[0].mxu0 %v328
  %v1650 = vpop.f32.mrb[0].mxu0
  %v1651 = vadd.f32 %v285, %v1650
  %v1652 = vpop.f32.mrb[0].mxu0
  %v1653 = vadd.f32 %v289, %v1652
  %v1654 = vpop.f32.mrb[0].mxu0
  %v1655 = vpop.f32.mrb[0].mxu0
  %1656 = vdwg.mxu0
  %1657 = vmatprep.subr.bf16.mxu0 %v1233
  %1658 = vmatpush1.bf16.msra.mxu0 %v1232
  %1659 = vmatprep.subr.bf16.mxu0 %v1241
  %1660 = vmatpush1.bf16.msra.mxu0 %v1240
  %1661 = vmatprep.subr.bf16.mxu0 %v1249
  %1662 = vmatpush1.bf16.msra.mxu0 %v1248
  %1663 = vmatprep.subr.bf16.mxu0 %v1257
  %1664 = vmatpush1.bf16.msra.mxu0 %v1256
  %1665 = vmatprep.subr.bf16.mxu0 %v1265
  %1666 = vmatpush1.bf16.msra.mxu0 %v1264
  %1667 = vmatprep.subr.bf16.mxu0 %v1273
  %1668 = vmatpush1.bf16.msra.mxu0 %v1272
  %1669 = vmatprep.subr.bf16.mxu0 %v1281
  %1670 = vmatpush1.bf16.msra.mxu0 %v1280
  %1671 = vmatprep.subr.bf16.mxu0 %v1289
  %1672 = vmatpush1.bf16.msra.mxu0 %v1288
  %1673 = vmatprep.subr.bf16.mxu0 %v1297
  %1674 = vmatpush1.bf16.msra.mxu0 %v1296
  %1675 = vmatprep.subr.bf16.mxu0 %v1305
  %1676 = vmatpush1.bf16.msra.mxu0 %v1304
  %1677 = vmatprep.subr.bf16.mxu0 %v1313
  %1678 = vmatpush1.bf16.msra.mxu0 %v1312
  %1679 = vmatprep.subr.bf16.mxu0 %v1321
  %1680 = vmatpush1.bf16.msra.mxu0 %v1320
  %1681 = vmatprep.subr.bf16.mxu0 %v1329
  %1682 = vmatpush1.bf16.msra.mxu0 %v1328
  %1683 = vmatprep.subr.bf16.mxu0 %v1337
  %1684 = vmatpush1.bf16.msra.mxu0 %v1336
  %1685 = vmatprep.subr.bf16.mxu0 %v1345
  %1686 = vmatpush1.bf16.msra.mxu0 %v1344
  %1687 = vmatprep.subr.bf16.mxu0 %v1353
  %1688 = vmatpush1.bf16.msra.mxu0 %v1352
  %1689 = vmatprep.mubr.bf16.mxu0 %v331
  %1690 = vmatmul.mubr.bf16.gmra.mrb[0].mxu0 %v330
  %v1691 = vpop.f32.mrb[0].mxu0
  %v1692 = vadd.f32 %v1651, %v1691
  %v1693 = vpop.f32.mrb[0].mxu0
  %v1694 = vadd.f32 %v1653, %v1693
  %v1695 = vpop.f32.mrb[0].mxu0
  %v1696 = vpop.f32.mrb[0].mxu0
  %1697 = vdwg.mxu0
  %1698 = vmatprep.subr.bf16.mxu0 %v1107
  %1699 = vmatpush1.bf16.msra.mxu0 %v1106
  %1700 = vmatprep.subr.bf16.mxu0 %v1115
  %1701 = vmatpush1.bf16.msra.mxu0 %v1114
  %1702 = vmatprep.subr.bf16.mxu0 %v1123
  %1703 = vmatpush1.bf16.msra.mxu0 %v1122
  %1704 = vmatprep.subr.bf16.mxu0 %v1131
  %1705 = vmatpush1.bf16.msra.mxu0 %v1130
  %1706 = vmatprep.subr.bf16.mxu0 %v1139
  %1707 = vmatpush1.bf16.msra.mxu0 %v1138
  %1708 = vmatprep.subr.bf16.mxu0 %v1147
  %1709 = vmatpush1.bf16.msra.mxu0 %v1146
  %1710 = vmatprep.subr.bf16.mxu0 %v1155
  %1711 = vmatpush1.bf16.msra.mxu0 %v1154
  %1712 = vmatprep.subr.bf16.mxu0 %v1163
  %1713 = vmatpush1.bf16.msra.mxu0 %v1162
  %1714 = vmatprep.subr.bf16.mxu0 %v1171
  %1715 = vmatpush1.bf16.msra.mxu0 %v1170
  %1716 = vmatprep.subr.bf16.mxu0 %v1179
  %1717 = vmatpush1.bf16.msra.mxu0 %v1178
  %1718 = vmatprep.subr.bf16.mxu0 %v1187
  %1719 = vmatpush1.bf16.msra.mxu0 %v1186
  %1720 = vmatprep.subr.bf16.mxu0 %v1195
  %1721 = vmatpush1.bf16.msra.mxu0 %v1194
  %1722 = vmatprep.subr.bf16.mxu0 %v1203
  %1723 = vmatpush1.bf16.msra.mxu0 %v1202
  %1724 = vmatprep.subr.bf16.mxu0 %v1211
  %1725 = vmatpush1.bf16.msra.mxu0 %v1210
  %1726 = vmatprep.subr.bf16.mxu0 %v1219
  %1727 = vmatpush1.bf16.msra.mxu0 %v1218
  %1728 = vmatprep.subr.bf16.mxu0 %v1227
  %1729 = vmatpush1.bf16.msra.mxu0 %v1226
  %1730 = vmatprep.mubr.bf16.mxu0 %v329
  %1731 = vmatmul.mubr.bf16.gmra.mrb[0].mxu0 %v328
  %v1732 = vpop.f32.mrb[0].mxu0
  %v1733 = vadd.f32 %v293, %v1732
  %v1734 = vpop.f32.mrb[0].mxu0
  %v1735 = vadd.f32 %v297, %v1734
  %v1736 = vpop.f32.mrb[0].mxu0
  %v1737 = vpop.f32.mrb[0].mxu0
  %1738 = vdwg.mxu0
  %1739 = vmatprep.subr.bf16.mxu0 %v1235
  %1740 = vmatpush1.bf16.msra.mxu0 %v1234
  %1741 = vmatprep.subr.bf16.mxu0 %v1243
  %1742 = vmatpush1.bf16.msra.mxu0 %v1242
  %1743 = vmatprep.subr.bf16.mxu0 %v1251
  %1744 = vmatpush1.bf16.msra.mxu0 %v1250
  %1745 = vmatprep.subr.bf16.mxu0 %v1259
  %1746 = vmatpush1.bf16.msra.mxu0 %v1258
  %1747 = vmatprep.subr.bf16.mxu0 %v1267
  %1748 = vmatpush1.bf16.msra.mxu0 %v1266
  %1749 = vmatprep.subr.bf16.mxu0 %v1275
  %1750 = vmatpush1.bf16.msra.mxu0 %v1274
  %1751 = vmatprep.subr.bf16.mxu0 %v1283
  %1752 = vmatpush1.bf16.msra.mxu0 %v1282
  %1753 = vmatprep.subr.bf16.mxu0 %v1291
  %1754 = vmatpush1.bf16.msra.mxu0 %v1290
  %1755 = vmatprep.subr.bf16.mxu0 %v1299
  %1756 = vmatpush1.bf16.msra.mxu0 %v1298
  %1757 = vmatprep.subr.bf16.mxu0 %v1307
  %1758 = vmatpush1.bf16.msra.mxu0 %v1306
  %1759 = vmatprep.subr.bf16.mxu0 %v1315
  %1760 = vmatpush1.bf16.msra.mxu0 %v1314
  %1761 = vmatprep.subr.bf16.mxu0 %v1323
  %1762 = vmatpush1.bf16.msra.mxu0 %v1322
  %1763 = vmatprep.subr.bf16.mxu0 %v1331
  %1764 = vmatpush1.bf16.msra.mxu0 %v1330
  %1765 = vmatprep.subr.bf16.mxu0 %v1339
  %1766 = vmatpush1.bf16.msra.mxu0 %v1338
  %1767 = vmatprep.subr.bf16.mxu0 %v1347
  %1768 = vmatpush1.bf16.msra.mxu0 %v1346
  %1769 = vmatprep.subr.bf16.mxu0 %v1355
  %1770 = vmatpush1.bf16.msra.mxu0 %v1354
  %1771 = vmatprep.mubr.bf16.mxu0 %v331
  %1772 = vmatmul.mubr.bf16.gmra.mrb[0].mxu0 %v330
  %v1773 = vpop.f32.mrb[0].mxu0
  %v1774 = vadd.f32 %v1733, %v1773
  %v1775 = vpop.f32.mrb[0].mxu0
  %v1776 = vadd.f32 %v1735, %v1775
  %v1777 = vpop.f32.mrb[0].mxu0
  %v1778 = vpop.f32.mrb[0].mxu0
  %1779 = vdwg.mxu0
  %1780 = vmatprep.subr.bf16.mxu0 %v1109
  %1781 = vmatpush1.bf16.msra.mxu0 %v1108
  %1782 = vmatprep.subr.bf16.mxu0 %v1117
  %1783 = vmatpush1.bf16.msra.mxu0 %v1116
  %1784 = vmatprep.subr.bf16.mxu0 %v1125
  %1785 = vmatpush1.bf16.msra.mxu0 %v1124
  %1786 = vmatprep.subr.bf16.mxu0 %v1133
  %1787 = vmatpush1.bf16.msra.mxu0 %v1132
  %1788 = vmatprep.subr.bf16.mxu0 %v1141
  %1789 = vmatpush1.bf16.msra.mxu0 %v1140
  %1790 = vmatprep.subr.bf16.mxu0 %v1149
  %1791 = vmatpush1.bf16.msra.mxu0 %v1148
  %1792 = vmatprep.subr.bf16.mxu0 %v1157
  %1793 = vmatpush1.bf16.msra.mxu0 %v1156
  %1794 = vmatprep.subr.bf16.mxu0 %v1165
  %1795 = vmatpush1.bf16.msra.mxu0 %v1164
  %1796 = vmatprep.subr.bf16.mxu0 %v1173
  %1797 = vmatpush1.bf16.msra.mxu0 %v1172
  %1798 = vmatprep.subr.bf16.mxu0 %v1181
  %1799 = vmatpush1.bf16.msra.mxu0 %v1180
  %1800 = vmatprep.subr.bf16.mxu0 %v1189
  %1801 = vmatpush1.bf16.msra.mxu0 %v1188
  %1802 = vmatprep.subr.bf16.mxu0 %v1197
  %1803 = vmatpush1.bf16.msra.mxu0 %v1196
  %1804 = vmatprep.subr.bf16.mxu0 %v1205
  %1805 = vmatpush1.bf16.msra.mxu0 %v1204
  %1806 = vmatprep.subr.bf16.mxu0 %v1213
  %1807 = vmatpush1.bf16.msra.mxu0 %v1212
  %1808 = vmatprep.subr.bf16.mxu0 %v1221
  %1809 = vmatpush1.bf16.msra.mxu0 %v1220
  %1810 = vmatprep.subr.bf16.mxu0 %v1229
  %1811 = vmatpush1.bf16.msra.mxu0 %v1228
  %1812 = vmatprep.mubr.bf16.mxu0 %v329
  %1813 = vmatmul.mubr.bf16.gmra.mrb[0].mxu0 %v328
  %v1814 = vpop.f32.mrb[0].mxu0
  %v1815 = vadd.f32 %v301, %v1814
  %v1816 = vpop.f32.mrb[0].mxu0
  %v1817 = vadd.f32 %v305, %v1816
  %v1818 = vpop.f32.mrb[0].mxu0
  %v1819 = vpop.f32.mrb[0].mxu0
  %1820 = vdwg.mxu0
  %1821 = vmatprep.subr.bf16.mxu0 %v1237
  %1822 = vmatpush1.bf16.msra.mxu0 %v1236
  %1823 = vmatprep.subr.bf16.mxu0 %v1245
  %1824 = vmatpush1.bf16.msra.mxu0 %v1244
  %1825 = vmatprep.subr.bf16.mxu0 %v1253
  %1826 = vmatpush1.bf16.msra.mxu0 %v1252
  %1827 = vmatprep.subr.bf16.mxu0 %v1261
  %1828 = vmatpush1.bf16.msra.mxu0 %v1260
  %1829 = vmatprep.subr.bf16.mxu0 %v1269
  %1830 = vmatpush1.bf16.msra.mxu0 %v1268
  %1831 = vmatprep.subr.bf16.mxu0 %v1277
  %1832 = vmatpush1.bf16.msra.mxu0 %v1276
  %1833 = vmatprep.subr.bf16.mxu0 %v1285
  %1834 = vmatpush1.bf16.msra.mxu0 %v1284
  %1835 = vmatprep.subr.bf16.mxu0 %v1293
  %1836 = vmatpush1.bf16.msra.mxu0 %v1292
  %1837 = vmatprep.subr.bf16.mxu0 %v1301
  %1838 = vmatpush1.bf16.msra.mxu0 %v1300
  %1839 = vmatprep.subr.bf16.mxu0 %v1309
  %1840 = vmatpush1.bf16.msra.mxu0 %v1308
  %1841 = vmatprep.subr.bf16.mxu0 %v1317
  %1842 = vmatpush1.bf16.msra.mxu0 %v1316
  %1843 = vmatprep.subr.bf16.mxu0 %v1325
  %1844 = vmatpush1.bf16.msra.mxu0 %v1324
  %1845 = vmatprep.subr.bf16.mxu0 %v1333
  %1846 = vmatpush1.bf16.msra.mxu0 %v1332
  %1847 = vmatprep.subr.bf16.mxu0 %v1341
  %1848 = vmatpush1.bf16.msra.mxu0 %v1340
  %1849 = vmatprep.subr.bf16.mxu0 %v1349
  %1850 = vmatpush1.bf16.msra.mxu0 %v1348
  %1851 = vmatprep.subr.bf16.mxu0 %v1357
  %1852 = vmatpush1.bf16.msra.mxu0 %v1356
  %1853 = vmatprep.mubr.bf16.mxu0 %v331
  %1854 = vmatmul.mubr.bf16.gmra.mrb[0].mxu0 %v330
  %v1855 = vpop.f32.mrb[0].mxu0
  %v1856 = vadd.f32 %v1815, %v1855
  %v1857 = vpop.f32.mrb[0].mxu0
  %v1858 = vadd.f32 %v1817, %v1857
  %v1859 = vpop.f32.mrb[0].mxu0
  %v1860 = vpop.f32.mrb[0].mxu0
  %1861 = vdwg.mxu0
  %1862 = vmatprep.subr.bf16.mxu0 %v1111
  %1863 = vmatpush1.bf16.msra.mxu0 %v1110
  %1864 = vmatprep.subr.bf16.mxu0 %v1119
  %1865 = vmatpush1.bf16.msra.mxu0 %v1118
  %1866 = vmatprep.subr.bf16.mxu0 %v1127
  %1867 = vmatpush1.bf16.msra.mxu0 %v1126
  %1868 = vmatprep.subr.bf16.mxu0 %v1135
  %1869 = vmatpush1.bf16.msra.mxu0 %v1134
  %1870 = vmatprep.subr.bf16.mxu0 %v1143
  %1871 = vmatpush1.bf16.msra.mxu0 %v1142
  %1872 = vmatprep.subr.bf16.mxu0 %v1151
  %1873 = vmatpush1.bf16.msra.mxu0 %v1150
  %1874 = vmatprep.subr.bf16.mxu0 %v1159
  %1875 = vmatpush1.bf16.msra.mxu0 %v1158
  %1876 = vmatprep.subr.bf16.mxu0 %v1167
  %1877 = vmatpush1.bf16.msra.mxu0 %v1166
  %1878 = vmatprep.subr.bf16.mxu0 %v1175
  %1879 = vmatpush1.bf16.msra.mxu0 %v1174
  %1880 = vmatprep.subr.bf16.mxu0 %v1183
  %1881 = vmatpush1.bf16.msra.mxu0 %v1182
  %1882 = vmatprep.subr.bf16.mxu0 %v1191
  %1883 = vmatpush1.bf16.msra.mxu0 %v1190
  %1884 = vmatprep.subr.bf16.mxu0 %v1199
  %1885 = vmatpush1.bf16.msra.mxu0 %v1198
  %1886 = vmatprep.subr.bf16.mxu0 %v1207
  %1887 = vmatpush1.bf16.msra.mxu0 %v1206
  %1888 = vmatprep.subr.bf16.mxu0 %v1215
  %1889 = vmatpush1.bf16.msra.mxu0 %v1214
  %1890 = vmatprep.subr.bf16.mxu0 %v1223
  %1891 = vmatpush1.bf16.msra.mxu0 %v1222
  %1892 = vmatprep.subr.bf16.mxu0 %v1231
  %1893 = vmatpush1.bf16.msra.mxu0 %v1230
  %1894 = vmatprep.mubr.bf16.mxu0 %v329
  %1895 = vmatmul.mubr.bf16.gmra.mrb[0].mxu0 %v328
  %v1896 = vpop.f32.mrb[0].mxu0
  %v1897 = vadd.f32 %v309, %v1896
  %v1898 = vpop.f32.mrb[0].mxu0
  %v1899 = vadd.f32 %v313, %v1898
  %v1900 = vpop.f32.mrb[0].mxu0
  %v1901 = vpop.f32.mrb[0].mxu0
  %1902 = vdwg.mxu0
  %1903 = vmatprep.subr.bf16.mxu0 %v1239
  %1904 = vmatpush1.bf16.msra.mxu0 %v1238
  %1905 = vmatprep.subr.bf16.mxu0 %v1247
  %1906 = vmatpush1.bf16.msra.mxu0 %v1246
  %1907 = vmatprep.subr.bf16.mxu0 %v1255
  %1908 = vmatpush1.bf16.msra.mxu0 %v1254
  %1909 = vmatprep.subr.bf16.mxu0 %v1263
  %1910 = vmatpush1.bf16.msra.mxu0 %v1262
  %1911 = vmatprep.subr.bf16.mxu0 %v1271
  %1912 = vmatpush1.bf16.msra.mxu0 %v1270
  %1913 = vmatprep.subr.bf16.mxu0 %v1279
  %1914 = vmatpush1.bf16.msra.mxu0 %v1278
  %1915 = vmatprep.subr.bf16.mxu0 %v1287
  %1916 = vmatpush1.bf16.msra.mxu0 %v1286
  %1917 = vmatprep.subr.bf16.mxu0 %v1295
  %1918 = vmatpush1.bf16.msra.mxu0 %v1294
  %1919 = vmatprep.subr.bf16.mxu0 %v1303
  %1920 = vmatpush1.bf16.msra.mxu0 %v1302
  %1921 = vmatprep.subr.bf16.mxu0 %v1311
  %1922 = vmatpush1.bf16.msra.mxu0 %v1310
  %1923 = vmatprep.subr.bf16.mxu0 %v1319
  %1924 = vmatpush1.bf16.msra.mxu0 %v1318
  %1925 = vmatprep.subr.bf16.mxu0 %v1327
  %1926 = vmatpush1.bf16.msra.mxu0 %v1326
  %1927 = vmatprep.subr.bf16.mxu0 %v1335
  %1928 = vmatpush1.bf16.msra.mxu0 %v1334
  %1929 = vmatprep.subr.bf16.mxu0 %v1343
  %1930 = vmatpush1.bf16.msra.mxu0 %v1342
  %1931 = vmatprep.subr.bf16.mxu0 %v1351
  %1932 = vmatpush1.bf16.msra.mxu0 %v1350
  %1933 = vmatprep.subr.bf16.mxu0 %v1359
  %1934 = vmatpush1.bf16.msra.mxu0 %v1358
  %1935 = vmatprep.mubr.bf16.mxu0 %v331
  %1936 = vmatmul.mubr.bf16.gmra.mrb[0].mxu0 %v330
  %v1937 = vpop.f32.mrb[0].mxu0
  %v1938 = vadd.f32 %v1897, %v1937
  %v1939 = vpop.f32.mrb[0].mxu0
  %v1940 = vadd.f32 %v1899, %v1939
  %v1941 = vpop.f32.mrb[0].mxu0
  %v1942 = vpop.f32.mrb[0].mxu0
  %1943 = vdwg.mxu0
  %vm1944 = vcmp.ge.f32.partialorder %v1692, 0.0
  %vm1945 = vcmp.ge.f32.partialorder %v1694, 0.0
  %vm1946 = vcmp.ge.f32.partialorder %v1774, 0.0
  %vm1947 = vcmp.ge.f32.partialorder %v1776, 0.0
  %vm1948 = vcmp.ge.f32.partialorder %v1856, 0.0
  %vm1949 = vcmp.ge.f32.partialorder %v1858, 0.0
  %vm1950 = vcmp.ge.f32.partialorder %v1938, 0.0
  %vm1951 = vcmp.ge.f32.partialorder %v1940, 0.0
  %v1952 = vmul.f32 %v1692, 0.01
  %v1953 = vmul.f32 %v1694, 0.01
  %v1954 = vmul.f32 %v1774, 0.01
  %v1955 = vmul.f32 %v1776, 0.01
  %v1956 = vmul.f32 %v1856, 0.01
  %v1957 = vmul.f32 %v1858, 0.01
  %v1958 = vmul.f32 %v1938, 0.01
  %v1959 = vmul.f32 %v1940, 0.01
  %v1960 = vsel %vm1944, %v1692, %v1952
  %v1961 = vsel %vm1945, %v1694, %v1953
  %v1962 = vsel %vm1946, %v1774, %v1954
  %v1963 = vsel %vm1947, %v1776, %v1955
  %v1964 = vsel %vm1948, %v1856, %v1956
  %v1965 = vsel %vm1949, %v1858, %v1957
  %v1966 = vsel %vm1950, %v1938, %v1958
  %v1967 = vsel %vm1951, %v1940, %v1959
  %v1968 = vld [vmem:[%s3] sm:$0xff]
  %v1970 = vlaneseq
  %v1971 = vshrl.u32 %v1970, 7
  %v1972 = vsub.s32 0, %v1971
  %v1973 = vrot.slane %v1968, %v1972
  %v1974 = vlaneseq
  %v1975 = vshrl.u32 %v1974, 7
  %v1976 = vsub.s32 1, %v1975
  %v1977 = vrot.slane %v1968, %v1976
  %v1978 = vlaneseq
  %v1979 = vshrl.u32 %v1978, 7
  %v1980 = vsub.s32 2, %v1979
  %v1981 = vrot.slane %v1968, %v1980
  %v1982 = vlaneseq
  %v1983 = vshrl.u32 %v1982, 7
  %v1984 = vsub.s32 3, %v1983
  %v1985 = vrot.slane %v1968, %v1984
  %v1986 = vlaneseq
  %v1987 = vshrl.u32 %v1986, 7
  %v1988 = vsub.s32 4, %v1987
  %v1989 = vrot.slane %v1968, %v1988
  %v1990 = vlaneseq
  %v1991 = vshrl.u32 %v1990, 7
  %v1992 = vsub.s32 5, %v1991
  %v1993 = vrot.slane %v1968, %v1992
  %v1994 = vlaneseq
  %v1995 = vshrl.u32 %v1994, 7
  %v1996 = vsub.s32 6, %v1995
  %v1997 = vrot.slane %v1968, %v1996
  %v1998 = vlaneseq
  %v1999 = vshrl.u32 %v1998, 7
  %v2000 = vsub.s32 7, %v1999
  %v2001 = vrot.slane %v1968, %v2000
  %v2010 = vmul.f32 %v1960, %v1973
  %v2011 = vmul.f32 %v1961, %v1977
  %v2012 = vmul.f32 %v1962, %v1981
  %v2013 = vmul.f32 %v1963, %v1985
  %v2014 = vmul.f32 %v1964, %v1989
  %v2015 = vmul.f32 %v1965, %v1993
  %v2016 = vmul.f32 %v1966, %v1997
  %v2017 = vmul.f32 %v1967, %v2001
  %v2018 = vadd.f32 %v2010, %v2011
  %v2019 = vadd.f32 %v2018, %v2012
  %v2020 = vadd.f32 %v2019, %v2013
  %v2021 = vadd.f32 %v2020, %v2014
  %v2022 = vadd.f32 %v2021, %v2015
  %v2023 = vadd.f32 %v2022, %v2016
  %v2024 = vadd.f32 %v2023, %v2017
  %2025 = vadd.xlane.f32.xlu0 %v2024
  %v2026 = vpop.xlane.xlu0 %2025
  %v2027 = vld [vmem:[#allocation2] sm:$0x1]
  %v2029 = vlaneseq
  %v2030 = vshrl.u32 %v2029, 7
  %v2031 = vsub.s32 0, %v2030
  %v2032 = vrot.slane %v2027, %v2031
  %v2034 = vadd.f32 %v2026, %v2032
  %v2035 = vand.u32 2147483647, %v2034
  %v2036 = vsub.f32 0.0, %v2035
  %v2037 = vmul.f32 %v2036, 1.442695
  %v2038 = vpow.pop %v2037
  %vm2039 = vcmp.ge.f32.partialorder %v2034, 0.0
  %v2040 = vadd.f32 %v2038, 1.0
  %v2041 = vrcp.pop %v2040
  %v2042 = vmul.f32 1.0, %v2041
  %v2043 = vmul.f32 %v2038, %v2041
  %v2044 = vsel %vm2039, %v2042, %v2043
  %vm2045 = vcmask 7168
  %2046 = vst.msk [vmem:[%s5] sm:$0xff] %vm2045, %v2044
  // Predicated region
  $region22: #{discriminator_forward.17} parent=0 // pred_check
    _
  $region23: #{discriminator_forward.17} parent=0 // pred_check_branch
    %2048 = sbr.rel (0) target = $region25
  $region24: #{discriminator_forward.17} parent=0 // pred_region
    _
  $region25: #{discriminator_forward.17} parent=0 // pred_fallthru
    _
  // Predicated region
  $region26: #{discriminator_forward.17} parent=0 // pred_check
    _
  $region27: #{discriminator_forward.17} parent=0 // pred_check_branch
    %2050 = sbr.rel (0) target = $region29
  $region28: #{discriminator_forward.17} parent=0 // pred_region
    _
  $region29: #{discriminator_forward.17} parent=0 // pred_fallthru
    _

</llo_original>
